<compile_context>
chip_gen: v7x
topology: tpu7x:2x2x1
jax: 0.10.0
libtpu: 0.0.40
codegen_flags: <defaults>
</compile_context>

<pallas_src>
import math

import numpy as np
import jax
import jax.numpy as jnp
from jax import lax
from jax.experimental import pallas as pl
from jax.experimental.pallas import tpu as pltpu

# Spatial grid hard-coded by the module's .view(-1, 8, 16, 16, vis_dim)
D_, H_, W_ = 8, 16, 16
NVOX = D_ * H_ * W_        # 2048 voxel rows per batch element
NROW = H_ * W_             # 256 voxel rows per depth slice


# ---------------------------------------------------------------------------
# Deterministic 3D positional encoding (PositionalEncodingPermute3D semantics),
# channel-last (D, H, W, C).  Pure glue: parameter-free constant table.
# ---------------------------------------------------------------------------
def positional_encoding_3d(d, h, w, c):
    channels = int(math.ceil(c / 6) * 2)  # always even
    inv_freq = 1.0 / (
        10000.0 ** (jnp.arange(0, channels, 2, dtype=jnp.float32) / channels))

    def get_emb(length):
        pos = jnp.arange(length, dtype=jnp.float32)
        sin_inp = pos[:, None] * inv_freq[None, :]
        emb = jnp.stack([jnp.sin(sin_inp), jnp.cos(sin_inp)], axis=-1)
        return emb.reshape(length, -1)  # (length, channels), interleaved

    emb_x, emb_y, emb_z = get_emb(d), get_emb(h), get_emb(w)
    emb = jnp.zeros((d, h, w, channels * 3), jnp.float32)
    emb = emb.at[..., 0 * channels:1 * channels].set(
        jnp.broadcast_to(emb_x[:, None, None, :], (d, h, w, channels)))
    emb = emb.at[..., 1 * channels:2 * channels].set(
        jnp.broadcast_to(emb_y[None, :, None, :], (d, h, w, channels)))
    emb = emb.at[..., 2 * channels:3 * channels].set(
        jnp.broadcast_to(emb_z[None, None, :, :], (d, h, w, channels)))
    return emb[..., :c]


# ---------------------------------------------------------------------------
# Fused kernel: (Linear -> ReLU -> Linear) + PE add + ResidualStack, per batch.
# ---------------------------------------------------------------------------
def bridge_kernel(vis_ref, txt_ref, w1v_ref, w1t_ref, b1_ref, w2_ref,
                  pe_ref, w3s_ref, w1x1_ref, o_ref, plane_ref, im2col_ref):
    feat = o_ref.shape[-1]
    kfeat = 9 * feat
    f32, bf16 = jnp.float32, jnp.bfloat16

    # ---- re-zero persistent halo regions every grid step (megacore-safe;
    #      ~150 vreg stores, negligible).  The interior is fully rewritten.
    plane_ref[0:1, :, :] = jnp.zeros((1, W_ + 2, feat), f32)
    plane_ref[H_ + 1:H_ + 2, :, :] = jnp.zeros((1, W_ + 2, feat), f32)
    im2col_ref[0, :, :] = jnp.zeros((NROW, kfeat), bf16)
    im2col_ref[D_ + 1, :, :] = jnp.zeros((NROW, kfeat), bf16)

    # ---- per-batch text contribution of fc1 (b_fc1 folded in); broadcast
    #      hoisted out of the Phase-1 loop.
    txt_bias = jnp.dot(txt_ref[...], w1t_ref[...],
                       preferred_element_type=f32) + b1_ref[...]     # (1, feat)
    txt_row = jnp.broadcast_to(txt_bias, (NROW, feat))

    # ---- Phase 1: MLP + PE -> skip into o_ref; ReLU + zero-pad -> im2col ----
    def phase1(od, carry):
        r0 = pl.multiple_of(od * NROW, NROW)
        v = vis_ref[pl.ds(r0, NROW), :].astype(bf16)                 # (256, vis)
        h1 = jnp.maximum(
            jnp.dot(v, w1v_ref[...], preferred_element_type=f32) + txt_row, 0.0)
        f = (jnp.dot(h1.astype(bf16), w2_ref[...], preferred_element_type=f32)
             + pe_ref[pl.ds(r0, NROW), :])         # PE table already carries b2
        o_ref[pl.ds(r0, NROW), :] = f              # skip / pre-activation

        # padded ReLU plane (W halo padded in-register; H halo rows stay zero)
        a = jnp.maximum(f, 0.0).reshape(H_, W_, feat)
        zcol = jnp.zeros((H_, 1, feat), f32)
        plane_ref[1:1 + H_, :, :] = jnp.concatenate([zcol, a, zcol], axis=1)

        # im2col plane od+1: 9 shifted (kh, kw) windows, bf16-cast at store
        # time, stored in pairs so every lane offset is 128-aligned.
        pd = od + 1

        def tap(t):
            kh, kw = t // 3, t % 3
            return (plane_ref[kh:kh + H_, kw:kw + W_, :]
                    .reshape(NROW, feat).astype(bf16))

        for p in range(4):
            pair = jnp.concatenate([tap(2 * p), tap(2 * p + 1)], axis=-1)
            im2col_ref[pd, :, 2 * p * feat:(2 * p + 2) * feat] = pair
        im2col_ref[pd, :, 8 * feat:9 * feat] = tap(8)
        return carry

    lax.fori_loop(0, D_, phase1, 0)

    # ---- Phase 2: 3x3x3 conv as 3 wide-K dots -> ReLU -> 1x1 -> skip+ReLU ---
    def phase2(od, carry):
        r0 = pl.multiple_of(od * NROW, NROW)
        acc = jnp.dot(im2col_ref[od], w3s_ref[0], preferred_element_type=f32)
        acc = acc + jnp.dot(im2col_ref[od + 1], w3s_ref[1],
                            preferred_element_type=f32)
        acc = acc + jnp.dot(im2col_ref[od + 2], w3s_ref[2],
                            preferred_element_type=f32)                # (256, cmid)
        hid = jnp.maximum(acc, 0.0).astype(bf16)
        y = jnp.dot(hid, w1x1_ref[...], preferred_element_type=f32)    # (256, feat)
        skip = o_ref[pl.ds(r0, NROW), :]
        o_ref[pl.ds(r0, NROW), :] = jnp.maximum(skip + y, 0.0)
        return carry

    lax.fori_loop(0, D_, phase2, 0)


# ---------------------------------------------------------------------------
# Full forward (wrapper = thin glue; all math lives in the single kernel)
# ---------------------------------------------------------------------------
def _bottom_bridge_3d(local_visual_embeddings, text_embedding, params):
    vis = local_visual_embeddings.reshape(
        -1, NVOX, local_visual_embeddings.shape[-1])
    b, _, vis_dim = vis.shape
    txt_dim = text_embedding.shape[-1]
    feat = params["w_fc2"].shape[-1]
    cmid = params["w_conv3"].shape[-1]

    # split fc1 so the text part becomes a per-batch bias (no concat/broadcast)
    w1v = params["w_fc1"][:vis_dim].astype(jnp.bfloat16)
    w1t = params["w_fc1"][vis_dim:]                      # f32 (tiny text dot)
    w2 = params["w_fc2"].astype(jnp.bfloat16)
    w1x1 = params["w_conv1"].astype(jnp.bfloat16)
    # K-stack conv weights: one (9*feat, cmid) matrix per kd, (kh, kw, cin) order
    w3s = params["w_conv3"].reshape(3, 9 * feat, cmid).astype(jnp.bfloat16)

    # (2048, feat) PE table with b_fc2 folded in, kept VMEM-resident
    pe = (positional_encoding_3d(D_, H_, W_, feat).reshape(NVOX, feat)
          + params["b_fc2"])

    txt = text_embedding[:, None, :]                     # (B, 1, txt_dim)

    out = pl.pallas_call(
        bridge_kernel,
        out_shape=jax.ShapeDtypeStruct((b, NVOX, feat), jnp.float32),
        grid_spec=pltpu.PrefetchScalarGridSpec(
            num_scalar_prefetch=0,
            grid=(b,),
            in_specs=[
                pl.BlockSpec((None, NVOX, vis_dim), lambda i: (i, 0, 0)),  # vis
                pl.BlockSpec((None, 1, txt_dim), lambda i: (i, 0, 0)),     # txt
                pl.BlockSpec((vis_dim, feat), lambda i: (0, 0)),           # w1 (vis)
                pl.BlockSpec((txt_dim, feat), lambda i: (0, 0)),           # w1 (txt)
                pl.BlockSpec((1, feat), lambda i: (0, 0)),                 # b1
                pl.BlockSpec((feat, feat), lambda i: (0, 0)),              # w2
                pl.BlockSpec((NVOX, feat), lambda i: (0, 0)),              # PE (+b2)
                pl.BlockSpec((3, 9 * feat, cmid), lambda i: (0, 0, 0)),    # conv3 (K-stacked)
                pl.BlockSpec((cmid, feat), lambda i: (0, 0)),              # conv1x1
            ],
            out_specs=pl.BlockSpec((None, NVOX, feat), lambda i: (i, 0, 0)),
            scratch_shapes=[
                pltpu.VMEM((H_ + 2, W_ + 2, feat), jnp.float32),           # padded plane
                pltpu.VMEM((D_ + 2, NROW, 9 * feat), jnp.bfloat16),        # im2col slabs
            ],
        ),
        compiler_params=pltpu.CompilerParams(
            dimension_semantics=("parallel",),
            vmem_limit_bytes=32 * 1024 * 1024,
        ),
    )(vis, txt, w1v, w1t, params["b_fc1"], w2, pe, w3s, w1x1)

    # back to PyTorch NCDHW: (B, feat, D, H, W)
    z = out.reshape(b, D_, H_, W_, feat)
    return jnp.transpose(z, (0, 4, 1, 2, 3))


bottom_bridge_3d = jax.jit(_bottom_bridge_3d)


# ---------------------------------------------------------------------------
# Deterministic parameter init (PyTorch-like uniform fan-in bounds)
# ---------------------------------------------------------------------------
def init_params(key, vis_dim, txt_dim, feat):
    ks = jax.random.split(key, 6)

    def lin(kw, kb, fan_in, fan_out):
        bound = 1.0 / math.sqrt(fan_in)
        w = jax.random.uniform(kw, (fan_in, fan_out), jnp.float32, -bound, bound)
        bvec = jax.random.uniform(kb, (1, fan_out), jnp.float32, -bound, bound)
        return w, bvec

    w1, b1 = lin(ks[0], ks[1], vis_dim + txt_dim, feat)
    w2, b2 = lin(ks[2], ks[3], feat, feat)
    cmid = feat // 2
    bound3 = 1.0 / math.sqrt(feat * 27)
    w_conv3 = jax.random.uniform(ks[4], (27, feat, cmid), jnp.float32,
                                 -bound3, bound3)  # (tap, Cin, Cmid)
    bound1 = 1.0 / math.sqrt(cmid)
    w_conv1 = jax.random.uniform(ks[5], (cmid, feat), jnp.float32,
                                 -bound1, bound1)
    return dict(w_fc1=w1, b_fc1=b1, w_fc2=w2, b_fc2=b2,
                w_conv3=w_conv3, w_conv1=w_conv1)


# ---------------------------------------------------------------------------
# Pure-JAX reference (same math, XLA conv) for a correctness check
# ---------------------------------------------------------------------------
def reference_forward(local_visual_embeddings, text_embedding, params):
    vis = local_visual_embeddings.reshape(
        -1, D_, H_, W_, local_visual_embeddings.shape[-1])
    b = vis.shape[0]
    txt = jnp.broadcast_to(text_embedding[:, None, None, None, :],
                           (b, D_, H_, W_, text_embedding.shape[-1]))
    x = jnp.concatenate([vis, txt], axis=-1)
    h = jnp.maximum(x @ params["w_fc1"] + params["b_fc1"][0], 0.0)
    fused = h @ params["w_fc2"] + params["b_fc2"][0]
    feat = fused.shape[-1]
    fused = fused + positional_encoding_3d(D_, H_, W_, feat)[None]

    a = jnp.maximum(fused, 0.0)
    w3 = params["w_conv3"].reshape(3, 3, 3, feat, feat // 2)  # DHWIO
    conv = lax.conv_general_dilated(
        a, w3, window_strides=(1, 1, 1), padding="SAME",
        dimension_numbers=("NDHWC", "DHWIO", "NDHWC"))
    hid = jnp.maximum(conv, 0.0)
    y = hid @ params["w_conv1"]
    z = jnp.maximum(fused + y, 0.0)
    return jnp.transpose(z, (0, 4, 1, 2, 3))


if __name__ == "__main__":
    B = 2
    VIS_DIM, TXT_DIM, FEAT_DIM = 32, 32, 64

    key = jax.random.PRNGKey(0)
    k_vis, k_txt, k_par = jax.random.split(key, 3)
    local_visual_embeddings = jax.random.normal(
        k_vis, (B, NVOX, VIS_DIM), jnp.float32)
    text_embedding = jax.random.normal(k_txt, (B, TXT_DIM), jnp.float32)
    params = init_params(k_par, VIS_DIM, TXT_DIM, FEAT_DIM)

    out = jax.block_until_ready(
        bottom_bridge_3d(local_visual_embeddings, text_embedding, params))
    assert out.shape == (B, FEAT_DIM, D_, H_, W_), out.shape
    assert out.dtype == jnp.float32

    ref = jax.block_until_ready(
        reference_forward(local_visual_embeddings, text_embedding, params))
    np.testing.assert_allclose(np.asarray(out), np.asarray(ref),
                               rtol=5e-2, atol=2e-2)
    print("KERNEL_OK")
</pallas_src>

<mosaic_0001>
module attributes {stable_mosaic.version = 11 : i64} {
  func.func @bridge_kernel(%arg0: i32, %arg1: memref<1x2048x32xf32, #tpu.memory_space<vmem>>, %arg2: memref<1x1x32xf32, #tpu.memory_space<vmem>>, %arg3: memref<32x64xbf16, #tpu.memory_space<vmem>>, %arg4: memref<32x64xf32, #tpu.memory_space<vmem>>, %arg5: memref<1x64xf32, #tpu.memory_space<vmem>>, %arg6: memref<64x64xbf16, #tpu.memory_space<vmem>>, %arg7: memref<2048x64xf32, #tpu.memory_space<vmem>>, %arg8: memref<3x576x32xbf16, #tpu.memory_space<vmem>>, %arg9: memref<32x64xbf16, #tpu.memory_space<vmem>>, %arg10: memref<1x2048x64xf32, #tpu.memory_space<vmem>>, %arg11: memref<18x18x64xf32, #tpu.memory_space<vmem>>, %arg12: memref<10x256x576xbf16, #tpu.memory_space<vmem>>) attributes {dimension_semantics = [#tpu.dimension_semantics<parallel>], iteration_bounds = array<i64: 2>, scalar_prefetch = 0 : i64, scratch_operands = 2 : i64, tpu.core_type = #tpu.core_type<tc>, window_params = [{transform_indices = @transform_0, window_bounds = array<i64: 1, 2048, 32>}, {transform_indices = @transform_1, window_bounds = array<i64: 1, 1, 32>}, {pipeline_mode = #tpu.pipeline_mode<synchronous>, transform_indices = @transform_2, window_bounds = array<i64: 32, 64>}, {pipeline_mode = #tpu.pipeline_mode<synchronous>, transform_indices = @transform_3, window_bounds = array<i64: 32, 64>}, {pipeline_mode = #tpu.pipeline_mode<synchronous>, transform_indices = @transform_4, window_bounds = array<i64: 1, 64>}, {pipeline_mode = #tpu.pipeline_mode<synchronous>, transform_indices = @transform_5, window_bounds = array<i64: 64, 64>}, {pipeline_mode = #tpu.pipeline_mode<synchronous>, transform_indices = @transform_6, window_bounds = array<i64: 2048, 64>}, {pipeline_mode = #tpu.pipeline_mode<synchronous>, transform_indices = @transform_7, window_bounds = array<i64: 3, 576, 32>}, {pipeline_mode = #tpu.pipeline_mode<synchronous>, transform_indices = @transform_8, window_bounds = array<i64: 32, 64>}, {transform_indices = @transform_9, window_bounds = array<i64: 1, 2048, 64>}]} {
    %cst = arith.constant 0.000000e+00 : f32
    %0 = vector.broadcast %cst : f32 to vector<1x18x64xf32>
    %c0 = arith.constant 0 : index
    %c0_0 = arith.constant 0 : index
    %c0_1 = arith.constant 0 : index
    %1 = vector.load %arg11[%c0, %c0_0, %c0_1] : memref<18x18x64xf32, #tpu.memory_space<vmem>>, vector<1x18x64xf32>
    tpu.vector_store %arg11[%c0, %c0_0, %c0_1], %0 {strides = array<i32>} : memref<18x18x64xf32, #tpu.memory_space<vmem>>, vector<1x18x64xf32>,
    %cst_2 = arith.constant 0.000000e+00 : f32
    %2 = vector.broadcast %cst_2 : f32 to vector<1x18x64xf32>
    %c17 = arith.constant 17 : index
    %c0_3 = arith.constant 0 : index
    %c0_4 = arith.constant 0 : index
    %3 = vector.load %arg11[%c17, %c0_3, %c0_4] : memref<18x18x64xf32, #tpu.memory_space<vmem>>, vector<1x18x64xf32>
    tpu.vector_store %arg11[%c17, %c0_3, %c0_4], %2 {strides = array<i32>} : memref<18x18x64xf32, #tpu.memory_space<vmem>>, vector<1x18x64xf32>,
    %cst_5 = arith.constant 0.000000e+00 : bf16
    %4 = vector.broadcast %cst_5 : bf16 to vector<256x576xbf16>
    %c0_6 = arith.constant 0 : index
    %c0_7 = arith.constant 0 : index
    %c0_8 = arith.constant 0 : index
    %5 = vector.load %arg12[%c0_6, %c0_7, %c0_8] : memref<10x256x576xbf16, #tpu.memory_space<vmem>>, vector<1x256x576xbf16>
    %6 = vector.shape_cast %5 : vector<1x256x576xbf16> to vector<256x576xbf16>
    %7 = vector.shape_cast %4 : vector<256x576xbf16> to vector<1x256x576xbf16>
    tpu.vector_store %arg12[%c0_6, %c0_7, %c0_8], %7 {strides = array<i32>} : memref<10x256x576xbf16, #tpu.memory_space<vmem>>, vector<1x256x576xbf16>,
    %cst_9 = arith.constant 0.000000e+00 : bf16
    %8 = vector.broadcast %cst_9 : bf16 to vector<256x576xbf16>
    %c9 = arith.constant 9 : index
    %c0_10 = arith.constant 0 : index
    %c0_11 = arith.constant 0 : index
    %9 = vector.load %arg12[%c9, %c0_10, %c0_11] : memref<10x256x576xbf16, #tpu.memory_space<vmem>>, vector<1x256x576xbf16>
    %10 = vector.shape_cast %9 : vector<1x256x576xbf16> to vector<256x576xbf16>
    %11 = vector.shape_cast %8 : vector<256x576xbf16> to vector<1x256x576xbf16>
    tpu.vector_store %arg12[%c9, %c0_10, %c0_11], %11 {strides = array<i32>} : memref<10x256x576xbf16, #tpu.memory_space<vmem>>, vector<1x256x576xbf16>,
    %c0_12 = arith.constant 0 : index
    %c0_13 = arith.constant 0 : index
    %c0_14 = arith.constant 0 : index
    %12 = vector.load %arg2[%c0_12, %c0_13, %c0_14] : memref<1x1x32xf32, #tpu.memory_space<vmem>>, vector<1x1x32xf32>
    %13 = vector.shape_cast %12 : vector<1x1x32xf32> to vector<1x32xf32>
    %c0_15 = arith.constant 0 : index
    %c0_16 = arith.constant 0 : index
    %14 = vector.load %arg4[%c0_15, %c0_16] : memref<32x64xf32, #tpu.memory_space<vmem>>, vector<32x64xf32>
    %cst_17 = arith.constant dense<0.000000e+00> : vector<1x64xf32>
    %15 = tpu.matmul %13, %14, %cst_17 {dimension_numbers = #tpu.dot_dimension_numbers<[1], [0], [0], [1], [0, 0, 1, 1], [], []>} : vector<1x32xf32>, vector<32x64xf32>, vector<1x64xf32> -> vector<1x64xf32>
    %c0_18 = arith.constant 0 : index
    %c0_19 = arith.constant 0 : index
    %16 = vector.load %arg5[%c0_18, %c0_19] : memref<1x64xf32, #tpu.memory_space<vmem>>, vector<1x64xf32>
    %17 = arith.addf %15, %16 : vector<1x64xf32>
    %18 = vector.shape_cast %17 : vector<1x64xf32> to vector<1x64xf32>
    %19 = vector.broadcast %18 : vector<1x64xf32> to vector<256x64xf32>
    %c0_i32 = arith.constant 0 : i32
    %c8_i32 = arith.constant 8 : i32
    %20 = arith.addi %c0_i32, %c8_i32 : i32
    %c1_i32 = arith.constant 1 : i32
    scf.for %arg13 = %c0_i32 to %20 step %c1_i32  : i32 {
      %c256_i32 = arith.constant 256 : i32
      %22 = arith.muli %arg13, %c256_i32 : i32
      %23 = tpu.assume_multiple %22, 256 : i32
      %c0_25 = arith.constant 0 : index
      %24 = arith.index_cast %23 : i32 to index
      %c0_26 = arith.constant 0 : index
      %25 = vector.load %arg1[%c0_25, %24, %c0_26] : memref<1x2048x32xf32, #tpu.memory_space<vmem>>, vector<1x256x32xf32>
      %26 = vector.shape_cast %25 : vector<1x256x32xf32> to vector<256x32xf32>
      %27 = arith.truncf %26 : vector<256x32xf32> to vector<256x32xbf16>
      %c0_27 = arith.constant 0 : index
      %c0_28 = arith.constant 0 : index
      %28 = vector.load %arg3[%c0_27, %c0_28] : memref<32x64xbf16, #tpu.memory_space<vmem>>, vector<32x64xbf16>
      %cst_29 = arith.constant dense<0.000000e+00> : vector<256x64xf32>
      %29 = tpu.matmul %27, %28, %cst_29 {dimension_numbers = #tpu.dot_dimension_numbers<[1], [0], [0], [1], [0, 0, 1, 1], [], []>} : vector<256x32xbf16>, vector<32x64xbf16>, vector<256x64xf32> -> vector<256x64xf32>
      %30 = arith.addf %29, %19 : vector<256x64xf32>
      %cst_30 = arith.constant 0.000000e+00 : f32
      %31 = vector.broadcast %cst_30 : f32 to vector<256x64xf32>
      %32 = arith.maximumf %30, %31 : vector<256x64xf32>
      %33 = arith.truncf %32 : vector<256x64xf32> to vector<256x64xbf16>
      %c0_31 = arith.constant 0 : index
      %c0_32 = arith.constant 0 : index
      %34 = vector.load %arg6[%c0_31, %c0_32] : memref<64x64xbf16, #tpu.memory_space<vmem>>, vector<64x64xbf16>
      %cst_33 = arith.constant dense<0.000000e+00> : vector<256x64xf32>
      %35 = tpu.matmul %33, %34, %cst_33 {dimension_numbers = #tpu.dot_dimension_numbers<[1], [0], [0], [1], [0, 0, 1, 1], [], []>} : vector<256x64xbf16>, vector<64x64xbf16>, vector<256x64xf32> -> vector<256x64xf32>
      %36 = arith.index_cast %23 : i32 to index
      %c0_34 = arith.constant 0 : index
      %37 = vector.load %arg7[%36, %c0_34] : memref<2048x64xf32, #tpu.memory_space<vmem>>, vector<256x64xf32>
      %38 = arith.addf %35, %37 : vector<256x64xf32>
      %c0_35 = arith.constant 0 : index
      %39 = arith.index_cast %23 : i32 to index
      %c0_36 = arith.constant 0 : index
      %40 = vector.load %arg10[%c0_35, %39, %c0_36] : memref<1x2048x64xf32, #tpu.memory_space<vmem>>, vector<1x256x64xf32>
      %41 = vector.shape_cast %40 : vector<1x256x64xf32> to vector<256x64xf32>
      %42 = vector.shape_cast %38 : vector<256x64xf32> to vector<1x256x64xf32>
      tpu.vector_store %arg10[%c0_35, %39, %c0_36], %42 {strides = array<i32>} : memref<1x2048x64xf32, #tpu.memory_space<vmem>>, vector<1x256x64xf32>,
      %cst_37 = arith.constant 0.000000e+00 : f32
      %43 = vector.broadcast %cst_37 : f32 to vector<256x64xf32>
      %44 = arith.maximumf %38, %43 : vector<256x64xf32>
      %45 = vector.shape_cast %44 : vector<256x64xf32> to vector<16x16x64xf32>
      %cst_38 = arith.constant 0.000000e+00 : f32
      %46 = vector.broadcast %cst_38 : f32 to vector<16x1x64xf32>
      %47 = tpu.concatenate %46, %45, %46 in 1 : vector<16x1x64xf32>, vector<16x16x64xf32>, vector<16x1x64xf32> -> vector<16x18x64xf32>
      %c1 = arith.constant 1 : index
      %c0_39 = arith.constant 0 : index
      %c0_40 = arith.constant 0 : index
      %48 = vector.load %arg11[%c1, %c0_39, %c0_40] : memref<18x18x64xf32, #tpu.memory_space<vmem>>, vector<16x18x64xf32>
      tpu.vector_store %arg11[%c1, %c0_39, %c0_40], %47 {strides = array<i32>} : memref<18x18x64xf32, #tpu.memory_space<vmem>>, vector<16x18x64xf32>,
      %c1_i32_41 = arith.constant 1 : i32
      %49 = arith.addi %arg13, %c1_i32_41 : i32
      %c0_42 = arith.constant 0 : index
      %c0_43 = arith.constant 0 : index
      %c0_44 = arith.constant 0 : index
      %50 = vector.load %arg11[%c0_42, %c0_43, %c0_44] : memref<18x18x64xf32, #tpu.memory_space<vmem>>, vector<16x16x64xf32>
      %51 = vector.shape_cast %50 : vector<16x16x64xf32> to vector<256x64xf32>
      %52 = arith.truncf %51 : vector<256x64xf32> to vector<256x64xbf16>
      %c0_45 = arith.constant 0 : index
      %c1_46 = arith.constant 1 : index
      %c0_47 = arith.constant 0 : index
      %53 = vector.load %arg11[%c0_45, %c1_46, %c0_47] : memref<18x18x64xf32, #tpu.memory_space<vmem>>, vector<16x16x64xf32>
      %54 = vector.shape_cast %53 : vector<16x16x64xf32> to vector<256x64xf32>
      %55 = arith.truncf %54 : vector<256x64xf32> to vector<256x64xbf16>
      %56 = tpu.concatenate %52, %55 in 1 : vector<256x64xbf16>, vector<256x64xbf16> -> vector<256x128xbf16>
      %57 = arith.index_cast %49 : i32 to index
      %c0_48 = arith.constant 0 : index
      %c0_49 = arith.constant 0 : index
      %58 = vector.load %arg12[%57, %c0_48, %c0_49] : memref<10x256x576xbf16, #tpu.memory_space<vmem>>, vector<1x256x128xbf16>
      %59 = vector.shape_cast %58 : vector<1x256x128xbf16> to vector<256x128xbf16>
      %60 = vector.shape_cast %56 : vector<256x128xbf16> to vector<1x256x128xbf16>
      tpu.vector_store %arg12[%57, %c0_48, %c0_49], %60 {strides = array<i32>} : memref<10x256x576xbf16, #tpu.memory_space<vmem>>, vector<1x256x128xbf16>,
      %c0_50 = arith.constant 0 : index
      %c2 = arith.constant 2 : index
      %c0_51 = arith.constant 0 : index
      %61 = vector.load %arg11[%c0_50, %c2, %c0_51] : memref<18x18x64xf32, #tpu.memory_space<vmem>>, vector<16x16x64xf32>
      %62 = vector.shape_cast %61 : vector<16x16x64xf32> to vector<256x64xf32>
      %63 = arith.truncf %62 : vector<256x64xf32> to vector<256x64xbf16>
      %c1_52 = arith.constant 1 : index
      %c0_53 = arith.constant 0 : index
      %c0_54 = arith.constant 0 : index
      %64 = vector.load %arg11[%c1_52, %c0_53, %c0_54] : memref<18x18x64xf32, #tpu.memory_space<vmem>>, vector<16x16x64xf32>
      %65 = vector.shape_cast %64 : vector<16x16x64xf32> to vector<256x64xf32>
      %66 = arith.truncf %65 : vector<256x64xf32> to vector<256x64xbf16>
      %67 = tpu.concatenate %63, %66 in 1 : vector<256x64xbf16>, vector<256x64xbf16> -> vector<256x128xbf16>
      %68 = arith.index_cast %49 : i32 to index
      %c0_55 = arith.constant 0 : index
      %c128 = arith.constant 128 : index
      %69 = vector.load %arg12[%68, %c0_55, %c128] : memref<10x256x576xbf16, #tpu.memory_space<vmem>>, vector<1x256x128xbf16>
      %70 = vector.shape_cast %69 : vector<1x256x128xbf16> to vector<256x128xbf16>
      %71 = vector.shape_cast %67 : vector<256x128xbf16> to vector<1x256x128xbf16>
      tpu.vector_store %arg12[%68, %c0_55, %c128], %71 {strides = array<i32>} : memref<10x256x576xbf16, #tpu.memory_space<vmem>>, vector<1x256x128xbf16>,
      %c1_56 = arith.constant 1 : index
      %c1_57 = arith.constant 1 : index
      %c0_58 = arith.constant 0 : index
      %72 = vector.load %arg11[%c1_56, %c1_57, %c0_58] : memref<18x18x64xf32, #tpu.memory_space<vmem>>, vector<16x16x64xf32>
      %73 = vector.shape_cast %72 : vector<16x16x64xf32> to vector<256x64xf32>
      %74 = arith.truncf %73 : vector<256x64xf32> to vector<256x64xbf16>
      %c1_59 = arith.constant 1 : index
      %c2_60 = arith.constant 2 : index
      %c0_61 = arith.constant 0 : index
      %75 = vector.load %arg11[%c1_59, %c2_60, %c0_61] : memref<18x18x64xf32, #tpu.memory_space<vmem>>, vector<16x16x64xf32>
      %76 = vector.shape_cast %75 : vector<16x16x64xf32> to vector<256x64xf32>
      %77 = arith.truncf %76 : vector<256x64xf32> to vector<256x64xbf16>
      %78 = tpu.concatenate %74, %77 in 1 : vector<256x64xbf16>, vector<256x64xbf16> -> vector<256x128xbf16>
      %79 = arith.index_cast %49 : i32 to index
      %c0_62 = arith.constant 0 : index
      %c256 = arith.constant 256 : index
      %80 = vector.load %arg12[%79, %c0_62, %c256] : memref<10x256x576xbf16, #tpu.memory_space<vmem>>, vector<1x256x128xbf16>
      %81 = vector.shape_cast %80 : vector<1x256x128xbf16> to vector<256x128xbf16>
      %82 = vector.shape_cast %78 : vector<256x128xbf16> to vector<1x256x128xbf16>
      tpu.vector_store %arg12[%79, %c0_62, %c256], %82 {strides = array<i32>} : memref<10x256x576xbf16, #tpu.memory_space<vmem>>, vector<1x256x128xbf16>,
      %c2_63 = arith.constant 2 : index
      %c0_64 = arith.constant 0 : index
      %c0_65 = arith.constant 0 : index
      %83 = vector.load %arg11[%c2_63, %c0_64, %c0_65] : memref<18x18x64xf32, #tpu.memory_space<vmem>>, vector<16x16x64xf32>
      %84 = vector.shape_cast %83 : vector<16x16x64xf32> to vector<256x64xf32>
      %85 = arith.truncf %84 : vector<256x64xf32> to vector<256x64xbf16>
      %c2_66 = arith.constant 2 : index
      %c1_67 = arith.constant 1 : index
      %c0_68 = arith.constant 0 : index
      %86 = vector.load %arg11[%c2_66, %c1_67, %c0_68] : memref<18x18x64xf32, #tpu.memory_space<vmem>>, vector<16x16x64xf32>
      %87 = vector.shape_cast %86 : vector<16x16x64xf32> to vector<256x64xf32>
      %88 = arith.truncf %87 : vector<256x64xf32> to vector<256x64xbf16>
      %89 = tpu.concatenate %85, %88 in 1 : vector<256x64xbf16>, vector<256x64xbf16> -> vector<256x128xbf16>
      %90 = arith.index_cast %49 : i32 to index
      %c0_69 = arith.constant 0 : index
      %c384 = arith.constant 384 : index
      %91 = vector.load %arg12[%90, %c0_69, %c384] : memref<10x256x576xbf16, #tpu.memory_space<vmem>>, vector<1x256x128xbf16>
      %92 = vector.shape_cast %91 : vector<1x256x128xbf16> to vector<256x128xbf16>
      %93 = vector.shape_cast %89 : vector<256x128xbf16> to vector<1x256x128xbf16>
      tpu.vector_store %arg12[%90, %c0_69, %c384], %93 {strides = array<i32>} : memref<10x256x576xbf16, #tpu.memory_space<vmem>>, vector<1x256x128xbf16>,
      %c2_70 = arith.constant 2 : index
      %c2_71 = arith.constant 2 : index
      %c0_72 = arith.constant 0 : index
      %94 = vector.load %arg11[%c2_70, %c2_71, %c0_72] : memref<18x18x64xf32, #tpu.memory_space<vmem>>, vector<16x16x64xf32>
      %95 = vector.shape_cast %94 : vector<16x16x64xf32> to vector<256x64xf32>
      %96 = arith.truncf %95 : vector<256x64xf32> to vector<256x64xbf16>
      %97 = arith.index_cast %49 : i32 to index
      %c0_73 = arith.constant 0 : index
      %c512 = arith.constant 512 : index
      %98 = vector.load %arg12[%97, %c0_73, %c512] : memref<10x256x576xbf16, #tpu.memory_space<vmem>>, vector<1x256x64xbf16>
      %99 = vector.shape_cast %98 : vector<1x256x64xbf16> to vector<256x64xbf16>
      %100 = vector.shape_cast %96 : vector<256x64xbf16> to vector<1x256x64xbf16>
      tpu.vector_store %arg12[%97, %c0_73, %c512], %100 {strides = array<i32>} : memref<10x256x576xbf16, #tpu.memory_space<vmem>>, vector<1x256x64xbf16>,
    }
    %c8_i32_20 = arith.constant 8 : i32
    %c0_i32_21 = arith.constant 0 : i32
    %c8_i32_22 = arith.constant 8 : i32
    %21 = arith.addi %c0_i32_21, %c8_i32_22 : i32
    %c1_i32_23 = arith.constant 1 : i32
    scf.for %arg13 = %c0_i32_21 to %21 step %c1_i32_23  : i32 {
      %c256_i32 = arith.constant 256 : i32
      %22 = arith.muli %arg13, %c256_i32 : i32
      %23 = tpu.assume_multiple %22, 256 : i32
      %24 = arith.index_cast %arg13 : i32 to index
      %c0_25 = arith.constant 0 : index
      %c0_26 = arith.constant 0 : index
      %25 = vector.load %arg12[%24, %c0_25, %c0_26] : memref<10x256x576xbf16, #tpu.memory_space<vmem>>, vector<1x256x576xbf16>
      %26 = vector.shape_cast %25 : vector<1x256x576xbf16> to vector<256x576xbf16>
      %c0_27 = arith.constant 0 : index
      %c0_28 = arith.constant 0 : index
      %c0_29 = arith.constant 0 : index
      %27 = vector.load %arg8[%c0_27, %c0_28, %c0_29] : memref<3x576x32xbf16, #tpu.memory_space<vmem>>, vector<1x576x32xbf16>
      %28 = vector.shape_cast %27 : vector<1x576x32xbf16> to vector<576x32xbf16>
      %cst_30 = arith.constant dense<0.000000e+00> : vector<256x32xf32>
      %29 = tpu.matmul %26, %28, %cst_30 {dimension_numbers = #tpu.dot_dimension_numbers<[1], [0], [0], [1], [0, 0, 1, 1], [], []>} : vector<256x576xbf16>, vector<576x32xbf16>, vector<256x32xf32> -> vector<256x32xf32>
      %c1_i32_31 = arith.constant 1 : i32
      %30 = arith.addi %arg13, %c1_i32_31 : i32
      %31 = arith.index_cast %30 : i32 to index
      %c0_32 = arith.constant 0 : index
      %c0_33 = arith.constant 0 : index
      %32 = vector.load %arg12[%31, %c0_32, %c0_33] : memref<10x256x576xbf16, #tpu.memory_space<vmem>>, vector<1x256x576xbf16>
      %33 = vector.shape_cast %32 : vector<1x256x576xbf16> to vector<256x576xbf16>
      %c1 = arith.constant 1 : index
      %c0_34 = arith.constant 0 : index
      %c0_35 = arith.constant 0 : index
      %34 = vector.load %arg8[%c1, %c0_34, %c0_35] : memref<3x576x32xbf16, #tpu.memory_space<vmem>>, vector<1x576x32xbf16>
      %35 = vector.shape_cast %34 : vector<1x576x32xbf16> to vector<576x32xbf16>
      %cst_36 = arith.constant dense<0.000000e+00> : vector<256x32xf32>
      %36 = tpu.matmul %33, %35, %cst_36 {dimension_numbers = #tpu.dot_dimension_numbers<[1], [0], [0], [1], [0, 0, 1, 1], [], []>} : vector<256x576xbf16>, vector<576x32xbf16>, vector<256x32xf32> -> vector<256x32xf32>
      %37 = arith.addf %29, %36 : vector<256x32xf32>
      %c2_i32 = arith.constant 2 : i32
      %38 = arith.addi %arg13, %c2_i32 : i32
      %39 = arith.index_cast %38 : i32 to index
      %c0_37 = arith.constant 0 : index
      %c0_38 = arith.constant 0 : index
      %40 = vector.load %arg12[%39, %c0_37, %c0_38] : memref<10x256x576xbf16, #tpu.memory_space<vmem>>, vector<1x256x576xbf16>
      %41 = vector.shape_cast %40 : vector<1x256x576xbf16> to vector<256x576xbf16>
      %c2 = arith.constant 2 : index
      %c0_39 = arith.constant 0 : index
      %c0_40 = arith.constant 0 : index
      %42 = vector.load %arg8[%c2, %c0_39, %c0_40] : memref<3x576x32xbf16, #tpu.memory_space<vmem>>, vector<1x576x32xbf16>
      %43 = vector.shape_cast %42 : vector<1x576x32xbf16> to vector<576x32xbf16>
      %cst_41 = arith.constant dense<0.000000e+00> : vector<256x32xf32>
      %44 = tpu.matmul %41, %43, %cst_41 {dimension_numbers = #tpu.dot_dimension_numbers<[1], [0], [0], [1], [0, 0, 1, 1], [], []>} : vector<256x576xbf16>, vector<576x32xbf16>, vector<256x32xf32> -> vector<256x32xf32>
      %45 = arith.addf %37, %44 : vector<256x32xf32>
      %cst_42 = arith.constant 0.000000e+00 : f32
      %46 = vector.broadcast %cst_42 : f32 to vector<256x32xf32>
      %47 = arith.maximumf %45, %46 : vector<256x32xf32>
      %48 = arith.truncf %47 : vector<256x32xf32> to vector<256x32xbf16>
      %c0_43 = arith.constant 0 : index
      %c0_44 = arith.constant 0 : index
      %49 = vector.load %arg9[%c0_43, %c0_44] : memref<32x64xbf16, #tpu.memory_space<vmem>>, vector<32x64xbf16>
      %cst_45 = arith.constant dense<0.000000e+00> : vector<256x64xf32>
      %50 = tpu.matmul %48, %49, %cst_45 {dimension_numbers = #tpu.dot_dimension_numbers<[1], [0], [0], [1], [0, 0, 1, 1], [], []>} : vector<256x32xbf16>, vector<32x64xbf16>, vector<256x64xf32> -> vector<256x64xf32>
      %c0_46 = arith.constant 0 : index
      %51 = arith.index_cast %23 : i32 to index
      %c0_47 = arith.constant 0 : index
      %52 = vector.load %arg10[%c0_46, %51, %c0_47] : memref<1x2048x64xf32, #tpu.memory_space<vmem>>, vector<1x256x64xf32>
      %53 = vector.shape_cast %52 : vector<1x256x64xf32> to vector<256x64xf32>
      %54 = arith.addf %53, %50 : vector<256x64xf32>
      %cst_48 = arith.constant 0.000000e+00 : f32
      %55 = vector.broadcast %cst_48 : f32 to vector<256x64xf32>
      %56 = arith.maximumf %54, %55 : vector<256x64xf32>
      %c0_49 = arith.constant 0 : index
      %57 = arith.index_cast %23 : i32 to index
      %c0_50 = arith.constant 0 : index
      %58 = vector.load %arg10[%c0_49, %57, %c0_50] : memref<1x2048x64xf32, #tpu.memory_space<vmem>>, vector<1x256x64xf32>
      %59 = vector.shape_cast %58 : vector<1x256x64xf32> to vector<256x64xf32>
      %60 = vector.shape_cast %56 : vector<256x64xf32> to vector<1x256x64xf32>
      tpu.vector_store %arg10[%c0_49, %57, %c0_50], %60 {strides = array<i32>} : memref<1x2048x64xf32, #tpu.memory_space<vmem>>, vector<1x256x64xf32>,
    }
    %c8_i32_24 = arith.constant 8 : i32
    return
  }
  func.func @transform_0(%arg0: i32) -> (i32, i32, i32) {
    %c0_i32 = arith.constant 0 : i32
    %c0_i32_0 = arith.constant 0 : i32
    %c0_i32_1 = arith.constant 0 : i32
    return %arg0, %c0_i32, %c0_i32_0 : i32, i32, i32
  }
  func.func @transform_1(%arg0: i32) -> (i32, i32, i32) {
    %c0_i32 = arith.constant 0 : i32
    %c0_i32_0 = arith.constant 0 : i32
    %c0_i32_1 = arith.constant 0 : i32
    return %arg0, %c0_i32, %c0_i32_0 : i32, i32, i32
  }
  func.func @transform_2(%arg0: i32) -> (i32, i32) {
    %c0_i32 = arith.constant 0 : i32
    %c0_i32_0 = arith.constant 0 : i32
    %c0_i32_1 = arith.constant 0 : i32
    return %c0_i32, %c0_i32_0 : i32, i32
  }
  func.func @transform_3(%arg0: i32) -> (i32, i32) {
    %c0_i32 = arith.constant 0 : i32
    %c0_i32_0 = arith.constant 0 : i32
    %c0_i32_1 = arith.constant 0 : i32
    return %c0_i32, %c0_i32_0 : i32, i32
  }
  func.func @transform_4(%arg0: i32) -> (i32, i32) {
    %c0_i32 = arith.constant 0 : i32
    %c0_i32_0 = arith.constant 0 : i32
    %c0_i32_1 = arith.constant 0 : i32
    return %c0_i32, %c0_i32_0 : i32, i32
  }
  func.func @transform_5(%arg0: i32) -> (i32, i32) {
    %c0_i32 = arith.constant 0 : i32
    %c0_i32_0 = arith.constant 0 : i32
    %c0_i32_1 = arith.constant 0 : i32
    return %c0_i32, %c0_i32_0 : i32, i32
  }
  func.func @transform_6(%arg0: i32) -> (i32, i32) {
    %c0_i32 = arith.constant 0 : i32
    %c0_i32_0 = arith.constant 0 : i32
    %c0_i32_1 = arith.constant 0 : i32
    return %c0_i32, %c0_i32_0 : i32, i32
  }
  func.func @transform_7(%arg0: i32) -> (i32, i32, i32) {
    %c0_i32 = arith.constant 0 : i32
    %c0_i32_0 = arith.constant 0 : i32
    %c0_i32_1 = arith.constant 0 : i32
    %c0_i32_2 = arith.constant 0 : i32
    return %c0_i32, %c0_i32_0, %c0_i32_1 : i32, i32, i32
  }
  func.func @transform_8(%arg0: i32) -> (i32, i32) {
    %c0_i32 = arith.constant 0 : i32
    %c0_i32_0 = arith.constant 0 : i32
    %c0_i32_1 = arith.constant 0 : i32
    return %c0_i32, %c0_i32_0 : i32, i32
  }
  func.func @transform_9(%arg0: i32) -> (i32, i32, i32) {
    %c0_i32 = arith.constant 0 : i32
    %c0_i32_0 = arith.constant 0 : i32
    %c0_i32_1 = arith.constant 0 : i32
    return %arg0, %c0_i32, %c0_i32_0 : i32, i32, i32
  }
}

</mosaic_0001>

<llo_original>
// kernel: _bottom_bridge_3d.1
$region0: #{_bottom_bridge_3d.1}
  #allocation0 [shape = 'u32[]', space=smem, size = 0x4, offset = 0x4, fixed_abs, tag = 'smem constant byte address 0x4 - core index']
  #allocation1 [shape = 'u32[144,128]{1,0:T(1,128)}', space=vmem, size = 0x12000, scoped, tag = 'internal scratch']
  #allocation2 [shape = 'f32[18,18,64]{2,1,0:T(8,128)}', space=vmem, size = 0x36000, scoped, tag = 'scratch operand']
  #allocation3 [shape = 'bf16[10,256,576]{2,1,0:T(16,128)(2,1)}', space=vmem, size = 0x320000, scoped, tag = 'scratch operand']
  %s0 = inlined_call_operand.vmem [shape: f32[2,2048,32], index: 0, kind: input, shape index: {}]
  %s1 = inlined_call_operand.vmem [shape: f32[2,1,32], index: 1, kind: input, shape index: {}]
  %s2 = inlined_call_operand.vmem [shape: bf16[32,64], index: 2, kind: input, shape index: {}]
  %s3 = inlined_call_operand.vmem [shape: f32[32,64], index: 3, kind: input, shape index: {}]
  %s4 = inlined_call_operand.vmem [shape: f32[1,64], index: 4, kind: input, shape index: {}]
  %s5 = inlined_call_operand.vmem [shape: bf16[64,64], index: 5, kind: input, shape index: {}]
  %s6 = inlined_call_operand.vmem [shape: f32[2048,64], index: 6, kind: input, shape index: {}]
  %s7 = inlined_call_operand.vmem [shape: bf16[3,576,32], index: 7, kind: input, shape index: {}]
  %s8 = inlined_call_operand.vmem [shape: bf16[32,64], index: 8, kind: input, shape index: {}]
  %s9 = inlined_call_operand.hbm [shape: f32[2,2048,64], index: 9, kind: output, shape index: {}]
  %s10 = sld [smem:[#allocation0]]
  $region83: #{_bottom_bridge_3d.1} parent=0
    _
  %s12 = ssub.s32 1, %s10
  %s13 = scalar_select 0, %s12, %s10
  $region1: #{_bottom_bridge_3d.1} parent=0
    #allocation4 [shape = 'u8[2097152]{0}', space=vmem, size = 0x200000, scoped, tag = 'output window, operand 0']
    #allocation5 [shape = 's32[2]{0}', space=sflag, size = 0x8, scoped, tag = 'scoped memory for _bottom_bridge_3d.1']
    %14 = vsyncpa [#allocation5], 0
    %s15 = scalar_lea.sflag [#allocation5], 1
    %16 = vsyncpa %s15, 0
    loop: start=0, step=1, limit=4
    $region2: #{_bottom_bridge_3d.1} parent=1 // loop_pre_header
      _
    $region3: #{_bottom_bridge_3d.1} parent=1 // loop_header
      %s18 = sphi 0, %s22
      %p19 = scmp.ge.s32.totalorder %s18, 4
      %s28 = sphi 0, %s30
      %s31 = sphi 0, %s28
      %s32 = sphi 0, %s31
      %s48 = sphi 0, %s32
      %s54 = sphi 0, %s56
      %s57 = sphi 0, %s54
      %s58 = sphi 0, %s57
      %s74 = sphi 0, %s58
      %s78 = sphi 0, %s78
      %s80 = sphi 0, %s78
      %s81 = sphi 0, %s80
      %s95 = sphi 0, %s81
      %s99 = sphi 0, %s99
      %s101 = sphi 0, %s99
      %s102 = sphi 0, %s101
      %s116 = sphi 0, %s102
      %s120 = sphi 0, %s120
      %s122 = sphi 0, %s120
      %s123 = sphi 0, %s122
      %s137 = sphi 0, %s123
      %s141 = sphi 0, %s141
      %s143 = sphi 0, %s141
      %s144 = sphi 0, %s143
      %s158 = sphi 0, %s144
      %s162 = sphi 0, %s162
      %s164 = sphi 0, %s162
      %s165 = sphi 0, %s164
      %s179 = sphi 0, %s165
      %s183 = sphi 0, %s183
      %s185 = sphi 0, %s183
      %s186 = sphi 0, %s185
      %s200 = sphi 0, %s186
      %s204 = sphi 0, %s204
      %s206 = sphi 0, %s204
      %s207 = sphi 0, %s206
      %s221 = sphi 0, %s207
      %s227 = sphi 0, %s229
      %s230 = sphi 0, %s227
      %s231 = sphi 0, %s230
      %s247 = sphi 0, %s231
    $region4: #{_bottom_bridge_3d.1} parent=1 // loop_header_branch
      %21 = sbr.rel (%p19) target = $region8
    $region5: #{_bottom_bridge_3d.1} parent=1 // loop_body
      %s23 = ssub.s32 %s18, 1
      %s24 = ssub.s32 %s18, 2
      %s25 = sadd.s32 %s18, 1
      %s26 = ssub.s32 %s18, %s25
      %p27 = scmp.eq.s32.totalorder %s26, 0
      %s29 = sadd.s32 %s28, 1
      %s30 = scalar_select %p27, %s28, %s29
      %p33 = pneg %p27
      %p34 = scmp.eq.s32.totalorder %s18, 1
      %p35 = por %p33, %p34
      %p36 = scmp.ne.s32.totalorder %s28, %s31
      %p37 = scmp.eq.s32.totalorder %s18, 0
      %p38 = por %p36, %p37
      %p39 = scmp.ne.s32.totalorder %s28, %s31
      %p40 = scmp.eq.s32.totalorder %s23, 1
      %p41 = por %p39, %p40
      %p42 = scmp.ne.s32.totalorder %s31, %s32
      %p43 = scmp.eq.s32.totalorder %s23, 0
      %p44 = por %p42, %p43
      %p45 = scmp.ne.s32.totalorder %s31, %s32
      %p46 = scmp.eq.s32.totalorder %s24, 1
      %p47 = por %p45, %p46
      %p49 = scmp.ne.s32.totalorder %s32, %s48
      %p50 = scmp.eq.s32.totalorder %s24, 0
      %p51 = por %p49, %p50
      %s52 = ssub.s32 %s18, %s25
      %p53 = scmp.eq.s32.totalorder %s52, 0
      %s55 = sadd.s32 %s54, 1
      %s56 = scalar_select %p53, %s54, %s55
      %p59 = pneg %p53
      %p60 = scmp.eq.s32.totalorder %s18, 1
      %p61 = por %p59, %p60
      %p62 = scmp.ne.s32.totalorder %s54, %s57
      %p63 = scmp.eq.s32.totalorder %s18, 0
      %p64 = por %p62, %p63
      %p65 = scmp.ne.s32.totalorder %s54, %s57
      %p66 = scmp.eq.s32.totalorder %s23, 1
      %p67 = por %p65, %p66
      %p68 = scmp.ne.s32.totalorder %s57, %s58
      %p69 = scmp.eq.s32.totalorder %s23, 0
      %p70 = por %p68, %p69
      %p71 = scmp.ne.s32.totalorder %s57, %s58
      %p72 = scmp.eq.s32.totalorder %s24, 1
      %p73 = por %p71, %p72
      %p75 = scmp.ne.s32.totalorder %s58, %s74
      %p76 = scmp.eq.s32.totalorder %s24, 0
      %p77 = por %p75, %p76
      %s79 = sadd.s32 %s78, 1
      %p82 = scmp.eq.s32.totalorder %s18, 1
      %p83 = scmp.ne.s32.totalorder %s78, %s80
      %p84 = scmp.eq.s32.totalorder %s18, 0
      %p85 = por %p83, %p84
      %p86 = scmp.ne.s32.totalorder %s78, %s80
      %p87 = scmp.eq.s32.totalorder %s23, 1
      %p88 = por %p86, %p87
      %p89 = scmp.ne.s32.totalorder %s80, %s81
      %p90 = scmp.eq.s32.totalorder %s23, 0
      %p91 = por %p89, %p90
      %p92 = scmp.ne.s32.totalorder %s80, %s81
      %p93 = scmp.eq.s32.totalorder %s24, 1
      %p94 = por %p92, %p93
      %p96 = scmp.ne.s32.totalorder %s81, %s95
      %p97 = scmp.eq.s32.totalorder %s24, 0
      %p98 = por %p96, %p97
      %s100 = sadd.s32 %s99, 1
      %p103 = scmp.eq.s32.totalorder %s18, 1
      %p104 = scmp.ne.s32.totalorder %s99, %s101
      %p105 = scmp.eq.s32.totalorder %s18, 0
      %p106 = por %p104, %p105
      %p107 = scmp.ne.s32.totalorder %s99, %s101
      %p108 = scmp.eq.s32.totalorder %s23, 1
      %p109 = por %p107, %p108
      %p110 = scmp.ne.s32.totalorder %s101, %s102
      %p111 = scmp.eq.s32.totalorder %s23, 0
      %p112 = por %p110, %p111
      %p113 = scmp.ne.s32.totalorder %s101, %s102
      %p114 = scmp.eq.s32.totalorder %s24, 1
      %p115 = por %p113, %p114
      %p117 = scmp.ne.s32.totalorder %s102, %s116
      %p118 = scmp.eq.s32.totalorder %s24, 0
      %p119 = por %p117, %p118
      %s121 = sadd.s32 %s120, 1
      %p124 = scmp.eq.s32.totalorder %s18, 1
      %p125 = scmp.ne.s32.totalorder %s120, %s122
      %p126 = scmp.eq.s32.totalorder %s18, 0
      %p127 = por %p125, %p126
      %p128 = scmp.ne.s32.totalorder %s120, %s122
      %p129 = scmp.eq.s32.totalorder %s23, 1
      %p130 = por %p128, %p129
      %p131 = scmp.ne.s32.totalorder %s122, %s123
      %p132 = scmp.eq.s32.totalorder %s23, 0
      %p133 = por %p131, %p132
      %p134 = scmp.ne.s32.totalorder %s122, %s123
      %p135 = scmp.eq.s32.totalorder %s24, 1
      %p136 = por %p134, %p135
      %p138 = scmp.ne.s32.totalorder %s123, %s137
      %p139 = scmp.eq.s32.totalorder %s24, 0
      %p140 = por %p138, %p139
      %s142 = sadd.s32 %s141, 1
      %p145 = scmp.eq.s32.totalorder %s18, 1
      %p146 = scmp.ne.s32.totalorder %s141, %s143
      %p147 = scmp.eq.s32.totalorder %s18, 0
      %p148 = por %p146, %p147
      %p149 = scmp.ne.s32.totalorder %s141, %s143
      %p150 = scmp.eq.s32.totalorder %s23, 1
      %p151 = por %p149, %p150
      %p152 = scmp.ne.s32.totalorder %s143, %s144
      %p153 = scmp.eq.s32.totalorder %s23, 0
      %p154 = por %p152, %p153
      %p155 = scmp.ne.s32.totalorder %s143, %s144
      %p156 = scmp.eq.s32.totalorder %s24, 1
      %p157 = por %p155, %p156
      %p159 = scmp.ne.s32.totalorder %s144, %s158
      %p160 = scmp.eq.s32.totalorder %s24, 0
      %p161 = por %p159, %p160
      %s163 = sadd.s32 %s162, 1
      %p166 = scmp.eq.s32.totalorder %s18, 1
      %p167 = scmp.ne.s32.totalorder %s162, %s164
      %p168 = scmp.eq.s32.totalorder %s18, 0
      %p169 = por %p167, %p168
      %p170 = scmp.ne.s32.totalorder %s162, %s164
      %p171 = scmp.eq.s32.totalorder %s23, 1
      %p172 = por %p170, %p171
      %p173 = scmp.ne.s32.totalorder %s164, %s165
      %p174 = scmp.eq.s32.totalorder %s23, 0
      %p175 = por %p173, %p174
      %p176 = scmp.ne.s32.totalorder %s164, %s165
      %p177 = scmp.eq.s32.totalorder %s24, 1
      %p178 = por %p176, %p177
      %p180 = scmp.ne.s32.totalorder %s165, %s179
      %p181 = scmp.eq.s32.totalorder %s24, 0
      %p182 = por %p180, %p181
      %s184 = sadd.s32 %s183, 1
      %p187 = scmp.eq.s32.totalorder %s18, 1
      %p188 = scmp.ne.s32.totalorder %s183, %s185
      %p189 = scmp.eq.s32.totalorder %s18, 0
      %p190 = por %p188, %p189
      %p191 = scmp.ne.s32.totalorder %s183, %s185
      %p192 = scmp.eq.s32.totalorder %s23, 1
      %p193 = por %p191, %p192
      %p194 = scmp.ne.s32.totalorder %s185, %s186
      %p195 = scmp.eq.s32.totalorder %s23, 0
      %p196 = por %p194, %p195
      %p197 = scmp.ne.s32.totalorder %s185, %s186
      %p198 = scmp.eq.s32.totalorder %s24, 1
      %p199 = por %p197, %p198
      %p201 = scmp.ne.s32.totalorder %s186, %s200
      %p202 = scmp.eq.s32.totalorder %s24, 0
      %p203 = por %p201, %p202
      %s205 = sadd.s32 %s204, 1
      %p208 = scmp.eq.s32.totalorder %s18, 1
      %p209 = scmp.ne.s32.totalorder %s204, %s206
      %p210 = scmp.eq.s32.totalorder %s18, 0
      %p211 = por %p209, %p210
      %p212 = scmp.ne.s32.totalorder %s204, %s206
      %p213 = scmp.eq.s32.totalorder %s23, 1
      %p214 = por %p212, %p213
      %p215 = scmp.ne.s32.totalorder %s206, %s207
      %p216 = scmp.eq.s32.totalorder %s23, 0
      %p217 = por %p215, %p216
      %p218 = scmp.ne.s32.totalorder %s206, %s207
      %p219 = scmp.eq.s32.totalorder %s24, 1
      %p220 = por %p218, %p219
      %p222 = scmp.ne.s32.totalorder %s207, %s221
      %p223 = scmp.eq.s32.totalorder %s24, 0
      %p224 = por %p222, %p223
      %s225 = ssub.s32 %s18, %s25
      %p226 = scmp.eq.s32.totalorder %s225, 0
      %s228 = sadd.s32 %s227, 1
      %s229 = scalar_select %p226, %s227, %s228
      %p232 = pneg %p226
      %p233 = scmp.eq.s32.totalorder %s18, 1
      %p234 = por %p232, %p233
      %p235 = scmp.ne.s32.totalorder %s227, %s230
      %p236 = scmp.eq.s32.totalorder %s18, 0
      %p237 = por %p235, %p236
      %p238 = scmp.ne.s32.totalorder %s227, %s230
      %p239 = scmp.eq.s32.totalorder %s23, 1
      %p240 = por %p238, %p239
      %p241 = scmp.ne.s32.totalorder %s230, %s231
      %p242 = scmp.eq.s32.totalorder %s23, 0
      %p243 = por %p241, %p242
      %p244 = scmp.ne.s32.totalorder %s230, %s231
      %p245 = scmp.eq.s32.totalorder %s24, 1
      %p246 = por %p244, %p245
      %p248 = scmp.ne.s32.totalorder %s231, %s247
      %p249 = scmp.eq.s32.totalorder %s24, 0
      %p250 = por %p248, %p249
      %p251 = scmp.le.s32.totalorder 1, %s18
      %p252 = scmp.lt.s32.totalorder %s18, 3
      %p253 = pnand %p251, %p252
      %p254 = pneg %p253
      // Predicated region
      $region9: #{_bottom_bridge_3d.1} parent=5 // pred_check
        _
      $region10: #{_bottom_bridge_3d.1} parent=5 // pred_check_branch
        %256 = sbr.rel (%p253) target = $region12
      $region11: #{_bottom_bridge_3d.1} parent=5 // pred_region
        %s257 = ssub.s32 %s18, 1
        // Predicated region
        $region13: #{_bottom_bridge_3d.1} parent=11 // pred_check
          %p258 = pneg %p91
        $region14: #{_bottom_bridge_3d.1} parent=11 // pred_check_branch
          %260 = sbr.rel (%p258) target = $region16
        $region15: #{_bottom_bridge_3d.1} parent=11 // pred_region
          _
        $region16: #{_bottom_bridge_3d.1} parent=11 // pred_fallthru
          _
        // Predicated region
        $region17: #{_bottom_bridge_3d.1} parent=11 // pred_check
          %p261 = pneg %p112
        $region18: #{_bottom_bridge_3d.1} parent=11 // pred_check_branch
          %263 = sbr.rel (%p261) target = $region20
        $region19: #{_bottom_bridge_3d.1} parent=11 // pred_region
          _
        $region20: #{_bottom_bridge_3d.1} parent=11 // pred_fallthru
          _
        // Predicated region
        $region21: #{_bottom_bridge_3d.1} parent=11 // pred_check
          %p264 = pneg %p133
        $region22: #{_bottom_bridge_3d.1} parent=11 // pred_check_branch
          %266 = sbr.rel (%p264) target = $region24
        $region23: #{_bottom_bridge_3d.1} parent=11 // pred_region
          _
        $region24: #{_bottom_bridge_3d.1} parent=11 // pred_fallthru
          _
        // Predicated region
        $region25: #{_bottom_bridge_3d.1} parent=11 // pred_check
          %p267 = pneg %p154
        $region26: #{_bottom_bridge_3d.1} parent=11 // pred_check_branch
          %269 = sbr.rel (%p267) target = $region28
        $region27: #{_bottom_bridge_3d.1} parent=11 // pred_region
          _
        $region28: #{_bottom_bridge_3d.1} parent=11 // pred_fallthru
          _
        // Predicated region
        $region29: #{_bottom_bridge_3d.1} parent=11 // pred_check
          %p270 = pneg %p175
        $region30: #{_bottom_bridge_3d.1} parent=11 // pred_check_branch
          %272 = sbr.rel (%p270) target = $region32
        $region31: #{_bottom_bridge_3d.1} parent=11 // pred_region
          _
        $region32: #{_bottom_bridge_3d.1} parent=11 // pred_fallthru
          _
        // Predicated region
        $region33: #{_bottom_bridge_3d.1} parent=11 // pred_check
          %p273 = pneg %p196
        $region34: #{_bottom_bridge_3d.1} parent=11 // pred_check_branch
          %275 = sbr.rel (%p273) target = $region36
        $region35: #{_bottom_bridge_3d.1} parent=11 // pred_region
          _
        $region36: #{_bottom_bridge_3d.1} parent=11 // pred_fallthru
          _
        // Predicated region
        $region37: #{_bottom_bridge_3d.1} parent=11 // pred_check
          %p276 = pneg %p217
        $region38: #{_bottom_bridge_3d.1} parent=11 // pred_check_branch
          %278 = sbr.rel (%p276) target = $region40
        $region39: #{_bottom_bridge_3d.1} parent=11 // pred_region
          _
        $region40: #{_bottom_bridge_3d.1} parent=11 // pred_fallthru
          _
      $region12: #{_bottom_bridge_3d.1} parent=5 // pred_fallthru
        _
      %p279 = scmp.lt.s32.totalorder %s18, 2
      // Predicated region
      $region41: #{_bottom_bridge_3d.1} parent=5 // pred_check
        %p280 = pneg %p279
      $region42: #{_bottom_bridge_3d.1} parent=5 // pred_check_branch
        %282 = sbr.rel (%p280) target = $region44
      $region43: #{_bottom_bridge_3d.1} parent=5 // pred_region
        // Predicated region
        $region45: #{_bottom_bridge_3d.1} parent=43 // pred_check
          %p283 = pneg %p38
        $region46: #{_bottom_bridge_3d.1} parent=43 // pred_check_branch
          %285 = sbr.rel (%p283) target = $region48
        $region47: #{_bottom_bridge_3d.1} parent=43 // pred_region
          %p286 = scmp.lt.s32.totalorder %s18, 1
          %s287 = scalar_select %p286, %s18, 1
          %s288 = smul.addr %s287, 256
          %s289 = smul.addr %s288, 8
          %s290 = scalar_lea.vmem %s0, %s289
        $region48: #{_bottom_bridge_3d.1} parent=43 // pred_fallthru
          _
        // Predicated region
        $region49: #{_bottom_bridge_3d.1} parent=43 // pred_check
          %p291 = pneg %p64
        $region50: #{_bottom_bridge_3d.1} parent=43 // pred_check_branch
          %293 = sbr.rel (%p291) target = $region52
        $region51: #{_bottom_bridge_3d.1} parent=43 // pred_region
          %p294 = scmp.lt.s32.totalorder %s18, 1
          %s295 = scalar_select %p294, %s18, 1
          %s296 = scalar_lea.vmem %s1, %s295
        $region52: #{_bottom_bridge_3d.1} parent=43 // pred_fallthru
          _
      $region44: #{_bottom_bridge_3d.1} parent=5 // pred_fallthru
        _
      %p297 = scmp.le.s32.totalorder 1, %s18
      %p298 = scmp.lt.s32.totalorder %s18, 3
      %p299 = pnand %p297, %p298
      %p300 = pneg %p299
      // Predicated region
      $region53: #{_bottom_bridge_3d.1} parent=5 // pred_check
        _
      $region54: #{_bottom_bridge_3d.1} parent=5 // pred_check_branch
        %302 = sbr.rel (%p299) target = $region56
      $region55: #{_bottom_bridge_3d.1} parent=5 // pred_region
        %s303 = ssub.s32 %s18, 1
        %p304 = scmp.lt.s32.totalorder %s23, 1
        %s305 = scalar_select %p304, %s23, 1
        %s306 = smul.addr %s305, 256
        %s307 = smul.addr %s306, 8
        %s308 = scalar_lea.vmem %s0, %s307
        %p309 = pneg %p44
        %p310 = pneg %p41
        %p311 = scmp.lt.s32.totalorder %s23, 1
        %s312 = scalar_select %p311, %s23, 1
        %s313 = scalar_lea.vmem %s1, %s312
        %p314 = pneg %p70
        %p315 = pneg %p67
        %p316 = pneg %p91
        %p317 = pneg %p88
        %p318 = pneg %p112
        %p319 = pneg %p109
        %p320 = pneg %p133
        %p321 = pneg %p130
        %p322 = pneg %p154
        %p323 = pneg %p151
        %p324 = pneg %p175
        %p325 = pneg %p172
        %p326 = pneg %p196
        %p327 = pneg %p193
        %p328 = pneg %p217
        %p329 = pneg %p214
        %p330 = pneg %p243
        %p331 = pneg %p240
        %s332 = sand.u32 %s230, 1
        %s333 = scalar_lea.sflag [#allocation5], %s332
        %s334 = sand.u32 %s230, 1
        %s335 = smul.addr %s334, 2048
        %s336 = scalar_lea.vmem [#allocation4], %s335
        %p337 = scmp.lt.s32.totalorder %s23, 1
        %s338 = scalar_select %p337, %s23, 1
        %s339 = smul.addr %s338, 256
        %s340 = smul.addr %s339, 8
        %s341 = scalar_lea.vmem %s0, %s340
        %p342 = scmp.lt.s32.totalorder %s23, 1
        %s343 = scalar_select %p342, %s23, 1
        %s344 = scalar_lea.vmem %s1, %s343
        %vm346 = vcmask 523264
        %347 = vst.msk [vmem:[#allocation2] sm:$0xff] %vm346, 0.0
        %348 = vst.msk [vmem:[#allocation2 + $0x8] sm:$0xff] %vm346, 0.0
        %vm349 = vcmask 517120
        %350 = vst.msk [vmem:[#allocation2 + $0x10] sm:$0x3] %vm349, 0.0
        %s351 = scalar_lea.vmem [#allocation2], 408
        %352 = vst.msk [vmem:[%s351] sm:$0xff] %vm346, 0.0
        %353 = vst.msk [vmem:[%s351 + $0x8] sm:$0xff] %vm346, 0.0
        %354 = vst.msk [vmem:[%s351 + $0x10] sm:$0x3] %vm349, 0.0
        %355 = vst [vmem:[#allocation3] sm:$0xff] 0
        %356 = vst [vmem:[#allocation3 + $0x8] sm:$0xff] 0
        %357 = vst [vmem:[#allocation3 + $0x10] sm:$0xff] 0
        %358 = vst [vmem:[#allocation3 + $0x18] sm:$0xff] 0
        %359 = vst.msk [vmem:[#allocation3 + $0x20] sm:$0xff] %vm346, 0
        %360 = vst [vmem:[#allocation3 + $0x28] sm:$0xff] 0
        %361 = vst [vmem:[#allocation3 + $0x30] sm:$0xff] 0
        %362 = vst [vmem:[#allocation3 + $0x38] sm:$0xff] 0
        %363 = vst [vmem:[#allocation3 + $0x40] sm:$0xff] 0
        %364 = vst.msk [vmem:[#allocation3 + $0x48] sm:$0xff] %vm346, 0
        %365 = vst [vmem:[#allocation3 + $0x50] sm:$0xff] 0
        %366 = vst [vmem:[#allocation3 + $0x58] sm:$0xff] 0
        %367 = vst [vmem:[#allocation3 + $0x60] sm:$0xff] 0
        %368 = vst [vmem:[#allocation3 + $0x68] sm:$0xff] 0
        %369 = vst.msk [vmem:[#allocation3 + $0x70] sm:$0xff] %vm346, 0
        %370 = vst [vmem:[#allocation3 + $0x78] sm:$0xff] 0
        %371 = vst [vmem:[#allocation3 + $0x80] sm:$0xff] 0
        %372 = vst [vmem:[#allocation3 + $0x88] sm:$0xff] 0
        %373 = vst [vmem:[#allocation3 + $0x90] sm:$0xff] 0
        %374 = vst.msk [vmem:[#allocation3 + $0x98] sm:$0xff] %vm346, 0
        %375 = vst [vmem:[#allocation3 + $0xa0] sm:$0xff] 0
        %376 = vst [vmem:[#allocation3 + $0xa8] sm:$0xff] 0
        %377 = vst [vmem:[#allocation3 + $0xb0] sm:$0xff] 0
        %378 = vst [vmem:[#allocation3 + $0xb8] sm:$0xff] 0
        %379 = vst.msk [vmem:[#allocation3 + $0xc0] sm:$0xff] %vm346, 0
        %380 = vst [vmem:[#allocation3 + $0xc8] sm:$0xff] 0
        %381 = vst [vmem:[#allocation3 + $0xd0] sm:$0xff] 0
        %382 = vst [vmem:[#allocation3 + $0xd8] sm:$0xff] 0
        %383 = vst [vmem:[#allocation3 + $0xe0] sm:$0xff] 0
        %384 = vst.msk [vmem:[#allocation3 + $0xe8] sm:$0xff] %vm346, 0
        %385 = vst [vmem:[#allocation3 + $0xf0] sm:$0xff] 0
        %386 = vst [vmem:[#allocation3 + $0xf8] sm:$0xff] 0
        %387 = vst [vmem:[#allocation3 + $0x100] sm:$0xff] 0
        %388 = vst [vmem:[#allocation3 + $0x108] sm:$0xff] 0
        %389 = vst.msk [vmem:[#allocation3 + $0x110] sm:$0xff] %vm346, 0
        %390 = vst [vmem:[#allocation3 + $0x118] sm:$0xff] 0
        %391 = vst [vmem:[#allocation3 + $0x120] sm:$0xff] 0
        %392 = vst [vmem:[#allocation3 + $0x128] sm:$0xff] 0
        %393 = vst [vmem:[#allocation3 + $0x130] sm:$0xff] 0
        %394 = vst.msk [vmem:[#allocation3 + $0x138] sm:$0xff] %vm346, 0
        %395 = vst [vmem:[#allocation3 + $0x140] sm:$0xff] 0
        %396 = vst [vmem:[#allocation3 + $0x148] sm:$0xff] 0
        %397 = vst [vmem:[#allocation3 + $0x150] sm:$0xff] 0
        %398 = vst [vmem:[#allocation3 + $0x158] sm:$0xff] 0
        %399 = vst.msk [vmem:[#allocation3 + $0x160] sm:$0xff] %vm346, 0
        %400 = vst [vmem:[#allocation3 + $0x168] sm:$0xff] 0
        %401 = vst [vmem:[#allocation3 + $0x170] sm:$0xff] 0
        %402 = vst [vmem:[#allocation3 + $0x178] sm:$0xff] 0
        %403 = vst [vmem:[#allocation3 + $0x180] sm:$0xff] 0
        %404 = vst.msk [vmem:[#allocation3 + $0x188] sm:$0xff] %vm346, 0
        %405 = vst [vmem:[#allocation3 + $0x190] sm:$0xff] 0
        %406 = vst [vmem:[#allocation3 + $0x198] sm:$0xff] 0
        %407 = vst [vmem:[#allocation3 + $0x1a0] sm:$0xff] 0
        %408 = vst [vmem:[#allocation3 + $0x1a8] sm:$0xff] 0
        %409 = vst.msk [vmem:[#allocation3 + $0x1b0] sm:$0xff] %vm346, 0
        %410 = vst [vmem:[#allocation3 + $0x1b8] sm:$0xff] 0
        %411 = vst [vmem:[#allocation3 + $0x1c0] sm:$0xff] 0
        %412 = vst [vmem:[#allocation3 + $0x1c8] sm:$0xff] 0
        %413 = vst [vmem:[#allocation3 + $0x1d0] sm:$0xff] 0
        %414 = vst.msk [vmem:[#allocation3 + $0x1d8] sm:$0xff] %vm346, 0
        %415 = vst [vmem:[#allocation3 + $0x1e0] sm:$0xff] 0
        %416 = vst [vmem:[#allocation3 + $0x1e8] sm:$0xff] 0
        %417 = vst [vmem:[#allocation3 + $0x1f0] sm:$0xff] 0
        %418 = vst [vmem:[#allocation3 + $0x1f8] sm:$0xff] 0
        %419 = vst.msk [vmem:[#allocation3 + $0x200] sm:$0xff] %vm346, 0
        %420 = vst [vmem:[#allocation3 + $0x208] sm:$0xff] 0
        %421 = vst [vmem:[#allocation3 + $0x210] sm:$0xff] 0
        %422 = vst [vmem:[#allocation3 + $0x218] sm:$0xff] 0
        %423 = vst [vmem:[#allocation3 + $0x220] sm:$0xff] 0
        %424 = vst.msk [vmem:[#allocation3 + $0x228] sm:$0xff] %vm346, 0
        %425 = vst [vmem:[#allocation3 + $0x230] sm:$0xff] 0
        %426 = vst [vmem:[#allocation3 + $0x238] sm:$0xff] 0
        %427 = vst [vmem:[#allocation3 + $0x240] sm:$0xff] 0
        %428 = vst [vmem:[#allocation3 + $0x248] sm:$0xff] 0
        %429 = vst.msk [vmem:[#allocation3 + $0x250] sm:$0xff] %vm346, 0
        %430 = vst [vmem:[#allocation3 + $0x258] sm:$0xff] 0
        %431 = vst [vmem:[#allocation3 + $0x260] sm:$0xff] 0
        %432 = vst [vmem:[#allocation3 + $0x268] sm:$0xff] 0
        %433 = vst [vmem:[#allocation3 + $0x270] sm:$0xff] 0
        %434 = vst.msk [vmem:[#allocation3 + $0x278] sm:$0xff] %vm346, 0
        %s435 = scalar_lea.vmem [#allocation3], 5760
        %436 = vst [vmem:[%s435] sm:$0xff] 0
        %437 = vst [vmem:[%s435 + $0x8] sm:$0xff] 0
        %438 = vst [vmem:[%s435 + $0x10] sm:$0xff] 0
        %439 = vst [vmem:[%s435 + $0x18] sm:$0xff] 0
        %440 = vst.msk [vmem:[%s435 + $0x20] sm:$0xff] %vm346, 0
        %441 = vst [vmem:[%s435 + $0x28] sm:$0xff] 0
        %442 = vst [vmem:[%s435 + $0x30] sm:$0xff] 0
        %443 = vst [vmem:[%s435 + $0x38] sm:$0xff] 0
        %444 = vst [vmem:[%s435 + $0x40] sm:$0xff] 0
        %445 = vst.msk [vmem:[%s435 + $0x48] sm:$0xff] %vm346, 0
        %446 = vst [vmem:[%s435 + $0x50] sm:$0xff] 0
        %447 = vst [vmem:[%s435 + $0x58] sm:$0xff] 0
        %448 = vst [vmem:[%s435 + $0x60] sm:$0xff] 0
        %449 = vst [vmem:[%s435 + $0x68] sm:$0xff] 0
        %450 = vst.msk [vmem:[%s435 + $0x70] sm:$0xff] %vm346, 0
        %451 = vst [vmem:[%s435 + $0x78] sm:$0xff] 0
        %452 = vst [vmem:[%s435 + $0x80] sm:$0xff] 0
        %453 = vst [vmem:[%s435 + $0x88] sm:$0xff] 0
        %454 = vst [vmem:[%s435 + $0x90] sm:$0xff] 0
        %455 = vst.msk [vmem:[%s435 + $0x98] sm:$0xff] %vm346, 0
        %456 = vst [vmem:[%s435 + $0xa0] sm:$0xff] 0
        %457 = vst [vmem:[%s435 + $0xa8] sm:$0xff] 0
        %458 = vst [vmem:[%s435 + $0xb0] sm:$0xff] 0
        %459 = vst [vmem:[%s435 + $0xb8] sm:$0xff] 0
        %460 = vst.msk [vmem:[%s435 + $0xc0] sm:$0xff] %vm346, 0
        %461 = vst [vmem:[%s435 + $0xc8] sm:$0xff] 0
        %462 = vst [vmem:[%s435 + $0xd0] sm:$0xff] 0
        %463 = vst [vmem:[%s435 + $0xd8] sm:$0xff] 0
        %464 = vst [vmem:[%s435 + $0xe0] sm:$0xff] 0
        %465 = vst.msk [vmem:[%s435 + $0xe8] sm:$0xff] %vm346, 0
        %466 = vst [vmem:[%s435 + $0xf0] sm:$0xff] 0
        %467 = vst [vmem:[%s435 + $0xf8] sm:$0xff] 0
        %468 = vst [vmem:[%s435 + $0x100] sm:$0xff] 0
        %469 = vst [vmem:[%s435 + $0x108] sm:$0xff] 0
        %470 = vst.msk [vmem:[%s435 + $0x110] sm:$0xff] %vm346, 0
        %471 = vst [vmem:[%s435 + $0x118] sm:$0xff] 0
        %472 = vst [vmem:[%s435 + $0x120] sm:$0xff] 0
        %473 = vst [vmem:[%s435 + $0x128] sm:$0xff] 0
        %474 = vst [vmem:[%s435 + $0x130] sm:$0xff] 0
        %475 = vst.msk [vmem:[%s435 + $0x138] sm:$0xff] %vm346, 0
        %476 = vst [vmem:[%s435 + $0x140] sm:$0xff] 0
        %477 = vst [vmem:[%s435 + $0x148] sm:$0xff] 0
        %478 = vst [vmem:[%s435 + $0x150] sm:$0xff] 0
        %479 = vst [vmem:[%s435 + $0x158] sm:$0xff] 0
        %480 = vst.msk [vmem:[%s435 + $0x160] sm:$0xff] %vm346, 0
        %481 = vst [vmem:[%s435 + $0x168] sm:$0xff] 0
        %482 = vst [vmem:[%s435 + $0x170] sm:$0xff] 0
        %483 = vst [vmem:[%s435 + $0x178] sm:$0xff] 0
        %484 = vst [vmem:[%s435 + $0x180] sm:$0xff] 0
        %485 = vst.msk [vmem:[%s435 + $0x188] sm:$0xff] %vm346, 0
        %486 = vst [vmem:[%s435 + $0x190] sm:$0xff] 0
        %487 = vst [vmem:[%s435 + $0x198] sm:$0xff] 0
        %488 = vst [vmem:[%s435 + $0x1a0] sm:$0xff] 0
        %489 = vst [vmem:[%s435 + $0x1a8] sm:$0xff] 0
        %490 = vst.msk [vmem:[%s435 + $0x1b0] sm:$0xff] %vm346, 0
        %491 = vst [vmem:[%s435 + $0x1b8] sm:$0xff] 0
        %492 = vst [vmem:[%s435 + $0x1c0] sm:$0xff] 0
        %493 = vst [vmem:[%s435 + $0x1c8] sm:$0xff] 0
        %494 = vst [vmem:[%s435 + $0x1d0] sm:$0xff] 0
        %495 = vst.msk [vmem:[%s435 + $0x1d8] sm:$0xff] %vm346, 0
        %496 = vst [vmem:[%s435 + $0x1e0] sm:$0xff] 0
        %497 = vst [vmem:[%s435 + $0x1e8] sm:$0xff] 0
        %498 = vst [vmem:[%s435 + $0x1f0] sm:$0xff] 0
        %499 = vst [vmem:[%s435 + $0x1f8] sm:$0xff] 0
        %500 = vst.msk [vmem:[%s435 + $0x200] sm:$0xff] %vm346, 0
        %501 = vst [vmem:[%s435 + $0x208] sm:$0xff] 0
        %502 = vst [vmem:[%s435 + $0x210] sm:$0xff] 0
        %503 = vst [vmem:[%s435 + $0x218] sm:$0xff] 0
        %504 = vst [vmem:[%s435 + $0x220] sm:$0xff] 0
        %505 = vst.msk [vmem:[%s435 + $0x228] sm:$0xff] %vm346, 0
        %506 = vst [vmem:[%s435 + $0x230] sm:$0xff] 0
        %507 = vst [vmem:[%s435 + $0x238] sm:$0xff] 0
        %508 = vst [vmem:[%s435 + $0x240] sm:$0xff] 0
        %509 = vst [vmem:[%s435 + $0x248] sm:$0xff] 0
        %510 = vst.msk [vmem:[%s435 + $0x250] sm:$0xff] %vm346, 0
        %511 = vst [vmem:[%s435 + $0x258] sm:$0xff] 0
        %512 = vst [vmem:[%s435 + $0x260] sm:$0xff] 0
        %513 = vst [vmem:[%s435 + $0x268] sm:$0xff] 0
        %514 = vst [vmem:[%s435 + $0x270] sm:$0xff] 0
        %515 = vst.msk [vmem:[%s435 + $0x278] sm:$0xff] %vm346, 0
        %v516 = vld [vmem:[%s344] sm:$0x1]
        %v517 = vld [vmem:[%s3] sm:$0xff]
        %v518 = vld [vmem:[%s3 + $0x8] sm:$0xff]
        %v519 = vld [vmem:[%s3 + $0x10] sm:$0xff]
        %v520 = vld [vmem:[%s3 + $0x18] sm:$0xff]
        %v521 = vld [vmem:[%s4] sm:$0x1]
        %vm522 = vcmask 261120
        %v524 = vsel %vm522, %v516, 0
        %526 = vmatprep.subr.mxu0 0.0
        %527 = vmatpush1.msra.mxu0 %v517
        %528 = vmatprep.subr.mxu0 0.0
        %529 = vmatpush1.msra.mxu0 %v518
        %530 = vmatprep.subr.mxu0 0.0
        %531 = vmatpush1.msra.mxu0 %v519
        %532 = vmatprep.subr.mxu0 0.0
        %533 = vmatpush1.msra.mxu0 %v520
        %534 = vmatprep.subr.mxu0 0.0
        %535 = vmatpush1.msra.mxu0 0.0
        %536 = vmatprep.subr.mxu0 0.0
        %537 = vmatpush1.msra.mxu0 0.0
        %538 = vmatprep.subr.mxu0 0.0
        %539 = vmatpush1.msra.mxu0 0.0
        %540 = vmatprep.subr.mxu0 0.0
        %541 = vmatpush1.msra.mxu0 0.0
        %542 = vmatprep.subr.mxu0 0.0
        %543 = vmatpush1.msra.mxu0 0.0
        %544 = vmatprep.subr.mxu0 0.0
        %545 = vmatpush1.msra.mxu0 0.0
        %546 = vmatprep.subr.mxu0 0.0
        %547 = vmatpush1.msra.mxu0 0.0
        %548 = vmatprep.subr.mxu0 0.0
        %549 = vmatpush1.msra.mxu0 0.0
        %550 = vmatprep.subr.mxu0 0.0
        %551 = vmatpush1.msra.mxu0 0.0
        %552 = vmatprep.subr.mxu0 0.0
        %553 = vmatpush1.msra.mxu0 0.0
        %554 = vmatprep.subr.mxu0 0.0
        %555 = vmatpush1.msra.mxu0 0.0
        %556 = vmatprep.subr.mxu0 0.0
        %557 = vmatpush1.msra.mxu0 0.0
        %558 = vmatprep.subr.mxu0 0.0
        %559 = vmatpush1.msra.mxu0 0.0
        %560 = vmatprep.subr.mxu0 0.0
        %561 = vmatpush1.msra.mxu0 0.0
        %562 = vmatprep.subr.mxu0 0.0
        %563 = vmatpush1.msra.mxu0 0.0
        %564 = vmatprep.subr.mxu0 0.0
        %565 = vmatpush1.msra.mxu0 0.0
        %566 = vmatprep.subr.mxu0 0.0
        %567 = vmatpush1.msra.mxu0 0.0
        %568 = vmatprep.subr.mxu0 0.0
        %569 = vmatpush1.msra.mxu0 0.0
        %570 = vmatprep.subr.mxu0 0.0
        %571 = vmatpush1.msra.mxu0 0.0
        %572 = vmatprep.subr.mxu0 0.0
        %573 = vmatpush1.msra.mxu0 0.0
        %574 = vmatprep.subr.mxu0 0.0
        %575 = vmatpush1.msra.mxu0 0.0
        %576 = vmatprep.subr.mxu0 0.0
        %577 = vmatpush1.msra.mxu0 0.0
        %578 = vmatprep.subr.mxu0 0.0
        %579 = vmatpush1.msra.mxu0 0.0
        %580 = vmatprep.subr.mxu0 0.0
        %581 = vmatpush1.msra.mxu0 0.0
        %582 = vmatprep.subr.mxu0 0.0
        %583 = vmatpush1.msra.mxu0 0.0
        %584 = vmatprep.subr.mxu0 0.0
        %585 = vmatpush1.msra.mxu0 0.0
        %586 = vmatprep.subr.mxu0 0.0
        %587 = vmatpush1.msra.mxu0 0.0
        %588 = vmatprep.subr.mxu0 0.0
        %589 = vmatpush1.msra.mxu0 0.0
        %590 = vmatprep.mubr.f32.mxu0 0.0
        %591 = vmatmul.mubr.f32.gmra.mrb[0].mxu0 %v524
        %v592 = vpop.f32.mrb[0].mxu0
        %v593 = vadd.f32 %v521, %v592
        %v594 = vpop.f32.mrb[0].mxu0
        %595 = vdwg.mxu0
        %v596 = vlaneseq
        %v597 = vshrl.u32 %v596, 7
        %v598 = vsub.s32 0, %v597
        %v599 = vrot.slane %v593, %v598
        loop: start=0, step=1, limit=8
        $region57: #{_bottom_bridge_3d.1} parent=55 // loop_pre_header
          _
        $region58: #{_bottom_bridge_3d.1} parent=55 // loop_header
          %s601 = sphi 0, %s605
          %p602 = scmp.ge.s32.totalorder %s601, 8
        $region59: #{_bottom_bridge_3d.1} parent=55 // loop_header_branch
          %604 = sbr.rel (%p602) target = $region63
        $region60: #{_bottom_bridge_3d.1} parent=55 // loop_body
          %s606 = smul.u32 %s601, 256
          %s607 = scalar_lea.vmem %s341, %s606
          %v608 = vld [vmem:[%s607] sm:$0xff]
          %v609 = vld [vmem:[%s607 + $0x8] sm:$0xff]
          %v610 = vld [vmem:[%s607 + $0x10] sm:$0xff]
          %v611 = vld [vmem:[%s607 + $0x18] sm:$0xff]
          %v612 = vld [vmem:[%s607 + $0x20] sm:$0xff]
          %v613 = vld [vmem:[%s607 + $0x28] sm:$0xff]
          %v614 = vld [vmem:[%s607 + $0x30] sm:$0xff]
          %v615 = vld [vmem:[%s607 + $0x38] sm:$0xff]
          %v616 = vld [vmem:[%s607 + $0x40] sm:$0xff]
          %v617 = vld [vmem:[%s607 + $0x48] sm:$0xff]
          %v618 = vld [vmem:[%s607 + $0x50] sm:$0xff]
          %v619 = vld [vmem:[%s607 + $0x58] sm:$0xff]
          %v620 = vld [vmem:[%s607 + $0x60] sm:$0xff]
          %v621 = vld [vmem:[%s607 + $0x68] sm:$0xff]
          %v622 = vld [vmem:[%s607 + $0x70] sm:$0xff]
          %v623 = vld [vmem:[%s607 + $0x78] sm:$0xff]
          %v624 = vld [vmem:[%s607 + $0x80] sm:$0xff]
          %v625 = vld [vmem:[%s607 + $0x88] sm:$0xff]
          %v626 = vld [vmem:[%s607 + $0x90] sm:$0xff]
          %v627 = vld [vmem:[%s607 + $0x98] sm:$0xff]
          %v628 = vld [vmem:[%s607 + $0xa0] sm:$0xff]
          %v629 = vld [vmem:[%s607 + $0xa8] sm:$0xff]
          %v630 = vld [vmem:[%s607 + $0xb0] sm:$0xff]
          %v631 = vld [vmem:[%s607 + $0xb8] sm:$0xff]
          %v632 = vld [vmem:[%s607 + $0xc0] sm:$0xff]
          %v633 = vld [vmem:[%s607 + $0xc8] sm:$0xff]
          %v634 = vld [vmem:[%s607 + $0xd0] sm:$0xff]
          %v635 = vld [vmem:[%s607 + $0xd8] sm:$0xff]
          %v636 = vld [vmem:[%s607 + $0xe0] sm:$0xff]
          %v637 = vld [vmem:[%s607 + $0xe8] sm:$0xff]
          %v638 = vld [vmem:[%s607 + $0xf0] sm:$0xff]
          %v639 = vld [vmem:[%s607 + $0xf8] sm:$0xff]
          %v640 = vpack.c.bf16 %v609, %v608
          %v641 = vpack.c.bf16 %v611, %v610
          %v642 = vpack.c.bf16 %v613, %v612
          %v643 = vpack.c.bf16 %v615, %v614
          %v644 = vpack.c.bf16 %v617, %v616
          %v645 = vpack.c.bf16 %v619, %v618
          %v646 = vpack.c.bf16 %v621, %v620
          %v647 = vpack.c.bf16 %v623, %v622
          %v648 = vpack.c.bf16 %v625, %v624
          %v649 = vpack.c.bf16 %v627, %v626
          %v650 = vpack.c.bf16 %v629, %v628
          %v651 = vpack.c.bf16 %v631, %v630
          %v652 = vpack.c.bf16 %v633, %v632
          %v653 = vpack.c.bf16 %v635, %v634
          %v654 = vpack.c.bf16 %v637, %v636
          %v655 = vpack.c.bf16 %v639, %v638
          %v656 = vld [vmem:[%s2] sm:$0xf]
          %v657 = vld [vmem:[%s2 + $0x4] sm:$0xf]
          %v658 = vld [vmem:[%s2 + $0x8] sm:$0xf]
          %v659 = vld [vmem:[%s2 + $0xc] sm:$0xf]
          %v664 = vunpack.c.l.b16 %v656
          %v665 = vunpack.c.l.b16 %v657
          %v666 = vunpack.c.l.b16 %v658
          %v667 = vunpack.c.l.b16 %v659
          %v668 = vpack.c.b16 %v665, %v664
          %v669 = vpack.c.b16 %v667, %v666
          %v673 = vsel %vm522, %v640, 0
          %v676 = vsel %vm522, %v641, 0
          %v679 = vsel %vm522, %v642, 0
          %v682 = vsel %vm522, %v643, 0
          %v685 = vsel %vm522, %v644, 0
          %v688 = vsel %vm522, %v645, 0
          %v691 = vsel %vm522, %v646, 0
          %v694 = vsel %vm522, %v647, 0
          %v697 = vsel %vm522, %v648, 0
          %v700 = vsel %vm522, %v649, 0
          %v703 = vsel %vm522, %v650, 0
          %v706 = vsel %vm522, %v651, 0
          %v709 = vsel %vm522, %v652, 0
          %v712 = vsel %vm522, %v653, 0
          %v715 = vsel %vm522, %v654, 0
          %v718 = vsel %vm522, %v655, 0
          %720 = vmatprep.subr.bf16.mxu0 0
          %721 = vmatpush1.bf16.msra.mxu0 %v668
          %722 = vmatprep.subr.bf16.mxu0 0
          %723 = vmatpush1.bf16.msra.mxu0 %v669
          %724 = vmatprep.subr.bf16.mxu0 0
          %725 = vmatpush1.bf16.msra.mxu0 0
          %726 = vmatprep.subr.bf16.mxu0 0
          %727 = vmatpush1.bf16.msra.mxu0 0
          %728 = vmatprep.subr.bf16.mxu0 0
          %729 = vmatpush1.bf16.msra.mxu0 0
          %730 = vmatprep.subr.bf16.mxu0 0
          %731 = vmatpush1.bf16.msra.mxu0 0
          %732 = vmatprep.subr.bf16.mxu0 0
          %733 = vmatpush1.bf16.msra.mxu0 0
          %734 = vmatprep.subr.bf16.mxu0 0
          %735 = vmatpush1.bf16.msra.mxu0 0
          %736 = vmatprep.subr.bf16.mxu0 0
          %737 = vmatpush1.bf16.msra.mxu0 0
          %738 = vmatprep.subr.bf16.mxu0 0
          %739 = vmatpush1.bf16.msra.mxu0 0
          %740 = vmatprep.subr.bf16.mxu0 0
          %741 = vmatpush1.bf16.msra.mxu0 0
          %742 = vmatprep.subr.bf16.mxu0 0
          %743 = vmatpush1.bf16.msra.mxu0 0
          %744 = vmatprep.subr.bf16.mxu0 0
          %745 = vmatpush1.bf16.msra.mxu0 0
          %746 = vmatprep.subr.bf16.mxu0 0
          %747 = vmatpush1.bf16.msra.mxu0 0
          %748 = vmatprep.subr.bf16.mxu0 0
          %749 = vmatpush1.bf16.msra.mxu0 0
          %750 = vmatprep.subr.bf16.mxu0 0
          %751 = vmatpush1.bf16.msra.mxu0 0
          %752 = vmatprep.mubr.bf16.mxu0 0
          %753 = vmatmul.mubr.bf16.gmra.mrb[0].mxu0 %v673
          %v754 = vpop.f32.mrb[0].mxu0
          %v755 = vadd.f32 %v599, %v754
          %v756 = vpop.f32.mrb[0].mxu0
          %v757 = vpop.f32.mrb[0].mxu0
          %v758 = vadd.f32 %v599, %v757
          %v759 = vpop.f32.mrb[0].mxu0
          %760 = vmatprep.mubr.bf16.mxu0 0
          %761 = vmatmul.mubr.bf16.gmra.mrb[0].mxu0 %v676
          %v762 = vpop.f32.mrb[0].mxu0
          %v763 = vadd.f32 %v599, %v762
          %v764 = vpop.f32.mrb[0].mxu0
          %v765 = vpop.f32.mrb[0].mxu0
          %v766 = vadd.f32 %v599, %v765
          %v767 = vpop.f32.mrb[0].mxu0
          %768 = vmatprep.mubr.bf16.mxu0 0
          %769 = vmatmul.mubr.bf16.gmra.mrb[0].mxu0 %v679
          %v770 = vpop.f32.mrb[0].mxu0
          %v771 = vadd.f32 %v599, %v770
          %v772 = vpop.f32.mrb[0].mxu0
          %v773 = vpop.f32.mrb[0].mxu0
          %v774 = vadd.f32 %v599, %v773
          %v775 = vpop.f32.mrb[0].mxu0
          %776 = vmatprep.mubr.bf16.mxu0 0
          %777 = vmatmul.mubr.bf16.gmra.mrb[0].mxu0 %v682
          %v778 = vpop.f32.mrb[0].mxu0
          %v779 = vadd.f32 %v599, %v778
          %v780 = vpop.f32.mrb[0].mxu0
          %v781 = vpop.f32.mrb[0].mxu0
          %v782 = vadd.f32 %v599, %v781
          %v783 = vpop.f32.mrb[0].mxu0
          %784 = vmatprep.mubr.bf16.mxu0 0
          %785 = vmatmul.mubr.bf16.gmra.mrb[0].mxu0 %v685
          %v786 = vpop.f32.mrb[0].mxu0
          %v787 = vadd.f32 %v599, %v786
          %v788 = vpop.f32.mrb[0].mxu0
          %v789 = vpop.f32.mrb[0].mxu0
          %v790 = vadd.f32 %v599, %v789
          %v791 = vpop.f32.mrb[0].mxu0
          %792 = vmatprep.mubr.bf16.mxu0 0
          %793 = vmatmul.mubr.bf16.gmra.mrb[0].mxu0 %v688
          %v794 = vpop.f32.mrb[0].mxu0
          %v795 = vadd.f32 %v599, %v794
          %v796 = vpop.f32.mrb[0].mxu0
          %v797 = vpop.f32.mrb[0].mxu0
          %v798 = vadd.f32 %v599, %v797
          %v799 = vpop.f32.mrb[0].mxu0
          %800 = vmatprep.mubr.bf16.mxu0 0
          %801 = vmatmul.mubr.bf16.gmra.mrb[0].mxu0 %v691
          %v802 = vpop.f32.mrb[0].mxu0
          %v803 = vadd.f32 %v599, %v802
          %v804 = vpop.f32.mrb[0].mxu0
          %v805 = vpop.f32.mrb[0].mxu0
          %v806 = vadd.f32 %v599, %v805
          %v807 = vpop.f32.mrb[0].mxu0
          %808 = vmatprep.mubr.bf16.mxu0 0
          %809 = vmatmul.mubr.bf16.gmra.mrb[0].mxu0 %v694
          %v810 = vpop.f32.mrb[0].mxu0
          %v811 = vadd.f32 %v599, %v810
          %v812 = vpop.f32.mrb[0].mxu0
          %v813 = vpop.f32.mrb[0].mxu0
          %v814 = vadd.f32 %v599, %v813
          %v815 = vpop.f32.mrb[0].mxu0
          %816 = vmatprep.mubr.bf16.mxu0 0
          %817 = vmatmul.mubr.bf16.gmra.mrb[0].mxu0 %v697
          %v818 = vpop.f32.mrb[0].mxu0
          %v819 = vadd.f32 %v599, %v818
          %v820 = vpop.f32.mrb[0].mxu0
          %v821 = vpop.f32.mrb[0].mxu0
          %v822 = vadd.f32 %v599, %v821
          %v823 = vpop.f32.mrb[0].mxu0
          %824 = vmatprep.mubr.bf16.mxu0 0
          %825 = vmatmul.mubr.bf16.gmra.mrb[0].mxu0 %v700
          %v826 = vpop.f32.mrb[0].mxu0
          %v827 = vadd.f32 %v599, %v826
          %v828 = vpop.f32.mrb[0].mxu0
          %v829 = vpop.f32.mrb[0].mxu0
          %v830 = vadd.f32 %v599, %v829
          %v831 = vpop.f32.mrb[0].mxu0
          %832 = vmatprep.mubr.bf16.mxu0 0
          %833 = vmatmul.mubr.bf16.gmra.mrb[0].mxu0 %v703
          %v834 = vpop.f32.mrb[0].mxu0
          %v835 = vadd.f32 %v599, %v834
          %v836 = vpop.f32.mrb[0].mxu0
          %v837 = vpop.f32.mrb[0].mxu0
          %v838 = vadd.f32 %v599, %v837
          %v839 = vpop.f32.mrb[0].mxu0
          %840 = vmatprep.mubr.bf16.mxu0 0
          %841 = vmatmul.mubr.bf16.gmra.mrb[0].mxu0 %v706
          %v842 = vpop.f32.mrb[0].mxu0
          %v843 = vadd.f32 %v599, %v842
          %v844 = vpop.f32.mrb[0].mxu0
          %v845 = vpop.f32.mrb[0].mxu0
          %v846 = vadd.f32 %v599, %v845
          %v847 = vpop.f32.mrb[0].mxu0
          %848 = vmatprep.mubr.bf16.mxu0 0
          %849 = vmatmul.mubr.bf16.gmra.mrb[0].mxu0 %v709
          %v850 = vpop.f32.mrb[0].mxu0
          %v851 = vadd.f32 %v599, %v850
          %v852 = vpop.f32.mrb[0].mxu0
          %v853 = vpop.f32.mrb[0].mxu0
          %v854 = vadd.f32 %v599, %v853
          %v855 = vpop.f32.mrb[0].mxu0
          %856 = vmatprep.mubr.bf16.mxu0 0
          %857 = vmatmul.mubr.bf16.gmra.mrb[0].mxu0 %v712
          %v858 = vpop.f32.mrb[0].mxu0
          %v859 = vadd.f32 %v599, %v858
          %v860 = vpop.f32.mrb[0].mxu0
          %v861 = vpop.f32.mrb[0].mxu0
          %v862 = vadd.f32 %v599, %v861
          %v863 = vpop.f32.mrb[0].mxu0
          %864 = vmatprep.mubr.bf16.mxu0 0
          %865 = vmatmul.mubr.bf16.gmra.mrb[0].mxu0 %v715
          %v866 = vpop.f32.mrb[0].mxu0
          %v867 = vadd.f32 %v599, %v866
          %v868 = vpop.f32.mrb[0].mxu0
          %v869 = vpop.f32.mrb[0].mxu0
          %v870 = vadd.f32 %v599, %v869
          %v871 = vpop.f32.mrb[0].mxu0
          %872 = vmatprep.mubr.bf16.mxu0 0
          %873 = vmatmul.mubr.bf16.gmra.mrb[0].mxu0 %v718
          %v874 = vpop.f32.mrb[0].mxu0
          %v875 = vadd.f32 %v599, %v874
          %v876 = vpop.f32.mrb[0].mxu0
          %v877 = vpop.f32.mrb[0].mxu0
          %v878 = vadd.f32 %v599, %v877
          %v879 = vpop.f32.mrb[0].mxu0
          %880 = vdwg.mxu0
          %v881 = vmax.f32 %v755, 0.0
          %v882 = vmax.f32 %v758, 0.0
          %v883 = vmax.f32 %v763, 0.0
          %v884 = vmax.f32 %v766, 0.0
          %v885 = vmax.f32 %v771, 0.0
          %v886 = vmax.f32 %v774, 0.0
          %v887 = vmax.f32 %v779, 0.0
          %v888 = vmax.f32 %v782, 0.0
          %v889 = vmax.f32 %v787, 0.0
          %v890 = vmax.f32 %v790, 0.0
          %v891 = vmax.f32 %v795, 0.0
          %v892 = vmax.f32 %v798, 0.0
          %v893 = vmax.f32 %v803, 0.0
          %v894 = vmax.f32 %v806, 0.0
          %v895 = vmax.f32 %v811, 0.0
          %v896 = vmax.f32 %v814, 0.0
          %v897 = vmax.f32 %v819, 0.0
          %v898 = vmax.f32 %v822, 0.0
          %v899 = vmax.f32 %v827, 0.0
          %v900 = vmax.f32 %v830, 0.0
          %v901 = vmax.f32 %v835, 0.0
          %v902 = vmax.f32 %v838, 0.0
          %v903 = vmax.f32 %v843, 0.0
          %v904 = vmax.f32 %v846, 0.0
          %v905 = vmax.f32 %v851, 0.0
          %v906 = vmax.f32 %v854, 0.0
          %v907 = vmax.f32 %v859, 0.0
          %v908 = vmax.f32 %v862, 0.0
          %v909 = vmax.f32 %v867, 0.0
          %v910 = vmax.f32 %v870, 0.0
          %v911 = vmax.f32 %v875, 0.0
          %v912 = vmax.f32 %v878, 0.0
          %v913 = vpack.c.bf16 %v882, %v881
          %v914 = vpack.c.bf16 %v884, %v883
          %v915 = vpack.c.bf16 %v886, %v885
          %v916 = vpack.c.bf16 %v888, %v887
          %v917 = vpack.c.bf16 %v890, %v889
          %v918 = vpack.c.bf16 %v892, %v891
          %v919 = vpack.c.bf16 %v894, %v893
          %v920 = vpack.c.bf16 %v896, %v895
          %v921 = vpack.c.bf16 %v898, %v897
          %v922 = vpack.c.bf16 %v900, %v899
          %v923 = vpack.c.bf16 %v902, %v901
          %v924 = vpack.c.bf16 %v904, %v903
          %v925 = vpack.c.bf16 %v906, %v905
          %v926 = vpack.c.bf16 %v908, %v907
          %v927 = vpack.c.bf16 %v910, %v909
          %v928 = vpack.c.bf16 %v912, %v911
          %v929 = vld [vmem:[%s5] sm:$0xf]
          %v930 = vld [vmem:[%s5 + $0x4] sm:$0xf]
          %v931 = vld [vmem:[%s5 + $0x8] sm:$0xf]
          %v932 = vld [vmem:[%s5 + $0xc] sm:$0xf]
          %v933 = vld [vmem:[%s5 + $0x10] sm:$0xf]
          %v934 = vld [vmem:[%s5 + $0x14] sm:$0xf]
          %v935 = vld [vmem:[%s5 + $0x18] sm:$0xf]
          %v936 = vld [vmem:[%s5 + $0x1c] sm:$0xf]
          %s937 = scalar_lea.vmem %s6, %s606
          %v938 = vld [vmem:[%s937] sm:$0xff]
          %v939 = vld [vmem:[%s937 + $0x8] sm:$0xff]
          %v940 = vld [vmem:[%s937 + $0x10] sm:$0xff]
          %v941 = vld [vmem:[%s937 + $0x18] sm:$0xff]
          %v942 = vld [vmem:[%s937 + $0x20] sm:$0xff]
          %v943 = vld [vmem:[%s937 + $0x28] sm:$0xff]
          %v944 = vld [vmem:[%s937 + $0x30] sm:$0xff]
          %v945 = vld [vmem:[%s937 + $0x38] sm:$0xff]
          %v946 = vld [vmem:[%s937 + $0x40] sm:$0xff]
          %v947 = vld [vmem:[%s937 + $0x48] sm:$0xff]
          %v948 = vld [vmem:[%s937 + $0x50] sm:$0xff]
          %v949 = vld [vmem:[%s937 + $0x58] sm:$0xff]
          %v950 = vld [vmem:[%s937 + $0x60] sm:$0xff]
          %v951 = vld [vmem:[%s937 + $0x68] sm:$0xff]
          %v952 = vld [vmem:[%s937 + $0x70] sm:$0xff]
          %v953 = vld [vmem:[%s937 + $0x78] sm:$0xff]
          %v954 = vld [vmem:[%s937 + $0x80] sm:$0xff]
          %v955 = vld [vmem:[%s937 + $0x88] sm:$0xff]
          %v956 = vld [vmem:[%s937 + $0x90] sm:$0xff]
          %v957 = vld [vmem:[%s937 + $0x98] sm:$0xff]
          %v958 = vld [vmem:[%s937 + $0xa0] sm:$0xff]
          %v959 = vld [vmem:[%s937 + $0xa8] sm:$0xff]
          %v960 = vld [vmem:[%s937 + $0xb0] sm:$0xff]
          %v961 = vld [vmem:[%s937 + $0xb8] sm:$0xff]
          %v962 = vld [vmem:[%s937 + $0xc0] sm:$0xff]
          %v963 = vld [vmem:[%s937 + $0xc8] sm:$0xff]
          %v964 = vld [vmem:[%s937 + $0xd0] sm:$0xff]
          %v965 = vld [vmem:[%s937 + $0xd8] sm:$0xff]
          %v966 = vld [vmem:[%s937 + $0xe0] sm:$0xff]
          %v967 = vld [vmem:[%s937 + $0xe8] sm:$0xff]
          %v968 = vld [vmem:[%s937 + $0xf0] sm:$0xff]
          %v969 = vld [vmem:[%s937 + $0xf8] sm:$0xff]
          %v978 = vunpack.c.l.b16 %v929
          %v979 = vunpack.c.l.b16 %v930
          %v980 = vunpack.c.l.b16 %v931
          %v981 = vunpack.c.l.b16 %v932
          %v982 = vunpack.c.l.b16 %v933
          %v983 = vunpack.c.l.b16 %v934
          %v984 = vunpack.c.l.b16 %v935
          %v985 = vunpack.c.l.b16 %v936
          %v986 = vpack.c.b16 %v979, %v978
          %v987 = vpack.c.b16 %v981, %v980
          %v988 = vpack.c.b16 %v983, %v982
          %v989 = vpack.c.b16 %v985, %v984
          %v995 = vsel %vm346, %v913, 0
          %v998 = vsel %vm346, %v914, 0
          %v1001 = vsel %vm346, %v915, 0
          %v1004 = vsel %vm346, %v916, 0
          %v1007 = vsel %vm346, %v917, 0
          %v1010 = vsel %vm346, %v918, 0
          %v1013 = vsel %vm346, %v919, 0
          %v1016 = vsel %vm346, %v920, 0
          %v1019 = vsel %vm346, %v921, 0
          %v1022 = vsel %vm346, %v922, 0
          %v1025 = vsel %vm346, %v923, 0
          %v1028 = vsel %vm346, %v924, 0
          %v1031 = vsel %vm346, %v925, 0
          %v1034 = vsel %vm346, %v926, 0
          %v1037 = vsel %vm346, %v927, 0
          %v1040 = vsel %vm346, %v928, 0
          %1042 = vmatprep.subr.bf16.mxu0 0
          %1043 = vmatpush1.bf16.msra.mxu0 %v986
          %1044 = vmatprep.subr.bf16.mxu0 0
          %1045 = vmatpush1.bf16.msra.mxu0 %v987
          %1046 = vmatprep.subr.bf16.mxu0 0
          %1047 = vmatpush1.bf16.msra.mxu0 %v988
          %1048 = vmatprep.subr.bf16.mxu0 0
          %1049 = vmatpush1.bf16.msra.mxu0 %v989
          %1050 = vmatprep.subr.bf16.mxu0 0
          %1051 = vmatpush1.bf16.msra.mxu0 0
          %1052 = vmatprep.subr.bf16.mxu0 0
          %1053 = vmatpush1.bf16.msra.mxu0 0
          %1054 = vmatprep.subr.bf16.mxu0 0
          %1055 = vmatpush1.bf16.msra.mxu0 0
          %1056 = vmatprep.subr.bf16.mxu0 0
          %1057 = vmatpush1.bf16.msra.mxu0 0
          %1058 = vmatprep.subr.bf16.mxu0 0
          %1059 = vmatpush1.bf16.msra.mxu0 0
          %1060 = vmatprep.subr.bf16.mxu0 0
          %1061 = vmatpush1.bf16.msra.mxu0 0
          %1062 = vmatprep.subr.bf16.mxu0 0
          %1063 = vmatpush1.bf16.msra.mxu0 0
          %1064 = vmatprep.subr.bf16.mxu0 0
          %1065 = vmatpush1.bf16.msra.mxu0 0
          %1066 = vmatprep.subr.bf16.mxu0 0
          %1067 = vmatpush1.bf16.msra.mxu0 0
          %1068 = vmatprep.subr.bf16.mxu0 0
          %1069 = vmatpush1.bf16.msra.mxu0 0
          %1070 = vmatprep.subr.bf16.mxu0 0
          %1071 = vmatpush1.bf16.msra.mxu0 0
          %1072 = vmatprep.subr.bf16.mxu0 0
          %1073 = vmatpush1.bf16.msra.mxu0 0
          %1074 = vmatprep.mubr.bf16.mxu0 0
          %1075 = vmatmul.mubr.bf16.gmra.mrb[0].mxu0 %v995
          %v1076 = vpop.f32.mrb[0].mxu0
          %v1077 = vadd.f32 %v938, %v1076
          %v1078 = vpop.f32.mrb[0].mxu0
          %v1079 = vpop.f32.mrb[0].mxu0
          %v1080 = vadd.f32 %v939, %v1079
          %v1081 = vpop.f32.mrb[0].mxu0
          %1082 = vmatprep.mubr.bf16.mxu0 0
          %1083 = vmatmul.mubr.bf16.gmra.mrb[0].mxu0 %v998
          %v1084 = vpop.f32.mrb[0].mxu0
          %v1085 = vadd.f32 %v940, %v1084
          %v1086 = vpop.f32.mrb[0].mxu0
          %v1087 = vpop.f32.mrb[0].mxu0
          %v1088 = vadd.f32 %v941, %v1087
          %v1089 = vpop.f32.mrb[0].mxu0
          %1090 = vmatprep.mubr.bf16.mxu0 0
          %1091 = vmatmul.mubr.bf16.gmra.mrb[0].mxu0 %v1001
          %v1092 = vpop.f32.mrb[0].mxu0
          %v1093 = vadd.f32 %v942, %v1092
          %v1094 = vpop.f32.mrb[0].mxu0
          %v1095 = vpop.f32.mrb[0].mxu0
          %v1096 = vadd.f32 %v943, %v1095
          %v1097 = vpop.f32.mrb[0].mxu0
          %1098 = vmatprep.mubr.bf16.mxu0 0
          %1099 = vmatmul.mubr.bf16.gmra.mrb[0].mxu0 %v1004
          %v1100 = vpop.f32.mrb[0].mxu0
          %v1101 = vadd.f32 %v944, %v1100
          %v1102 = vpop.f32.mrb[0].mxu0
          %v1103 = vpop.f32.mrb[0].mxu0
          %v1104 = vadd.f32 %v945, %v1103
          %v1105 = vpop.f32.mrb[0].mxu0
          %1106 = vmatprep.mubr.bf16.mxu0 0
          %1107 = vmatmul.mubr.bf16.gmra.mrb[0].mxu0 %v1007
          %v1108 = vpop.f32.mrb[0].mxu0
          %v1109 = vadd.f32 %v946, %v1108
          %v1110 = vpop.f32.mrb[0].mxu0
          %v1111 = vpop.f32.mrb[0].mxu0
          %v1112 = vadd.f32 %v947, %v1111
          %v1113 = vpop.f32.mrb[0].mxu0
          %1114 = vmatprep.mubr.bf16.mxu0 0
          %1115 = vmatmul.mubr.bf16.gmra.mrb[0].mxu0 %v1010
          %v1116 = vpop.f32.mrb[0].mxu0
          %v1117 = vadd.f32 %v948, %v1116
          %v1118 = vpop.f32.mrb[0].mxu0
          %v1119 = vpop.f32.mrb[0].mxu0
          %v1120 = vadd.f32 %v949, %v1119
          %v1121 = vpop.f32.mrb[0].mxu0
          %1122 = vmatprep.mubr.bf16.mxu0 0
          %1123 = vmatmul.mubr.bf16.gmra.mrb[0].mxu0 %v1013
          %v1124 = vpop.f32.mrb[0].mxu0
          %v1125 = vadd.f32 %v950, %v1124
          %v1126 = vpop.f32.mrb[0].mxu0
          %v1127 = vpop.f32.mrb[0].mxu0
          %v1128 = vadd.f32 %v951, %v1127
          %v1129 = vpop.f32.mrb[0].mxu0
          %1130 = vmatprep.mubr.bf16.mxu0 0
          %1131 = vmatmul.mubr.bf16.gmra.mrb[0].mxu0 %v1016
          %v1132 = vpop.f32.mrb[0].mxu0
          %v1133 = vadd.f32 %v952, %v1132
          %v1134 = vpop.f32.mrb[0].mxu0
          %v1135 = vpop.f32.mrb[0].mxu0
          %v1136 = vadd.f32 %v953, %v1135
          %v1137 = vpop.f32.mrb[0].mxu0
          %1138 = vmatprep.mubr.bf16.mxu0 0
          %1139 = vmatmul.mubr.bf16.gmra.mrb[0].mxu0 %v1019
          %v1140 = vpop.f32.mrb[0].mxu0
          %v1141 = vadd.f32 %v954, %v1140
          %v1142 = vpop.f32.mrb[0].mxu0
          %v1143 = vpop.f32.mrb[0].mxu0
          %v1144 = vadd.f32 %v955, %v1143
          %v1145 = vpop.f32.mrb[0].mxu0
          %1146 = vmatprep.mubr.bf16.mxu0 0
          %1147 = vmatmul.mubr.bf16.gmra.mrb[0].mxu0 %v1022
          %v1148 = vpop.f32.mrb[0].mxu0
          %v1149 = vadd.f32 %v956, %v1148
          %v1150 = vpop.f32.mrb[0].mxu0
          %v1151 = vpop.f32.mrb[0].mxu0
          %v1152 = vadd.f32 %v957, %v1151
          %v1153 = vpop.f32.mrb[0].mxu0
          %1154 = vmatprep.mubr.bf16.mxu0 0
          %1155 = vmatmul.mubr.bf16.gmra.mrb[0].mxu0 %v1025
          %v1156 = vpop.f32.mrb[0].mxu0
          %v1157 = vadd.f32 %v958, %v1156
          %v1158 = vpop.f32.mrb[0].mxu0
          %v1159 = vpop.f32.mrb[0].mxu0
          %v1160 = vadd.f32 %v959, %v1159
          %v1161 = vpop.f32.mrb[0].mxu0
          %1162 = vmatprep.mubr.bf16.mxu0 0
          %1163 = vmatmul.mubr.bf16.gmra.mrb[0].mxu0 %v1028
          %v1164 = vpop.f32.mrb[0].mxu0
          %v1165 = vadd.f32 %v960, %v1164
          %v1166 = vpop.f32.mrb[0].mxu0
          %v1167 = vpop.f32.mrb[0].mxu0
          %v1168 = vadd.f32 %v961, %v1167
          %v1169 = vpop.f32.mrb[0].mxu0
          %1170 = vmatprep.mubr.bf16.mxu0 0
          %1171 = vmatmul.mubr.bf16.gmra.mrb[0].mxu0 %v1031
          %v1172 = vpop.f32.mrb[0].mxu0
          %v1173 = vadd.f32 %v962, %v1172
          %v1174 = vpop.f32.mrb[0].mxu0
          %v1175 = vpop.f32.mrb[0].mxu0
          %v1176 = vadd.f32 %v963, %v1175
          %v1177 = vpop.f32.mrb[0].mxu0
          %1178 = vmatprep.mubr.bf16.mxu0 0
          %1179 = vmatmul.mubr.bf16.gmra.mrb[0].mxu0 %v1034
          %v1180 = vpop.f32.mrb[0].mxu0
          %v1181 = vadd.f32 %v964, %v1180
          %v1182 = vpop.f32.mrb[0].mxu0
          %v1183 = vpop.f32.mrb[0].mxu0
          %v1184 = vadd.f32 %v965, %v1183
          %v1185 = vpop.f32.mrb[0].mxu0
          %1186 = vmatprep.mubr.bf16.mxu0 0
          %1187 = vmatmul.mubr.bf16.gmra.mrb[0].mxu0 %v1037
          %v1188 = vpop.f32.mrb[0].mxu0
          %v1189 = vadd.f32 %v966, %v1188
          %v1190 = vpop.f32.mrb[0].mxu0
          %v1191 = vpop.f32.mrb[0].mxu0
          %v1192 = vadd.f32 %v967, %v1191
          %v1193 = vpop.f32.mrb[0].mxu0
          %1194 = vmatprep.mubr.bf16.mxu0 0
          %1195 = vmatmul.mubr.bf16.gmra.mrb[0].mxu0 %v1040
          %v1196 = vpop.f32.mrb[0].mxu0
          %v1197 = vadd.f32 %v968, %v1196
          %v1198 = vpop.f32.mrb[0].mxu0
          %v1199 = vpop.f32.mrb[0].mxu0
          %v1200 = vadd.f32 %v969, %v1199
          %v1201 = vpop.f32.mrb[0].mxu0
          %1202 = vdwg.mxu0
          %s1203 = scalar_lea.vmem %s336, %s606 [#allocation4]
          %1204 = vst.msk [vmem:[%s1203] sm:$0xff] %vm346, %v1077
          %1205 = vst.msk [vmem:[%s1203 + $0x8] sm:$0xff] %vm346, %v1080
          %1206 = vst.msk [vmem:[%s1203 + $0x10] sm:$0xff] %vm346, %v1085
          %1207 = vst.msk [vmem:[%s1203 + $0x18] sm:$0xff] %vm346, %v1088
          %1208 = vst.msk [vmem:[%s1203 + $0x20] sm:$0xff] %vm346, %v1093
          %1209 = vst.msk [vmem:[%s1203 + $0x28] sm:$0xff] %vm346, %v1096
          %1210 = vst.msk [vmem:[%s1203 + $0x30] sm:$0xff] %vm346, %v1101
          %1211 = vst.msk [vmem:[%s1203 + $0x38] sm:$0xff] %vm346, %v1104
          %1212 = vst.msk [vmem:[%s1203 + $0x40] sm:$0xff] %vm346, %v1109
          %1213 = vst.msk [vmem:[%s1203 + $0x48] sm:$0xff] %vm346, %v1112
          %1214 = vst.msk [vmem:[%s1203 + $0x50] sm:$0xff] %vm346, %v1117
          %1215 = vst.msk [vmem:[%s1203 + $0x58] sm:$0xff] %vm346, %v1120
          %1216 = vst.msk [vmem:[%s1203 + $0x60] sm:$0xff] %vm346, %v1125
          %1217 = vst.msk [vmem:[%s1203 + $0x68] sm:$0xff] %vm346, %v1128
          %1218 = vst.msk [vmem:[%s1203 + $0x70] sm:$0xff] %vm346, %v1133
          %1219 = vst.msk [vmem:[%s1203 + $0x78] sm:$0xff] %vm346, %v1136
          %1220 = vst.msk [vmem:[%s1203 + $0x80] sm:$0xff] %vm346, %v1141
          %1221 = vst.msk [vmem:[%s1203 + $0x88] sm:$0xff] %vm346, %v1144
          %1222 = vst.msk [vmem:[%s1203 + $0x90] sm:$0xff] %vm346, %v1149
          %1223 = vst.msk [vmem:[%s1203 + $0x98] sm:$0xff] %vm346, %v1152
          %1224 = vst.msk [vmem:[%s1203 + $0xa0] sm:$0xff] %vm346, %v1157
          %1225 = vst.msk [vmem:[%s1203 + $0xa8] sm:$0xff] %vm346, %v1160
          %1226 = vst.msk [vmem:[%s1203 + $0xb0] sm:$0xff] %vm346, %v1165
          %1227 = vst.msk [vmem:[%s1203 + $0xb8] sm:$0xff] %vm346, %v1168
          %1228 = vst.msk [vmem:[%s1203 + $0xc0] sm:$0xff] %vm346, %v1173
          %1229 = vst.msk [vmem:[%s1203 + $0xc8] sm:$0xff] %vm346, %v1176
          %1230 = vst.msk [vmem:[%s1203 + $0xd0] sm:$0xff] %vm346, %v1181
          %1231 = vst.msk [vmem:[%s1203 + $0xd8] sm:$0xff] %vm346, %v1184
          %1232 = vst.msk [vmem:[%s1203 + $0xe0] sm:$0xff] %vm346, %v1189
          %1233 = vst.msk [vmem:[%s1203 + $0xe8] sm:$0xff] %vm346, %v1192
          %1234 = vst.msk [vmem:[%s1203 + $0xf0] sm:$0xff] %vm346, %v1197
          %1235 = vst.msk [vmem:[%s1203 + $0xf8] sm:$0xff] %vm346, %v1200
          %v1236 = vmax.f32 %v1077, 0.0
          %v1237 = vmax.f32 %v1080, 0.0
          %v1238 = vmax.f32 %v1085, 0.0
          %v1239 = vmax.f32 %v1088, 0.0
          %v1240 = vmax.f32 %v1093, 0.0
          %v1241 = vmax.f32 %v1096, 0.0
          %v1242 = vmax.f32 %v1101, 0.0
          %v1243 = vmax.f32 %v1104, 0.0
          %v1244 = vmax.f32 %v1109, 0.0
          %v1245 = vmax.f32 %v1112, 0.0
          %v1246 = vmax.f32 %v1117, 0.0
          %v1247 = vmax.f32 %v1120, 0.0
          %v1248 = vmax.f32 %v1125, 0.0
          %v1249 = vmax.f32 %v1128, 0.0
          %v1250 = vmax.f32 %v1133, 0.0
          %v1251 = vmax.f32 %v1136, 0.0
          %v1252 = vmax.f32 %v1141, 0.0
          %v1253 = vmax.f32 %v1144, 0.0
          %v1254 = vmax.f32 %v1149, 0.0
          %v1255 = vmax.f32 %v1152, 0.0
          %v1256 = vmax.f32 %v1157, 0.0
          %v1257 = vmax.f32 %v1160, 0.0
          %v1258 = vmax.f32 %v1165, 0.0
          %v1259 = vmax.f32 %v1168, 0.0
          %v1260 = vmax.f32 %v1173, 0.0
          %v1261 = vmax.f32 %v1176, 0.0
          %v1262 = vmax.f32 %v1181, 0.0
          %v1263 = vmax.f32 %v1184, 0.0
          %v1264 = vmax.f32 %v1189, 0.0
          %v1265 = vmax.f32 %v1192, 0.0
          %v1266 = vmax.f32 %v1197, 0.0
          %v1267 = vmax.f32 %v1200, 0.0
          %vm1300 = vcmask 1040384
          %v1301 = vrot.slane %v1236, 7
          %v1302 = vrot.slane %v1237, 7
          %v1303 = vsel %vm1300, %v1301, %v1302
          %v1304 = vrot.slane %v1238, 7
          %v1305 = vrot.slane %v1239, 7
          %v1306 = vsel %vm1300, %v1304, %v1305
          %v1307 = vrot.slane %v1240, 7
          %v1308 = vrot.slane %v1241, 7
          %v1309 = vsel %vm1300, %v1307, %v1308
          %v1310 = vrot.slane %v1242, 7
          %v1311 = vrot.slane %v1243, 7
          %v1312 = vsel %vm1300, %v1310, %v1311
          %v1313 = vrot.slane %v1244, 7
          %v1314 = vrot.slane %v1245, 7
          %v1315 = vsel %vm1300, %v1313, %v1314
          %v1316 = vrot.slane %v1246, 7
          %v1317 = vrot.slane %v1247, 7
          %v1318 = vsel %vm1300, %v1316, %v1317
          %v1319 = vrot.slane %v1248, 7
          %v1320 = vrot.slane %v1249, 7
          %v1321 = vsel %vm1300, %v1319, %v1320
          %v1322 = vrot.slane %v1250, 7
          %v1323 = vrot.slane %v1251, 7
          %v1324 = vsel %vm1300, %v1322, %v1323
          %v1325 = vrot.slane %v1252, 7
          %v1326 = vrot.slane %v1253, 7
          %v1327 = vsel %vm1300, %v1325, %v1326
          %v1328 = vrot.slane %v1254, 7
          %v1329 = vrot.slane %v1255, 7
          %v1330 = vsel %vm1300, %v1328, %v1329
          %v1331 = vrot.slane %v1256, 7
          %v1332 = vrot.slane %v1257, 7
          %v1333 = vsel %vm1300, %v1331, %v1332
          %v1334 = vrot.slane %v1258, 7
          %v1335 = vrot.slane %v1259, 7
          %v1336 = vsel %vm1300, %v1334, %v1335
          %v1337 = vrot.slane %v1260, 7
          %v1338 = vrot.slane %v1261, 7
          %v1339 = vsel %vm1300, %v1337, %v1338
          %v1340 = vrot.slane %v1262, 7
          %v1341 = vrot.slane %v1263, 7
          %v1342 = vsel %vm1300, %v1340, %v1341
          %v1343 = vrot.slane %v1264, 7
          %v1344 = vrot.slane %v1265, 7
          %v1345 = vsel %vm1300, %v1343, %v1344
          %v1346 = vrot.slane %v1266, 7
          %v1347 = vrot.slane %v1267, 7
          %v1348 = vsel %vm1300, %v1346, %v1347
          %v1397 = vsel %vm1300, 0.0, %v1301
          %v1398 = vsel %vm1300, 0.0, %v1304
          %v1399 = vsel %vm1300, 0.0, %v1307
          %v1400 = vsel %vm1300, 0.0, %v1310
          %v1401 = vsel %vm1300, 0.0, %v1313
          %v1402 = vsel %vm1300, 0.0, %v1316
          %v1403 = vsel %vm1300, 0.0, %v1319
          %v1404 = vsel %vm1300, 0.0, %v1322
          %v1405 = vsel %vm1300, 0.0, %v1325
          %v1406 = vsel %vm1300, 0.0, %v1328
          %v1407 = vsel %vm1300, 0.0, %v1331
          %v1408 = vsel %vm1300, 0.0, %v1334
          %v1409 = vsel %vm1300, 0.0, %v1337
          %v1410 = vsel %vm1300, 0.0, %v1340
          %v1411 = vsel %vm1300, 0.0, %v1343
          %v1412 = vsel %vm1300, 0.0, %v1346
          %v1413 = vsel %vm1300, %v1302, 0.0
          %v1414 = vsel %vm1300, %v1305, 0.0
          %v1415 = vsel %vm1300, %v1308, 0.0
          %v1416 = vsel %vm1300, %v1311, 0.0
          %v1417 = vsel %vm1300, %v1314, 0.0
          %v1418 = vsel %vm1300, %v1317, 0.0
          %v1419 = vsel %vm1300, %v1320, 0.0
          %v1420 = vsel %vm1300, %v1323, 0.0
          %v1421 = vsel %vm1300, %v1326, 0.0
          %v1422 = vsel %vm1300, %v1329, 0.0
          %v1423 = vsel %vm1300, %v1332, 0.0
          %v1424 = vsel %vm1300, %v1335, 0.0
          %v1425 = vsel %vm1300, %v1338, 0.0
          %v1426 = vsel %vm1300, %v1341, 0.0
          %v1427 = vsel %vm1300, %v1344, 0.0
          %v1428 = vsel %vm1300, %v1347, 0.0
          %s1429 = scalar_lea.vmem [#allocation2], 24
          %1430 = vst.msk [vmem:[%s1429] sm:$0xff] %vm346, %v1397
          %1431 = vst.msk [vmem:[%s1429 + $0x8] sm:$0xff] %vm346, %v1303
          %1432 = vst.msk [vmem:[%s1429 + $0x10] sm:$0x3] %vm349, %v1413
          %1433 = vst.msk [vmem:[%s1429 + $0x18] sm:$0xff] %vm346, %v1398
          %1434 = vst.msk [vmem:[%s1429 + $0x20] sm:$0xff] %vm346, %v1306
          %1435 = vst.msk [vmem:[%s1429 + $0x28] sm:$0x3] %vm349, %v1414
          %1436 = vst.msk [vmem:[%s1429 + $0x30] sm:$0xff] %vm346, %v1399
          %1437 = vst.msk [vmem:[%s1429 + $0x38] sm:$0xff] %vm346, %v1309
          %1438 = vst.msk [vmem:[%s1429 + $0x40] sm:$0x3] %vm349, %v1415
          %1439 = vst.msk [vmem:[%s1429 + $0x48] sm:$0xff] %vm346, %v1400
          %1440 = vst.msk [vmem:[%s1429 + $0x50] sm:$0xff] %vm346, %v1312
          %1441 = vst.msk [vmem:[%s1429 + $0x58] sm:$0x3] %vm349, %v1416
          %1442 = vst.msk [vmem:[%s1429 + $0x60] sm:$0xff] %vm346, %v1401
          %1443 = vst.msk [vmem:[%s1429 + $0x68] sm:$0xff] %vm346, %v1315
          %1444 = vst.msk [vmem:[%s1429 + $0x70] sm:$0x3] %vm349, %v1417
          %1445 = vst.msk [vmem:[%s1429 + $0x78] sm:$0xff] %vm346, %v1402
          %1446 = vst.msk [vmem:[%s1429 + $0x80] sm:$0xff] %vm346, %v1318
          %1447 = vst.msk [vmem:[%s1429 + $0x88] sm:$0x3] %vm349, %v1418
          %1448 = vst.msk [vmem:[%s1429 + $0x90] sm:$0xff] %vm346, %v1403
          %1449 = vst.msk [vmem:[%s1429 + $0x98] sm:$0xff] %vm346, %v1321
          %1450 = vst.msk [vmem:[%s1429 + $0xa0] sm:$0x3] %vm349, %v1419
          %1451 = vst.msk [vmem:[%s1429 + $0xa8] sm:$0xff] %vm346, %v1404
          %1452 = vst.msk [vmem:[%s1429 + $0xb0] sm:$0xff] %vm346, %v1324
          %1453 = vst.msk [vmem:[%s1429 + $0xb8] sm:$0x3] %vm349, %v1420
          %1454 = vst.msk [vmem:[%s1429 + $0xc0] sm:$0xff] %vm346, %v1405
          %1455 = vst.msk [vmem:[%s1429 + $0xc8] sm:$0xff] %vm346, %v1327
          %1456 = vst.msk [vmem:[%s1429 + $0xd0] sm:$0x3] %vm349, %v1421
          %1457 = vst.msk [vmem:[%s1429 + $0xd8] sm:$0xff] %vm346, %v1406
          %1458 = vst.msk [vmem:[%s1429 + $0xe0] sm:$0xff] %vm346, %v1330
          %1459 = vst.msk [vmem:[%s1429 + $0xe8] sm:$0x3] %vm349, %v1422
          %1460 = vst.msk [vmem:[%s1429 + $0xf0] sm:$0xff] %vm346, %v1407
          %1461 = vst.msk [vmem:[%s1429 + $0xf8] sm:$0xff] %vm346, %v1333
          %1462 = vst.msk [vmem:[%s1429 + $0x100] sm:$0x3] %vm349, %v1423
          %1463 = vst.msk [vmem:[%s1429 + $0x108] sm:$0xff] %vm346, %v1408
          %1464 = vst.msk [vmem:[%s1429 + $0x110] sm:$0xff] %vm346, %v1336
          %1465 = vst.msk [vmem:[%s1429 + $0x118] sm:$0x3] %vm349, %v1424
          %1466 = vst.msk [vmem:[%s1429 + $0x120] sm:$0xff] %vm346, %v1409
          %1467 = vst.msk [vmem:[%s1429 + $0x128] sm:$0xff] %vm346, %v1339
          %1468 = vst.msk [vmem:[%s1429 + $0x130] sm:$0x3] %vm349, %v1425
          %1469 = vst.msk [vmem:[%s1429 + $0x138] sm:$0xff] %vm346, %v1410
          %1470 = vst.msk [vmem:[%s1429 + $0x140] sm:$0xff] %vm346, %v1342
          %1471 = vst.msk [vmem:[%s1429 + $0x148] sm:$0x3] %vm349, %v1426
          %1472 = vst.msk [vmem:[%s1429 + $0x150] sm:$0xff] %vm346, %v1411
          %1473 = vst.msk [vmem:[%s1429 + $0x158] sm:$0xff] %vm346, %v1345
          %1474 = vst.msk [vmem:[%s1429 + $0x160] sm:$0x3] %vm349, %v1427
          %1475 = vst.msk [vmem:[%s1429 + $0x168] sm:$0xff] %vm346, %v1412
          %1476 = vst.msk [vmem:[%s1429 + $0x170] sm:$0xff] %vm346, %v1348
          %1477 = vst.msk [vmem:[%s1429 + $0x178] sm:$0x3] %vm349, %v1428
          %s1478 = sadd.s32 %s601, 1
          %v1479 = vld [vmem:[#allocation2] sm:$0xff]
          %v1480 = vld [vmem:[#allocation2 + $0x8] sm:$0xff]
          %v1481 = vld [vmem:[#allocation2 + $0x18] sm:$0xff]
          %v1482 = vld [vmem:[#allocation2 + $0x20] sm:$0xff]
          %v1483 = vld [vmem:[#allocation2 + $0x30] sm:$0xff]
          %v1484 = vld [vmem:[#allocation2 + $0x38] sm:$0xff]
          %v1485 = vld [vmem:[#allocation2 + $0x48] sm:$0xff]
          %v1486 = vld [vmem:[#allocation2 + $0x50] sm:$0xff]
          %v1487 = vld [vmem:[#allocation2 + $0x60] sm:$0xff]
          %v1488 = vld [vmem:[#allocation2 + $0x68] sm:$0xff]
          %v1489 = vld [vmem:[#allocation2 + $0x78] sm:$0xff]
          %v1490 = vld [vmem:[#allocation2 + $0x80] sm:$0xff]
          %v1491 = vld [vmem:[#allocation2 + $0x90] sm:$0xff]
          %v1492 = vld [vmem:[#allocation2 + $0x98] sm:$0xff]
          %v1493 = vld [vmem:[#allocation2 + $0xa8] sm:$0xff]
          %v1494 = vld [vmem:[#allocation2 + $0xb0] sm:$0xff]
          %v1495 = vld [vmem:[#allocation2 + $0xc0] sm:$0xff]
          %v1496 = vld [vmem:[#allocation2 + $0xc8] sm:$0xff]
          %v1497 = vld [vmem:[#allocation2 + $0xd8] sm:$0xff]
          %v1498 = vld [vmem:[#allocation2 + $0xe0] sm:$0xff]
          %v1499 = vld [vmem:[#allocation2 + $0xf0] sm:$0xff]
          %v1500 = vld [vmem:[#allocation2 + $0xf8] sm:$0xff]
          %v1501 = vld [vmem:[#allocation2 + $0x108] sm:$0xff]
          %v1502 = vld [vmem:[#allocation2 + $0x110] sm:$0xff]
          %v1503 = vld [vmem:[#allocation2 + $0x120] sm:$0xff]
          %v1504 = vld [vmem:[#allocation2 + $0x128] sm:$0xff]
          %v1505 = vld [vmem:[#allocation2 + $0x138] sm:$0xff]
          %v1506 = vld [vmem:[#allocation2 + $0x140] sm:$0xff]
          %v1507 = vld [vmem:[#allocation2 + $0x150] sm:$0xff]
          %v1508 = vld [vmem:[#allocation2 + $0x158] sm:$0xff]
          %v1509 = vld [vmem:[#allocation2 + $0x168] sm:$0xff]
          %v1510 = vld [vmem:[#allocation2 + $0x170] sm:$0xff]
          %v1511 = vpack.c.bf16 %v1480, %v1479
          %v1512 = vpack.c.bf16 %v1482, %v1481
          %v1513 = vpack.c.bf16 %v1484, %v1483
          %v1514 = vpack.c.bf16 %v1486, %v1485
          %v1515 = vpack.c.bf16 %v1488, %v1487
          %v1516 = vpack.c.bf16 %v1490, %v1489
          %v1517 = vpack.c.bf16 %v1492, %v1491
          %v1518 = vpack.c.bf16 %v1494, %v1493
          %v1519 = vpack.c.bf16 %v1496, %v1495
          %v1520 = vpack.c.bf16 %v1498, %v1497
          %v1521 = vpack.c.bf16 %v1500, %v1499
          %v1522 = vpack.c.bf16 %v1502, %v1501
          %v1523 = vpack.c.bf16 %v1504, %v1503
          %v1524 = vpack.c.bf16 %v1506, %v1505
          %v1525 = vpack.c.bf16 %v1508, %v1507
          %v1526 = vpack.c.bf16 %v1510, %v1509
          %v1527 = vld [vmem:[#allocation2 + $0x1] sm:$0xff]
          %v1528 = vld [vmem:[#allocation2 + $0x9] sm:$0xff]
          %v1529 = vld [vmem:[#allocation2 + $0x19] sm:$0xff]
          %v1530 = vld [vmem:[#allocation2 + $0x21] sm:$0xff]
          %v1531 = vld [vmem:[#allocation2 + $0x31] sm:$0xff]
          %v1532 = vld [vmem:[#allocation2 + $0x39] sm:$0xff]
          %v1533 = vld [vmem:[#allocation2 + $0x49] sm:$0xff]
          %v1534 = vld [vmem:[#allocation2 + $0x51] sm:$0xff]
          %v1535 = vld [vmem:[#allocation2 + $0x61] sm:$0xff]
          %v1536 = vld [vmem:[#allocation2 + $0x69] sm:$0xff]
          %v1537 = vld [vmem:[#allocation2 + $0x79] sm:$0xff]
          %v1538 = vld [vmem:[#allocation2 + $0x81] sm:$0xff]
          %v1539 = vld [vmem:[#allocation2 + $0x91] sm:$0xff]
          %v1540 = vld [vmem:[#allocation2 + $0x99] sm:$0xff]
          %v1541 = vld [vmem:[#allocation2 + $0xa9] sm:$0xff]
          %v1542 = vld [vmem:[#allocation2 + $0xb1] sm:$0xff]
          %v1543 = vld [vmem:[#allocation2 + $0xc1] sm:$0xff]
          %v1544 = vld [vmem:[#allocation2 + $0xc9] sm:$0xff]
          %v1545 = vld [vmem:[#allocation2 + $0xd9] sm:$0xff]
          %v1546 = vld [vmem:[#allocation2 + $0xe1] sm:$0xff]
          %v1547 = vld [vmem:[#allocation2 + $0xf1] sm:$0xff]
          %v1548 = vld [vmem:[#allocation2 + $0xf9] sm:$0xff]
          %v1549 = vld [vmem:[#allocation2 + $0x109] sm:$0xff]
          %v1550 = vld [vmem:[#allocation2 + $0x111] sm:$0xff]
          %v1551 = vld [vmem:[#allocation2 + $0x121] sm:$0xff]
          %v1552 = vld [vmem:[#allocation2 + $0x129] sm:$0xff]
          %v1553 = vld [vmem:[#allocation2 + $0x139] sm:$0xff]
          %v1554 = vld [vmem:[#allocation2 + $0x141] sm:$0xff]
          %v1555 = vld [vmem:[#allocation2 + $0x151] sm:$0xff]
          %v1556 = vld [vmem:[#allocation2 + $0x159] sm:$0xff]
          %v1557 = vld [vmem:[#allocation2 + $0x169] sm:$0xff]
          %v1558 = vld [vmem:[#allocation2 + $0x171] sm:$0xff]
          %v1559 = vpack.c.bf16 %v1528, %v1527
          %v1560 = vpack.c.bf16 %v1530, %v1529
          %v1561 = vpack.c.bf16 %v1532, %v1531
          %v1562 = vpack.c.bf16 %v1534, %v1533
          %v1563 = vpack.c.bf16 %v1536, %v1535
          %v1564 = vpack.c.bf16 %v1538, %v1537
          %v1565 = vpack.c.bf16 %v1540, %v1539
          %v1566 = vpack.c.bf16 %v1542, %v1541
          %v1567 = vpack.c.bf16 %v1544, %v1543
          %v1568 = vpack.c.bf16 %v1546, %v1545
          %v1569 = vpack.c.bf16 %v1548, %v1547
          %v1570 = vpack.c.bf16 %v1550, %v1549
          %v1571 = vpack.c.bf16 %v1552, %v1551
          %v1572 = vpack.c.bf16 %v1554, %v1553
          %v1573 = vpack.c.bf16 %v1556, %v1555
          %v1574 = vpack.c.bf16 %v1558, %v1557
          %1591 = vrot.lane.b32.xlu0 %v1559, 64
          %v1592 = vpop.permute.xlu0 %1591
          %1593 = vrot.lane.b32.xlu0 %v1560, 64
          %v1594 = vpop.permute.xlu0 %1593
          %1595 = vrot.lane.b32.xlu0 %v1561, 64
          %v1596 = vpop.permute.xlu0 %1595
          %1597 = vrot.lane.b32.xlu0 %v1562, 64
          %v1598 = vpop.permute.xlu0 %1597
          %1599 = vrot.lane.b32.xlu0 %v1563, 64
          %v1600 = vpop.permute.xlu0 %1599
          %1601 = vrot.lane.b32.xlu0 %v1564, 64
          %v1602 = vpop.permute.xlu0 %1601
          %1603 = vrot.lane.b32.xlu0 %v1565, 64
          %v1604 = vpop.permute.xlu0 %1603
          %1605 = vrot.lane.b32.xlu0 %v1566, 64
          %v1606 = vpop.permute.xlu0 %1605
          %1607 = vrot.lane.b32.xlu0 %v1567, 64
          %v1608 = vpop.permute.xlu0 %1607
          %1609 = vrot.lane.b32.xlu0 %v1568, 64
          %v1610 = vpop.permute.xlu0 %1609
          %1611 = vrot.lane.b32.xlu0 %v1569, 64
          %v1612 = vpop.permute.xlu0 %1611
          %1613 = vrot.lane.b32.xlu0 %v1570, 64
          %v1614 = vpop.permute.xlu0 %1613
          %1615 = vrot.lane.b32.xlu0 %v1571, 64
          %v1616 = vpop.permute.xlu0 %1615
          %1617 = vrot.lane.b32.xlu0 %v1572, 64
          %v1618 = vpop.permute.xlu0 %1617
          %1619 = vrot.lane.b32.xlu0 %v1573, 64
          %v1620 = vpop.permute.xlu0 %1619
          %1621 = vrot.lane.b32.xlu0 %v1574, 64
          %v1622 = vpop.permute.xlu0 %1621
          %v1625 = vsel %vm346, %v1511, %v1592
          %v1629 = vsel %vm346, %v1512, %v1594
          %v1633 = vsel %vm346, %v1513, %v1596
          %v1637 = vsel %vm346, %v1514, %v1598
          %v1641 = vsel %vm346, %v1515, %v1600
          %v1645 = vsel %vm346, %v1516, %v1602
          %v1649 = vsel %vm346, %v1517, %v1604
          %v1653 = vsel %vm346, %v1518, %v1606
          %v1657 = vsel %vm346, %v1519, %v1608
          %v1661 = vsel %vm346, %v1520, %v1610
          %v1665 = vsel %vm346, %v1521, %v1612
          %v1669 = vsel %vm346, %v1522, %v1614
          %v1673 = vsel %vm346, %v1523, %v1616
          %v1677 = vsel %vm346, %v1524, %v1618
          %v1681 = vsel %vm346, %v1525, %v1620
          %v1685 = vsel %vm346, %v1526, %v1622
          %s1687 = smul.u32 %s1478, 80
          %s1688 = smul.addr %s1687, 8
          %s1689 = scalar_lea.vmem [#allocation3], %s1688
          %1690 = vst [vmem:[%s1689] sm:$0xff] %v1625
          %1691 = vst [vmem:[%s1689 + $0x28] sm:$0xff] %v1629
          %1692 = vst [vmem:[%s1689 + $0x50] sm:$0xff] %v1633
          %1693 = vst [vmem:[%s1689 + $0x78] sm:$0xff] %v1637
          %1694 = vst [vmem:[%s1689 + $0xa0] sm:$0xff] %v1641
          %1695 = vst [vmem:[%s1689 + $0xc8] sm:$0xff] %v1645
          %1696 = vst [vmem:[%s1689 + $0xf0] sm:$0xff] %v1649
          %1697 = vst [vmem:[%s1689 + $0x118] sm:$0xff] %v1653
          %1698 = vst [vmem:[%s1689 + $0x140] sm:$0xff] %v1657
          %1699 = vst [vmem:[%s1689 + $0x168] sm:$0xff] %v1661
          %1700 = vst [vmem:[%s1689 + $0x190] sm:$0xff] %v1665
          %1701 = vst [vmem:[%s1689 + $0x1b8] sm:$0xff] %v1669
          %1702 = vst [vmem:[%s1689 + $0x1e0] sm:$0xff] %v1673
          %1703 = vst [vmem:[%s1689 + $0x208] sm:$0xff] %v1677
          %1704 = vst [vmem:[%s1689 + $0x230] sm:$0xff] %v1681
          %1705 = vst [vmem:[%s1689 + $0x258] sm:$0xff] %v1685
          %v1706 = vld [vmem:[#allocation2 + $0x2] sm:$0xff]
          %v1707 = vld [vmem:[#allocation2 + $0xa] sm:$0xff]
          %v1708 = vld [vmem:[#allocation2 + $0x1a] sm:$0xff]
          %v1709 = vld [vmem:[#allocation2 + $0x22] sm:$0xff]
          %v1710 = vld [vmem:[#allocation2 + $0x32] sm:$0xff]
          %v1711 = vld [vmem:[#allocation2 + $0x3a] sm:$0xff]
          %v1712 = vld [vmem:[#allocation2 + $0x4a] sm:$0xff]
          %v1713 = vld [vmem:[#allocation2 + $0x52] sm:$0xff]
          %v1714 = vld [vmem:[#allocation2 + $0x62] sm:$0xff]
          %v1715 = vld [vmem:[#allocation2 + $0x6a] sm:$0xff]
          %v1716 = vld [vmem:[#allocation2 + $0x7a] sm:$0xff]
          %v1717 = vld [vmem:[#allocation2 + $0x82] sm:$0xff]
          %v1718 = vld [vmem:[#allocation2 + $0x92] sm:$0xff]
          %v1719 = vld [vmem:[#allocation2 + $0x9a] sm:$0xff]
          %v1720 = vld [vmem:[#allocation2 + $0xaa] sm:$0xff]
          %v1721 = vld [vmem:[#allocation2 + $0xb2] sm:$0xff]
          %v1722 = vld [vmem:[#allocation2 + $0xc2] sm:$0xff]
          %v1723 = vld [vmem:[#allocation2 + $0xca] sm:$0xff]
          %v1724 = vld [vmem:[#allocation2 + $0xda] sm:$0xff]
          %v1725 = vld [vmem:[#allocation2 + $0xe2] sm:$0xff]
          %v1726 = vld [vmem:[#allocation2 + $0xf2] sm:$0xff]
          %v1727 = vld [vmem:[#allocation2 + $0xfa] sm:$0xff]
          %v1728 = vld [vmem:[#allocation2 + $0x10a] sm:$0xff]
          %v1729 = vld [vmem:[#allocation2 + $0x112] sm:$0xff]
          %v1730 = vld [vmem:[#allocation2 + $0x122] sm:$0xff]
          %v1731 = vld [vmem:[#allocation2 + $0x12a] sm:$0xff]
          %v1732 = vld [vmem:[#allocation2 + $0x13a] sm:$0xff]
          %v1733 = vld [vmem:[#allocation2 + $0x142] sm:$0xff]
          %v1734 = vld [vmem:[#allocation2 + $0x152] sm:$0xff]
          %v1735 = vld [vmem:[#allocation2 + $0x15a] sm:$0xff]
          %v1736 = vld [vmem:[#allocation2 + $0x16a] sm:$0xff]
          %v1737 = vld [vmem:[#allocation2 + $0x172] sm:$0xff]
          %v1738 = vpack.c.bf16 %v1707, %v1706
          %v1739 = vpack.c.bf16 %v1709, %v1708
          %v1740 = vpack.c.bf16 %v1711, %v1710
          %v1741 = vpack.c.bf16 %v1713, %v1712
          %v1742 = vpack.c.bf16 %v1715, %v1714
          %v1743 = vpack.c.bf16 %v1717, %v1716
          %v1744 = vpack.c.bf16 %v1719, %v1718
          %v1745 = vpack.c.bf16 %v1721, %v1720
          %v1746 = vpack.c.bf16 %v1723, %v1722
          %v1747 = vpack.c.bf16 %v1725, %v1724
          %v1748 = vpack.c.bf16 %v1727, %v1726
          %v1749 = vpack.c.bf16 %v1729, %v1728
          %v1750 = vpack.c.bf16 %v1731, %v1730
          %v1751 = vpack.c.bf16 %v1733, %v1732
          %v1752 = vpack.c.bf16 %v1735, %v1734
          %v1753 = vpack.c.bf16 %v1737, %v1736
          %v1754 = vld [vmem:[%s1429] sm:$0xff]
          %v1755 = vld [vmem:[%s1429 + $0x8] sm:$0xff]
          %v1756 = vld [vmem:[%s1429 + $0x18] sm:$0xff]
          %v1757 = vld [vmem:[%s1429 + $0x20] sm:$0xff]
          %v1758 = vld [vmem:[%s1429 + $0x30] sm:$0xff]
          %v1759 = vld [vmem:[%s1429 + $0x38] sm:$0xff]
          %v1760 = vld [vmem:[%s1429 + $0x48] sm:$0xff]
          %v1761 = vld [vmem:[%s1429 + $0x50] sm:$0xff]
          %v1762 = vld [vmem:[%s1429 + $0x60] sm:$0xff]
          %v1763 = vld [vmem:[%s1429 + $0x68] sm:$0xff]
          %v1764 = vld [vmem:[%s1429 + $0x78] sm:$0xff]
          %v1765 = vld [vmem:[%s1429 + $0x80] sm:$0xff]
          %v1766 = vld [vmem:[%s1429 + $0x90] sm:$0xff]
          %v1767 = vld [vmem:[%s1429 + $0x98] sm:$0xff]
          %v1768 = vld [vmem:[%s1429 + $0xa8] sm:$0xff]
          %v1769 = vld [vmem:[%s1429 + $0xb0] sm:$0xff]
          %v1770 = vld [vmem:[%s1429 + $0xc0] sm:$0xff]
          %v1771 = vld [vmem:[%s1429 + $0xc8] sm:$0xff]
          %v1772 = vld [vmem:[%s1429 + $0xd8] sm:$0xff]
          %v1773 = vld [vmem:[%s1429 + $0xe0] sm:$0xff]
          %v1774 = vld [vmem:[%s1429 + $0xf0] sm:$0xff]
          %v1775 = vld [vmem:[%s1429 + $0xf8] sm:$0xff]
          %v1776 = vld [vmem:[%s1429 + $0x108] sm:$0xff]
          %v1777 = vld [vmem:[%s1429 + $0x110] sm:$0xff]
          %v1778 = vld [vmem:[%s1429 + $0x120] sm:$0xff]
          %v1779 = vld [vmem:[%s1429 + $0x128] sm:$0xff]
          %v1780 = vld [vmem:[%s1429 + $0x138] sm:$0xff]
          %v1781 = vld [vmem:[%s1429 + $0x140] sm:$0xff]
          %v1782 = vld [vmem:[%s1429 + $0x150] sm:$0xff]
          %v1783 = vld [vmem:[%s1429 + $0x158] sm:$0xff]
          %v1784 = vld [vmem:[%s1429 + $0x168] sm:$0xff]
          %v1785 = vld [vmem:[%s1429 + $0x170] sm:$0xff]
          %v1786 = vpack.c.bf16 %v1755, %v1754
          %v1787 = vpack.c.bf16 %v1757, %v1756
          %v1788 = vpack.c.bf16 %v1759, %v1758
          %v1789 = vpack.c.bf16 %v1761, %v1760
          %v1790 = vpack.c.bf16 %v1763, %v1762
          %v1791 = vpack.c.bf16 %v1765, %v1764
          %v1792 = vpack.c.bf16 %v1767, %v1766
          %v1793 = vpack.c.bf16 %v1769, %v1768
          %v1794 = vpack.c.bf16 %v1771, %v1770
          %v1795 = vpack.c.bf16 %v1773, %v1772
          %v1796 = vpack.c.bf16 %v1775, %v1774
          %v1797 = vpack.c.bf16 %v1777, %v1776
          %v1798 = vpack.c.bf16 %v1779, %v1778
          %v1799 = vpack.c.bf16 %v1781, %v1780
          %v1800 = vpack.c.bf16 %v1783, %v1782
          %v1801 = vpack.c.bf16 %v1785, %v1784
          %1818 = vrot.lane.b32.xlu0 %v1786, 64
          %v1819 = vpop.permute.xlu0 %1818
          %1820 = vrot.lane.b32.xlu0 %v1787, 64
          %v1821 = vpop.permute.xlu0 %1820
          %1822 = vrot.lane.b32.xlu0 %v1788, 64
          %v1823 = vpop.permute.xlu0 %1822
          %1824 = vrot.lane.b32.xlu0 %v1789, 64
          %v1825 = vpop.permute.xlu0 %1824
          %1826 = vrot.lane.b32.xlu0 %v1790, 64
          %v1827 = vpop.permute.xlu0 %1826
          %1828 = vrot.lane.b32.xlu0 %v1791, 64
          %v1829 = vpop.permute.xlu0 %1828
          %1830 = vrot.lane.b32.xlu0 %v1792, 64
          %v1831 = vpop.permute.xlu0 %1830
          %1832 = vrot.lane.b32.xlu0 %v1793, 64
          %v1833 = vpop.permute.xlu0 %1832
          %1834 = vrot.lane.b32.xlu0 %v1794, 64
          %v1835 = vpop.permute.xlu0 %1834
          %1836 = vrot.lane.b32.xlu0 %v1795, 64
          %v1837 = vpop.permute.xlu0 %1836
          %1838 = vrot.lane.b32.xlu0 %v1796, 64
          %v1839 = vpop.permute.xlu0 %1838
          %1840 = vrot.lane.b32.xlu0 %v1797, 64
          %v1841 = vpop.permute.xlu0 %1840
          %1842 = vrot.lane.b32.xlu0 %v1798, 64
          %v1843 = vpop.permute.xlu0 %1842
          %1844 = vrot.lane.b32.xlu0 %v1799, 64
          %v1845 = vpop.permute.xlu0 %1844
          %1846 = vrot.lane.b32.xlu0 %v1800, 64
          %v1847 = vpop.permute.xlu0 %1846
          %1848 = vrot.lane.b32.xlu0 %v1801, 64
          %v1849 = vpop.permute.xlu0 %1848
          %v1852 = vsel %vm346, %v1738, %v1819
          %v1856 = vsel %vm346, %v1739, %v1821
          %v1860 = vsel %vm346, %v1740, %v1823
          %v1864 = vsel %vm346, %v1741, %v1825
          %v1868 = vsel %vm346, %v1742, %v1827
          %v1872 = vsel %vm346, %v1743, %v1829
          %v1876 = vsel %vm346, %v1744, %v1831
          %v1880 = vsel %vm346, %v1745, %v1833
          %v1884 = vsel %vm346, %v1746, %v1835
          %v1888 = vsel %vm346, %v1747, %v1837
          %v1892 = vsel %vm346, %v1748, %v1839
          %v1896 = vsel %vm346, %v1749, %v1841
          %v1900 = vsel %vm346, %v1750, %v1843
          %v1904 = vsel %vm346, %v1751, %v1845
          %v1908 = vsel %vm346, %v1752, %v1847
          %v1912 = vsel %vm346, %v1753, %v1849
          %1914 = vst [vmem:[%s1689 + $0x8] sm:$0xff] %v1852
          %1915 = vst [vmem:[%s1689 + $0x30] sm:$0xff] %v1856
          %1916 = vst [vmem:[%s1689 + $0x58] sm:$0xff] %v1860
          %1917 = vst [vmem:[%s1689 + $0x80] sm:$0xff] %v1864
          %1918 = vst [vmem:[%s1689 + $0xa8] sm:$0xff] %v1868
          %1919 = vst [vmem:[%s1689 + $0xd0] sm:$0xff] %v1872
          %1920 = vst [vmem:[%s1689 + $0xf8] sm:$0xff] %v1876
          %1921 = vst [vmem:[%s1689 + $0x120] sm:$0xff] %v1880
          %1922 = vst [vmem:[%s1689 + $0x148] sm:$0xff] %v1884
          %1923 = vst [vmem:[%s1689 + $0x170] sm:$0xff] %v1888
          %1924 = vst [vmem:[%s1689 + $0x198] sm:$0xff] %v1892
          %1925 = vst [vmem:[%s1689 + $0x1c0] sm:$0xff] %v1896
          %1926 = vst [vmem:[%s1689 + $0x1e8] sm:$0xff] %v1900
          %1927 = vst [vmem:[%s1689 + $0x210] sm:$0xff] %v1904
          %1928 = vst [vmem:[%s1689 + $0x238] sm:$0xff] %v1908
          %1929 = vst [vmem:[%s1689 + $0x260] sm:$0xff] %v1912
          %v1930 = vld [vmem:[%s1429 + $0x1] sm:$0xff]
          %v1931 = vld [vmem:[%s1429 + $0x9] sm:$0xff]
          %v1932 = vld [vmem:[%s1429 + $0x19] sm:$0xff]
          %v1933 = vld [vmem:[%s1429 + $0x21] sm:$0xff]
          %v1934 = vld [vmem:[%s1429 + $0x31] sm:$0xff]
          %v1935 = vld [vmem:[%s1429 + $0x39] sm:$0xff]
          %v1936 = vld [vmem:[%s1429 + $0x49] sm:$0xff]
          %v1937 = vld [vmem:[%s1429 + $0x51] sm:$0xff]
          %v1938 = vld [vmem:[%s1429 + $0x61] sm:$0xff]
          %v1939 = vld [vmem:[%s1429 + $0x69] sm:$0xff]
          %v1940 = vld [vmem:[%s1429 + $0x79] sm:$0xff]
          %v1941 = vld [vmem:[%s1429 + $0x81] sm:$0xff]
          %v1942 = vld [vmem:[%s1429 + $0x91] sm:$0xff]
          %v1943 = vld [vmem:[%s1429 + $0x99] sm:$0xff]
          %v1944 = vld [vmem:[%s1429 + $0xa9] sm:$0xff]
          %v1945 = vld [vmem:[%s1429 + $0xb1] sm:$0xff]
          %v1946 = vld [vmem:[%s1429 + $0xc1] sm:$0xff]
          %v1947 = vld [vmem:[%s1429 + $0xc9] sm:$0xff]
          %v1948 = vld [vmem:[%s1429 + $0xd9] sm:$0xff]
          %v1949 = vld [vmem:[%s1429 + $0xe1] sm:$0xff]
          %v1950 = vld [vmem:[%s1429 + $0xf1] sm:$0xff]
          %v1951 = vld [vmem:[%s1429 + $0xf9] sm:$0xff]
          %v1952 = vld [vmem:[%s1429 + $0x109] sm:$0xff]
          %v1953 = vld [vmem:[%s1429 + $0x111] sm:$0xff]
          %v1954 = vld [vmem:[%s1429 + $0x121] sm:$0xff]
          %v1955 = vld [vmem:[%s1429 + $0x129] sm:$0xff]
          %v1956 = vld [vmem:[%s1429 + $0x139] sm:$0xff]
          %v1957 = vld [vmem:[%s1429 + $0x141] sm:$0xff]
          %v1958 = vld [vmem:[%s1429 + $0x151] sm:$0xff]
          %v1959 = vld [vmem:[%s1429 + $0x159] sm:$0xff]
          %v1960 = vld [vmem:[%s1429 + $0x169] sm:$0xff]
          %v1961 = vld [vmem:[%s1429 + $0x171] sm:$0xff]
          %v1962 = vpack.c.bf16 %v1931, %v1930
          %v1963 = vpack.c.bf16 %v1933, %v1932
          %v1964 = vpack.c.bf16 %v1935, %v1934
          %v1965 = vpack.c.bf16 %v1937, %v1936
          %v1966 = vpack.c.bf16 %v1939, %v1938
          %v1967 = vpack.c.bf16 %v1941, %v1940
          %v1968 = vpack.c.bf16 %v1943, %v1942
          %v1969 = vpack.c.bf16 %v1945, %v1944
          %v1970 = vpack.c.bf16 %v1947, %v1946
          %v1971 = vpack.c.bf16 %v1949, %v1948
          %v1972 = vpack.c.bf16 %v1951, %v1950
          %v1973 = vpack.c.bf16 %v1953, %v1952
          %v1974 = vpack.c.bf16 %v1955, %v1954
          %v1975 = vpack.c.bf16 %v1957, %v1956
          %v1976 = vpack.c.bf16 %v1959, %v1958
          %v1977 = vpack.c.bf16 %v1961, %v1960
          %v1978 = vld [vmem:[%s1429 + $0x2] sm:$0xff]
          %v1979 = vld [vmem:[%s1429 + $0xa] sm:$0xff]
          %v1980 = vld [vmem:[%s1429 + $0x1a] sm:$0xff]
          %v1981 = vld [vmem:[%s1429 + $0x22] sm:$0xff]
          %v1982 = vld [vmem:[%s1429 + $0x32] sm:$0xff]
          %v1983 = vld [vmem:[%s1429 + $0x3a] sm:$0xff]
          %v1984 = vld [vmem:[%s1429 + $0x4a] sm:$0xff]
          %v1985 = vld [vmem:[%s1429 + $0x52] sm:$0xff]
          %v1986 = vld [vmem:[%s1429 + $0x62] sm:$0xff]
          %v1987 = vld [vmem:[%s1429 + $0x6a] sm:$0xff]
          %v1988 = vld [vmem:[%s1429 + $0x7a] sm:$0xff]
          %v1989 = vld [vmem:[%s1429 + $0x82] sm:$0xff]
          %v1990 = vld [vmem:[%s1429 + $0x92] sm:$0xff]
          %v1991 = vld [vmem:[%s1429 + $0x9a] sm:$0xff]
          %v1992 = vld [vmem:[%s1429 + $0xaa] sm:$0xff]
          %v1993 = vld [vmem:[%s1429 + $0xb2] sm:$0xff]
          %v1994 = vld [vmem:[%s1429 + $0xc2] sm:$0xff]
          %v1995 = vld [vmem:[%s1429 + $0xca] sm:$0xff]
          %v1996 = vld [vmem:[%s1429 + $0xda] sm:$0xff]
          %v1997 = vld [vmem:[%s1429 + $0xe2] sm:$0xff]
          %v1998 = vld [vmem:[%s1429 + $0xf2] sm:$0xff]
          %v1999 = vld [vmem:[%s1429 + $0xfa] sm:$0xff]
          %v2000 = vld [vmem:[%s1429 + $0x10a] sm:$0xff]
          %v2001 = vld [vmem:[%s1429 + $0x112] sm:$0xff]
          %v2002 = vld [vmem:[%s1429 + $0x122] sm:$0xff]
          %v2003 = vld [vmem:[%s1429 + $0x12a] sm:$0xff]
          %v2004 = vld [vmem:[%s1429 + $0x13a] sm:$0xff]
          %v2005 = vld [vmem:[%s1429 + $0x142] sm:$0xff]
          %v2006 = vld [vmem:[%s1429 + $0x152] sm:$0xff]
          %v2007 = vld [vmem:[%s1429 + $0x15a] sm:$0xff]
          %v2008 = vld [vmem:[%s1429 + $0x16a] sm:$0xff]
          %v2009 = vld [vmem:[%s1429 + $0x172] sm:$0xff]
          %v2010 = vpack.c.bf16 %v1979, %v1978
          %v2011 = vpack.c.bf16 %v1981, %v1980
          %v2012 = vpack.c.bf16 %v1983, %v1982
          %v2013 = vpack.c.bf16 %v1985, %v1984
          %v2014 = vpack.c.bf16 %v1987, %v1986
          %v2015 = vpack.c.bf16 %v1989, %v1988
          %v2016 = vpack.c.bf16 %v1991, %v1990
          %v2017 = vpack.c.bf16 %v1993, %v1992
          %v2018 = vpack.c.bf16 %v1995, %v1994
          %v2019 = vpack.c.bf16 %v1997, %v1996
          %v2020 = vpack.c.bf16 %v1999, %v1998
          %v2021 = vpack.c.bf16 %v2001, %v2000
          %v2022 = vpack.c.bf16 %v2003, %v2002
          %v2023 = vpack.c.bf16 %v2005, %v2004
          %v2024 = vpack.c.bf16 %v2007, %v2006
          %v2025 = vpack.c.bf16 %v2009, %v2008
          %2042 = vrot.lane.b32.xlu0 %v2010, 64
          %v2043 = vpop.permute.xlu0 %2042
          %2044 = vrot.lane.b32.xlu0 %v2011, 64
          %v2045 = vpop.permute.xlu0 %2044
          %2046 = vrot.lane.b32.xlu0 %v2012, 64
          %v2047 = vpop.permute.xlu0 %2046
          %2048 = vrot.lane.b32.xlu0 %v2013, 64
          %v2049 = vpop.permute.xlu0 %2048
          %2050 = vrot.lane.b32.xlu0 %v2014, 64
          %v2051 = vpop.permute.xlu0 %2050
          %2052 = vrot.lane.b32.xlu0 %v2015, 64
          %v2053 = vpop.permute.xlu0 %2052
          %2054 = vrot.lane.b32.xlu0 %v2016, 64
          %v2055 = vpop.permute.xlu0 %2054
          %2056 = vrot.lane.b32.xlu0 %v2017, 64
          %v2057 = vpop.permute.xlu0 %2056
          %2058 = vrot.lane.b32.xlu0 %v2018, 64
          %v2059 = vpop.permute.xlu0 %2058
          %2060 = vrot.lane.b32.xlu0 %v2019, 64
          %v2061 = vpop.permute.xlu0 %2060
          %2062 = vrot.lane.b32.xlu0 %v2020, 64
          %v2063 = vpop.permute.xlu0 %2062
          %2064 = vrot.lane.b32.xlu0 %v2021, 64
          %v2065 = vpop.permute.xlu0 %2064
          %2066 = vrot.lane.b32.xlu0 %v2022, 64
          %v2067 = vpop.permute.xlu0 %2066
          %2068 = vrot.lane.b32.xlu0 %v2023, 64
          %v2069 = vpop.permute.xlu0 %2068
          %2070 = vrot.lane.b32.xlu0 %v2024, 64
          %v2071 = vpop.permute.xlu0 %2070
          %2072 = vrot.lane.b32.xlu0 %v2025, 64
          %v2073 = vpop.permute.xlu0 %2072
          %v2076 = vsel %vm346, %v1962, %v2043
          %v2080 = vsel %vm346, %v1963, %v2045
          %v2084 = vsel %vm346, %v1964, %v2047
          %v2088 = vsel %vm346, %v1965, %v2049
          %v2092 = vsel %vm346, %v1966, %v2051
          %v2096 = vsel %vm346, %v1967, %v2053
          %v2100 = vsel %vm346, %v1968, %v2055
          %v2104 = vsel %vm346, %v1969, %v2057
          %v2108 = vsel %vm346, %v1970, %v2059
          %v2112 = vsel %vm346, %v1971, %v2061
          %v2116 = vsel %vm346, %v1972, %v2063
          %v2120 = vsel %vm346, %v1973, %v2065
          %v2124 = vsel %vm346, %v1974, %v2067
          %v2128 = vsel %vm346, %v1975, %v2069
          %v2132 = vsel %vm346, %v1976, %v2071
          %v2136 = vsel %vm346, %v1977, %v2073
          %2138 = vst [vmem:[%s1689 + $0x10] sm:$0xff] %v2076
          %2139 = vst [vmem:[%s1689 + $0x38] sm:$0xff] %v2080
          %2140 = vst [vmem:[%s1689 + $0x60] sm:$0xff] %v2084
          %2141 = vst [vmem:[%s1689 + $0x88] sm:$0xff] %v2088
          %2142 = vst [vmem:[%s1689 + $0xb0] sm:$0xff] %v2092
          %2143 = vst [vmem:[%s1689 + $0xd8] sm:$0xff] %v2096
          %2144 = vst [vmem:[%s1689 + $0x100] sm:$0xff] %v2100
          %2145 = vst [vmem:[%s1689 + $0x128] sm:$0xff] %v2104
          %2146 = vst [vmem:[%s1689 + $0x150] sm:$0xff] %v2108
          %2147 = vst [vmem:[%s1689 + $0x178] sm:$0xff] %v2112
          %2148 = vst [vmem:[%s1689 + $0x1a0] sm:$0xff] %v2116
          %2149 = vst [vmem:[%s1689 + $0x1c8] sm:$0xff] %v2120
          %2150 = vst [vmem:[%s1689 + $0x1f0] sm:$0xff] %v2124
          %2151 = vst [vmem:[%s1689 + $0x218] sm:$0xff] %v2128
          %2152 = vst [vmem:[%s1689 + $0x240] sm:$0xff] %v2132
          %2153 = vst [vmem:[%s1689 + $0x268] sm:$0xff] %v2136
          %s2154 = scalar_lea.vmem [#allocation2], 48
          %v2155 = vld [vmem:[%s2154] sm:$0xff]
          %v2156 = vld [vmem:[%s2154 + $0x8] sm:$0xff]
          %v2157 = vld [vmem:[%s2154 + $0x18] sm:$0xff]
          %v2158 = vld [vmem:[%s2154 + $0x20] sm:$0xff]
          %v2159 = vld [vmem:[%s2154 + $0x30] sm:$0xff]
          %v2160 = vld [vmem:[%s2154 + $0x38] sm:$0xff]
          %v2161 = vld [vmem:[%s2154 + $0x48] sm:$0xff]
          %v2162 = vld [vmem:[%s2154 + $0x50] sm:$0xff]
          %v2163 = vld [vmem:[%s2154 + $0x60] sm:$0xff]
          %v2164 = vld [vmem:[%s2154 + $0x68] sm:$0xff]
          %v2165 = vld [vmem:[%s2154 + $0x78] sm:$0xff]
          %v2166 = vld [vmem:[%s2154 + $0x80] sm:$0xff]
          %v2167 = vld [vmem:[%s2154 + $0x90] sm:$0xff]
          %v2168 = vld [vmem:[%s2154 + $0x98] sm:$0xff]
          %v2169 = vld [vmem:[%s2154 + $0xa8] sm:$0xff]
          %v2170 = vld [vmem:[%s2154 + $0xb0] sm:$0xff]
          %v2171 = vld [vmem:[%s2154 + $0xc0] sm:$0xff]
          %v2172 = vld [vmem:[%s2154 + $0xc8] sm:$0xff]
          %v2173 = vld [vmem:[%s2154 + $0xd8] sm:$0xff]
          %v2174 = vld [vmem:[%s2154 + $0xe0] sm:$0xff]
          %v2175 = vld [vmem:[%s2154 + $0xf0] sm:$0xff]
          %v2176 = vld [vmem:[%s2154 + $0xf8] sm:$0xff]
          %v2177 = vld [vmem:[%s2154 + $0x108] sm:$0xff]
          %v2178 = vld [vmem:[%s2154 + $0x110] sm:$0xff]
          %v2179 = vld [vmem:[%s2154 + $0x120] sm:$0xff]
          %v2180 = vld [vmem:[%s2154 + $0x128] sm:$0xff]
          %v2181 = vld [vmem:[%s2154 + $0x138] sm:$0xff]
          %v2182 = vld [vmem:[%s2154 + $0x140] sm:$0xff]
          %v2183 = vld [vmem:[%s2154 + $0x150] sm:$0xff]
          %v2184 = vld [vmem:[%s2154 + $0x158] sm:$0xff]
          %v2185 = vld [vmem:[%s2154 + $0x168] sm:$0xff]
          %v2186 = vld [vmem:[%s2154 + $0x170] sm:$0xff]
          %v2187 = vpack.c.bf16 %v2156, %v2155
          %v2188 = vpack.c.bf16 %v2158, %v2157
          %v2189 = vpack.c.bf16 %v2160, %v2159
          %v2190 = vpack.c.bf16 %v2162, %v2161
          %v2191 = vpack.c.bf16 %v2164, %v2163
          %v2192 = vpack.c.bf16 %v2166, %v2165
          %v2193 = vpack.c.bf16 %v2168, %v2167
          %v2194 = vpack.c.bf16 %v2170, %v2169
          %v2195 = vpack.c.bf16 %v2172, %v2171
          %v2196 = vpack.c.bf16 %v2174, %v2173
          %v2197 = vpack.c.bf16 %v2176, %v2175
          %v2198 = vpack.c.bf16 %v2178, %v2177
          %v2199 = vpack.c.bf16 %v2180, %v2179
          %v2200 = vpack.c.bf16 %v2182, %v2181
          %v2201 = vpack.c.bf16 %v2184, %v2183
          %v2202 = vpack.c.bf16 %v2186, %v2185
          %v2203 = vld [vmem:[%s2154 + $0x1] sm:$0xff]
          %v2204 = vld [vmem:[%s2154 + $0x9] sm:$0xff]
          %v2205 = vld [vmem:[%s2154 + $0x19] sm:$0xff]
          %v2206 = vld [vmem:[%s2154 + $0x21] sm:$0xff]
          %v2207 = vld [vmem:[%s2154 + $0x31] sm:$0xff]
          %v2208 = vld [vmem:[%s2154 + $0x39] sm:$0xff]
          %v2209 = vld [vmem:[%s2154 + $0x49] sm:$0xff]
          %v2210 = vld [vmem:[%s2154 + $0x51] sm:$0xff]
          %v2211 = vld [vmem:[%s2154 + $0x61] sm:$0xff]
          %v2212 = vld [vmem:[%s2154 + $0x69] sm:$0xff]
          %v2213 = vld [vmem:[%s2154 + $0x79] sm:$0xff]
          %v2214 = vld [vmem:[%s2154 + $0x81] sm:$0xff]
          %v2215 = vld [vmem:[%s2154 + $0x91] sm:$0xff]
          %v2216 = vld [vmem:[%s2154 + $0x99] sm:$0xff]
          %v2217 = vld [vmem:[%s2154 + $0xa9] sm:$0xff]
          %v2218 = vld [vmem:[%s2154 + $0xb1] sm:$0xff]
          %v2219 = vld [vmem:[%s2154 + $0xc1] sm:$0xff]
          %v2220 = vld [vmem:[%s2154 + $0xc9] sm:$0xff]
          %v2221 = vld [vmem:[%s2154 + $0xd9] sm:$0xff]
          %v2222 = vld [vmem:[%s2154 + $0xe1] sm:$0xff]
          %v2223 = vld [vmem:[%s2154 + $0xf1] sm:$0xff]
          %v2224 = vld [vmem:[%s2154 + $0xf9] sm:$0xff]
          %v2225 = vld [vmem:[%s2154 + $0x109] sm:$0xff]
          %v2226 = vld [vmem:[%s2154 + $0x111] sm:$0xff]
          %v2227 = vld [vmem:[%s2154 + $0x121] sm:$0xff]
          %v2228 = vld [vmem:[%s2154 + $0x129] sm:$0xff]
          %v2229 = vld [vmem:[%s2154 + $0x139] sm:$0xff]
          %v2230 = vld [vmem:[%s2154 + $0x141] sm:$0xff]
          %v2231 = vld [vmem:[%s2154 + $0x151] sm:$0xff]
          %v2232 = vld [vmem:[%s2154 + $0x159] sm:$0xff]
          %v2233 = vld [vmem:[%s2154 + $0x169] sm:$0xff]
          %v2234 = vld [vmem:[%s2154 + $0x171] sm:$0xff]
          %v2235 = vpack.c.bf16 %v2204, %v2203
          %v2236 = vpack.c.bf16 %v2206, %v2205
          %v2237 = vpack.c.bf16 %v2208, %v2207
          %v2238 = vpack.c.bf16 %v2210, %v2209
          %v2239 = vpack.c.bf16 %v2212, %v2211
          %v2240 = vpack.c.bf16 %v2214, %v2213
          %v2241 = vpack.c.bf16 %v2216, %v2215
          %v2242 = vpack.c.bf16 %v2218, %v2217
          %v2243 = vpack.c.bf16 %v2220, %v2219
          %v2244 = vpack.c.bf16 %v2222, %v2221
          %v2245 = vpack.c.bf16 %v2224, %v2223
          %v2246 = vpack.c.bf16 %v2226, %v2225
          %v2247 = vpack.c.bf16 %v2228, %v2227
          %v2248 = vpack.c.bf16 %v2230, %v2229
          %v2249 = vpack.c.bf16 %v2232, %v2231
          %v2250 = vpack.c.bf16 %v2234, %v2233
          %2267 = vrot.lane.b32.xlu0 %v2235, 64
          %v2268 = vpop.permute.xlu0 %2267
          %2269 = vrot.lane.b32.xlu0 %v2236, 64
          %v2270 = vpop.permute.xlu0 %2269
          %2271 = vrot.lane.b32.xlu0 %v2237, 64
          %v2272 = vpop.permute.xlu0 %2271
          %2273 = vrot.lane.b32.xlu0 %v2238, 64
          %v2274 = vpop.permute.xlu0 %2273
          %2275 = vrot.lane.b32.xlu0 %v2239, 64
          %v2276 = vpop.permute.xlu0 %2275
          %2277 = vrot.lane.b32.xlu0 %v2240, 64
          %v2278 = vpop.permute.xlu0 %2277
          %2279 = vrot.lane.b32.xlu0 %v2241, 64
          %v2280 = vpop.permute.xlu0 %2279
          %2281 = vrot.lane.b32.xlu0 %v2242, 64
          %v2282 = vpop.permute.xlu0 %2281
          %2283 = vrot.lane.b32.xlu0 %v2243, 64
          %v2284 = vpop.permute.xlu0 %2283
          %2285 = vrot.lane.b32.xlu0 %v2244, 64
          %v2286 = vpop.permute.xlu0 %2285
          %2287 = vrot.lane.b32.xlu0 %v2245, 64
          %v2288 = vpop.permute.xlu0 %2287
          %2289 = vrot.lane.b32.xlu0 %v2246, 64
          %v2290 = vpop.permute.xlu0 %2289
          %2291 = vrot.lane.b32.xlu0 %v2247, 64
          %v2292 = vpop.permute.xlu0 %2291
          %2293 = vrot.lane.b32.xlu0 %v2248, 64
          %v2294 = vpop.permute.xlu0 %2293
          %2295 = vrot.lane.b32.xlu0 %v2249, 64
          %v2296 = vpop.permute.xlu0 %2295
          %2297 = vrot.lane.b32.xlu0 %v2250, 64
          %v2298 = vpop.permute.xlu0 %2297
          %v2301 = vsel %vm346, %v2187, %v2268
          %v2305 = vsel %vm346, %v2188, %v2270
          %v2309 = vsel %vm346, %v2189, %v2272
          %v2313 = vsel %vm346, %v2190, %v2274
          %v2317 = vsel %vm346, %v2191, %v2276
          %v2321 = vsel %vm346, %v2192, %v2278
          %v2325 = vsel %vm346, %v2193, %v2280
          %v2329 = vsel %vm346, %v2194, %v2282
          %v2333 = vsel %vm346, %v2195, %v2284
          %v2337 = vsel %vm346, %v2196, %v2286
          %v2341 = vsel %vm346, %v2197, %v2288
          %v2345 = vsel %vm346, %v2198, %v2290
          %v2349 = vsel %vm346, %v2199, %v2292
          %v2353 = vsel %vm346, %v2200, %v2294
          %v2357 = vsel %vm346, %v2201, %v2296
          %v2361 = vsel %vm346, %v2202, %v2298
          %2363 = vst [vmem:[%s1689 + $0x18] sm:$0xff] %v2301
          %2364 = vst [vmem:[%s1689 + $0x40] sm:$0xff] %v2305
          %2365 = vst [vmem:[%s1689 + $0x68] sm:$0xff] %v2309
          %2366 = vst [vmem:[%s1689 + $0x90] sm:$0xff] %v2313
          %2367 = vst [vmem:[%s1689 + $0xb8] sm:$0xff] %v2317
          %2368 = vst [vmem:[%s1689 + $0xe0] sm:$0xff] %v2321
          %2369 = vst [vmem:[%s1689 + $0x108] sm:$0xff] %v2325
          %2370 = vst [vmem:[%s1689 + $0x130] sm:$0xff] %v2329
          %2371 = vst [vmem:[%s1689 + $0x158] sm:$0xff] %v2333
          %2372 = vst [vmem:[%s1689 + $0x180] sm:$0xff] %v2337
          %2373 = vst [vmem:[%s1689 + $0x1a8] sm:$0xff] %v2341
          %2374 = vst [vmem:[%s1689 + $0x1d0] sm:$0xff] %v2345
          %2375 = vst [vmem:[%s1689 + $0x1f8] sm:$0xff] %v2349
          %2376 = vst [vmem:[%s1689 + $0x220] sm:$0xff] %v2353
          %2377 = vst [vmem:[%s1689 + $0x248] sm:$0xff] %v2357
          %2378 = vst [vmem:[%s1689 + $0x270] sm:$0xff] %v2361
          %v2379 = vld [vmem:[%s2154 + $0x2] sm:$0xff]
          %v2380 = vld [vmem:[%s2154 + $0xa] sm:$0xff]
          %v2381 = vld [vmem:[%s2154 + $0x1a] sm:$0xff]
          %v2382 = vld [vmem:[%s2154 + $0x22] sm:$0xff]
          %v2383 = vld [vmem:[%s2154 + $0x32] sm:$0xff]
          %v2384 = vld [vmem:[%s2154 + $0x3a] sm:$0xff]
          %v2385 = vld [vmem:[%s2154 + $0x4a] sm:$0xff]
          %v2386 = vld [vmem:[%s2154 + $0x52] sm:$0xff]
          %v2387 = vld [vmem:[%s2154 + $0x62] sm:$0xff]
          %v2388 = vld [vmem:[%s2154 + $0x6a] sm:$0xff]
          %v2389 = vld [vmem:[%s2154 + $0x7a] sm:$0xff]
          %v2390 = vld [vmem:[%s2154 + $0x82] sm:$0xff]
          %v2391 = vld [vmem:[%s2154 + $0x92] sm:$0xff]
          %v2392 = vld [vmem:[%s2154 + $0x9a] sm:$0xff]
          %v2393 = vld [vmem:[%s2154 + $0xaa] sm:$0xff]
          %v2394 = vld [vmem:[%s2154 + $0xb2] sm:$0xff]
          %v2395 = vld [vmem:[%s2154 + $0xc2] sm:$0xff]
          %v2396 = vld [vmem:[%s2154 + $0xca] sm:$0xff]
          %v2397 = vld [vmem:[%s2154 + $0xda] sm:$0xff]
          %v2398 = vld [vmem:[%s2154 + $0xe2] sm:$0xff]
          %v2399 = vld [vmem:[%s2154 + $0xf2] sm:$0xff]
          %v2400 = vld [vmem:[%s2154 + $0xfa] sm:$0xff]
          %v2401 = vld [vmem:[%s2154 + $0x10a] sm:$0xff]
          %v2402 = vld [vmem:[%s2154 + $0x112] sm:$0xff]
          %v2403 = vld [vmem:[%s2154 + $0x122] sm:$0xff]
          %v2404 = vld [vmem:[%s2154 + $0x12a] sm:$0xff]
          %v2405 = vld [vmem:[%s2154 + $0x13a] sm:$0xff]
          %v2406 = vld [vmem:[%s2154 + $0x142] sm:$0xff]
          %v2407 = vld [vmem:[%s2154 + $0x152] sm:$0xff]
          %v2408 = vld [vmem:[%s2154 + $0x15a] sm:$0xff]
          %v2409 = vld [vmem:[%s2154 + $0x16a] sm:$0xff]
          %v2410 = vld [vmem:[%s2154 + $0x172] sm:$0xff]
          %v2411 = vpack.c.bf16 %v2380, %v2379
          %v2412 = vpack.c.bf16 %v2382, %v2381
          %v2413 = vpack.c.bf16 %v2384, %v2383
          %v2414 = vpack.c.bf16 %v2386, %v2385
          %v2415 = vpack.c.bf16 %v2388, %v2387
          %v2416 = vpack.c.bf16 %v2390, %v2389
          %v2417 = vpack.c.bf16 %v2392, %v2391
          %v2418 = vpack.c.bf16 %v2394, %v2393
          %v2419 = vpack.c.bf16 %v2396, %v2395
          %v2420 = vpack.c.bf16 %v2398, %v2397
          %v2421 = vpack.c.bf16 %v2400, %v2399
          %v2422 = vpack.c.bf16 %v2402, %v2401
          %v2423 = vpack.c.bf16 %v2404, %v2403
          %v2424 = vpack.c.bf16 %v2406, %v2405
          %v2425 = vpack.c.bf16 %v2408, %v2407
          %v2426 = vpack.c.bf16 %v2410, %v2409
          %2427 = vst.msk [vmem:[%s1689 + $0x20] sm:$0xff] %vm346, %v2411
          %2428 = vst.msk [vmem:[%s1689 + $0x48] sm:$0xff] %vm346, %v2412
          %2429 = vst.msk [vmem:[%s1689 + $0x70] sm:$0xff] %vm346, %v2413
          %2430 = vst.msk [vmem:[%s1689 + $0x98] sm:$0xff] %vm346, %v2414
          %2431 = vst.msk [vmem:[%s1689 + $0xc0] sm:$0xff] %vm346, %v2415
          %2432 = vst.msk [vmem:[%s1689 + $0xe8] sm:$0xff] %vm346, %v2416
          %2433 = vst.msk [vmem:[%s1689 + $0x110] sm:$0xff] %vm346, %v2417
          %2434 = vst.msk [vmem:[%s1689 + $0x138] sm:$0xff] %vm346, %v2418
          %2435 = vst.msk [vmem:[%s1689 + $0x160] sm:$0xff] %vm346, %v2419
          %2436 = vst.msk [vmem:[%s1689 + $0x188] sm:$0xff] %vm346, %v2420
          %2437 = vst.msk [vmem:[%s1689 + $0x1b0] sm:$0xff] %vm346, %v2421
          %2438 = vst.msk [vmem:[%s1689 + $0x1d8] sm:$0xff] %vm346, %v2422
          %2439 = vst.msk [vmem:[%s1689 + $0x200] sm:$0xff] %vm346, %v2423
          %2440 = vst.msk [vmem:[%s1689 + $0x228] sm:$0xff] %vm346, %v2424
          %2441 = vst.msk [vmem:[%s1689 + $0x250] sm:$0xff] %vm346, %v2425
          %2442 = vst.msk [vmem:[%s1689 + $0x278] sm:$0xff] %vm346, %v2426
        $region61: #{_bottom_bridge_3d.1} parent=55 // loop_footer
          %s605 = sadd.s32 1, %s601
        $region62: #{_bottom_bridge_3d.1} parent=55 // loop_footer_branch
          %600 = sbr.rel target = $region58
        $region63: #{_bottom_bridge_3d.1} parent=55 // loop_exit
          _
        loop: start=0, step=1, limit=8
        $region64: #{_bottom_bridge_3d.1} parent=55 // loop_pre_header
          _
        $region65: #{_bottom_bridge_3d.1} parent=55 // loop_header
          %s2444 = sphi 0, %s2448
          %p2445 = scmp.ge.s32.totalorder %s2444, 8
        $region66: #{_bottom_bridge_3d.1} parent=55 // loop_header_branch
          %2447 = sbr.rel (%p2445) target = $region70
        $region67: #{_bottom_bridge_3d.1} parent=55 // loop_body
          %s2449 = smul.u32 %s2444, 256
          %s2450 = smul.u32 %s2444, 80
          %s2451 = smul.addr %s2450, 8
          %s2452 = scalar_lea.vmem [#allocation3], %s2451
          %v2453 = vld [vmem:[%s2452] sm:$0xff]
          %v2454 = vld [vmem:[%s2452 + $0x8] sm:$0xff]
          %v2455 = vld [vmem:[%s2452 + $0x10] sm:$0xff]
          %v2456 = vld [vmem:[%s2452 + $0x18] sm:$0xff]
          %v2457 = vld [vmem:[%s2452 + $0x20] sm:$0xff]
          %v2458 = vld [vmem:[%s2452 + $0x28] sm:$0xff]
          %v2459 = vld [vmem:[%s2452 + $0x30] sm:$0xff]
          %v2460 = vld [vmem:[%s2452 + $0x38] sm:$0xff]
          %v2461 = vld [vmem:[%s2452 + $0x40] sm:$0xff]
          %v2462 = vld [vmem:[%s2452 + $0x48] sm:$0xff]
          %v2463 = vld [vmem:[%s2452 + $0x50] sm:$0xff]
          %v2464 = vld [vmem:[%s2452 + $0x58] sm:$0xff]
          %v2465 = vld [vmem:[%s2452 + $0x60] sm:$0xff]
          %v2466 = vld [vmem:[%s2452 + $0x68] sm:$0xff]
          %v2467 = vld [vmem:[%s2452 + $0x70] sm:$0xff]
          %v2468 = vld [vmem:[%s2452 + $0x78] sm:$0xff]
          %v2469 = vld [vmem:[%s2452 + $0x80] sm:$0xff]
          %v2470 = vld [vmem:[%s2452 + $0x88] sm:$0xff]
          %v2471 = vld [vmem:[%s2452 + $0x90] sm:$0xff]
          %v2472 = vld [vmem:[%s2452 + $0x98] sm:$0xff]
          %v2473 = vld [vmem:[%s2452 + $0xa0] sm:$0xff]
          %v2474 = vld [vmem:[%s2452 + $0xa8] sm:$0xff]
          %v2475 = vld [vmem:[%s2452 + $0xb0] sm:$0xff]
          %v2476 = vld [vmem:[%s2452 + $0xb8] sm:$0xff]
          %v2477 = vld [vmem:[%s2452 + $0xc0] sm:$0xff]
          %v2478 = vld [vmem:[%s2452 + $0xc8] sm:$0xff]
          %v2479 = vld [vmem:[%s2452 + $0xd0] sm:$0xff]
          %v2480 = vld [vmem:[%s2452 + $0xd8] sm:$0xff]
          %v2481 = vld [vmem:[%s2452 + $0xe0] sm:$0xff]
          %v2482 = vld [vmem:[%s2452 + $0xe8] sm:$0xff]
          %v2483 = vld [vmem:[%s2452 + $0xf0] sm:$0xff]
          %v2484 = vld [vmem:[%s2452 + $0xf8] sm:$0xff]
          %v2485 = vld [vmem:[%s2452 + $0x100] sm:$0xff]
          %v2486 = vld [vmem:[%s2452 + $0x108] sm:$0xff]
          %v2487 = vld [vmem:[%s2452 + $0x110] sm:$0xff]
          %v2488 = vld [vmem:[%s2452 + $0x118] sm:$0xff]
          %v2489 = vld [vmem:[%s2452 + $0x120] sm:$0xff]
          %v2490 = vld [vmem:[%s2452 + $0x128] sm:$0xff]
          %v2491 = vld [vmem:[%s2452 + $0x130] sm:$0xff]
          %v2492 = vld [vmem:[%s2452 + $0x138] sm:$0xff]
          %v2493 = vld [vmem:[%s2452 + $0x140] sm:$0xff]
          %v2494 = vld [vmem:[%s2452 + $0x148] sm:$0xff]
          %v2495 = vld [vmem:[%s2452 + $0x150] sm:$0xff]
          %v2496 = vld [vmem:[%s2452 + $0x158] sm:$0xff]
          %v2497 = vld [vmem:[%s2452 + $0x160] sm:$0xff]
          %v2498 = vld [vmem:[%s2452 + $0x168] sm:$0xff]
          %v2499 = vld [vmem:[%s2452 + $0x170] sm:$0xff]
          %v2500 = vld [vmem:[%s2452 + $0x178] sm:$0xff]
          %v2501 = vld [vmem:[%s2452 + $0x180] sm:$0xff]
          %v2502 = vld [vmem:[%s2452 + $0x188] sm:$0xff]
          %v2503 = vld [vmem:[%s2452 + $0x190] sm:$0xff]
          %v2504 = vld [vmem:[%s2452 + $0x198] sm:$0xff]
          %v2505 = vld [vmem:[%s2452 + $0x1a0] sm:$0xff]
          %v2506 = vld [vmem:[%s2452 + $0x1a8] sm:$0xff]
          %v2507 = vld [vmem:[%s2452 + $0x1b0] sm:$0xff]
          %v2508 = vld [vmem:[%s2452 + $0x1b8] sm:$0xff]
          %v2509 = vld [vmem:[%s2452 + $0x1c0] sm:$0xff]
          %v2510 = vld [vmem:[%s2452 + $0x1c8] sm:$0xff]
          %v2511 = vld [vmem:[%s2452 + $0x1d0] sm:$0xff]
          %v2512 = vld [vmem:[%s2452 + $0x1d8] sm:$0xff]
          %v2513 = vld [vmem:[%s2452 + $0x1e0] sm:$0xff]
          %v2514 = vld [vmem:[%s2452 + $0x1e8] sm:$0xff]
          %v2515 = vld [vmem:[%s2452 + $0x1f0] sm:$0xff]
          %v2516 = vld [vmem:[%s2452 + $0x1f8] sm:$0xff]
          %v2517 = vld [vmem:[%s2452 + $0x200] sm:$0xff]
          %v2518 = vld [vmem:[%s2452 + $0x208] sm:$0xff]
          %v2519 = vld [vmem:[%s2452 + $0x210] sm:$0xff]
          %v2520 = vld [vmem:[%s2452 + $0x218] sm:$0xff]
          %v2521 = vld [vmem:[%s2452 + $0x220] sm:$0xff]
          %v2522 = vld [vmem:[%s2452 + $0x228] sm:$0xff]
          %v2523 = vld [vmem:[%s2452 + $0x230] sm:$0xff]
          %v2524 = vld [vmem:[%s2452 + $0x238] sm:$0xff]
          %v2525 = vld [vmem:[%s2452 + $0x240] sm:$0xff]
          %v2526 = vld [vmem:[%s2452 + $0x248] sm:$0xff]
          %v2527 = vld [vmem:[%s2452 + $0x250] sm:$0xff]
          %v2528 = vld [vmem:[%s2452 + $0x258] sm:$0xff]
          %v2529 = vld [vmem:[%s2452 + $0x260] sm:$0xff]
          %v2530 = vld [vmem:[%s2452 + $0x268] sm:$0xff]
          %v2531 = vld [vmem:[%s2452 + $0x270] sm:$0xff]
          %v2532 = vld [vmem:[%s2452 + $0x278] sm:$0xff]
          %v2533 = vld [vmem:[%s7] sm:$0xf]
          %v2534 = vld [vmem:[%s7 + $0x4] sm:$0xf]
          %v2535 = vld [vmem:[%s7 + $0x8] sm:$0xf]
          %v2536 = vld [vmem:[%s7 + $0xc] sm:$0xf]
          %v2537 = vld [vmem:[%s7 + $0x10] sm:$0xf]
          %v2538 = vld [vmem:[%s7 + $0x14] sm:$0xf]
          %v2539 = vld [vmem:[%s7 + $0x18] sm:$0xf]
          %v2540 = vld [vmem:[%s7 + $0x1c] sm:$0xf]
          %v2541 = vld [vmem:[%s7 + $0x20] sm:$0xf]
          %v2542 = vld [vmem:[%s7 + $0x24] sm:$0xf]
          %v2543 = vld [vmem:[%s7 + $0x28] sm:$0xf]
          %v2544 = vld [vmem:[%s7 + $0x2c] sm:$0xf]
          %v2545 = vld [vmem:[%s7 + $0x30] sm:$0xf]
          %v2546 = vld [vmem:[%s7 + $0x34] sm:$0xf]
          %v2547 = vld [vmem:[%s7 + $0x38] sm:$0xf]
          %v2548 = vld [vmem:[%s7 + $0x3c] sm:$0xf]
          %v2549 = vld [vmem:[%s7 + $0x40] sm:$0xf]
          %v2550 = vld [vmem:[%s7 + $0x44] sm:$0xf]
          %v2551 = vld [vmem:[%s7 + $0x48] sm:$0xf]
          %v2552 = vld [vmem:[%s7 + $0x4c] sm:$0xf]
          %v2553 = vld [vmem:[%s7 + $0x50] sm:$0xf]
          %v2554 = vld [vmem:[%s7 + $0x54] sm:$0xf]
          %v2555 = vld [vmem:[%s7 + $0x58] sm:$0xf]
          %v2556 = vld [vmem:[%s7 + $0x5c] sm:$0xf]
          %v2557 = vld [vmem:[%s7 + $0x60] sm:$0xf]
          %v2558 = vld [vmem:[%s7 + $0x64] sm:$0xf]
          %v2559 = vld [vmem:[%s7 + $0x68] sm:$0xf]
          %v2560 = vld [vmem:[%s7 + $0x6c] sm:$0xf]
          %v2561 = vld [vmem:[%s7 + $0x70] sm:$0xf]
          %v2562 = vld [vmem:[%s7 + $0x74] sm:$0xf]
          %v2563 = vld [vmem:[%s7 + $0x78] sm:$0xf]
          %v2564 = vld [vmem:[%s7 + $0x7c] sm:$0xf]
          %v2565 = vld [vmem:[%s7 + $0x80] sm:$0xf]
          %v2566 = vld [vmem:[%s7 + $0x84] sm:$0xf]
          %v2567 = vld [vmem:[%s7 + $0x88] sm:$0xf]
          %v2568 = vld [vmem:[%s7 + $0x8c] sm:$0xf]
          %v2569 = vld [vmem:[%s7 + $0x90] sm:$0xf]
          %v2570 = vld [vmem:[%s7 + $0x94] sm:$0xf]
          %v2571 = vld [vmem:[%s7 + $0x98] sm:$0xf]
          %v2572 = vld [vmem:[%s7 + $0x9c] sm:$0xf]
          %v2573 = vld [vmem:[%s7 + $0xa0] sm:$0xf]
          %v2574 = vld [vmem:[%s7 + $0xa4] sm:$0xf]
          %v2575 = vld [vmem:[%s7 + $0xa8] sm:$0xf]
          %v2576 = vld [vmem:[%s7 + $0xac] sm:$0xf]
          %v2577 = vld [vmem:[%s7 + $0xb0] sm:$0xf]
          %v2578 = vld [vmem:[%s7 + $0xb4] sm:$0xf]
          %v2579 = vld [vmem:[%s7 + $0xb8] sm:$0xf]
          %v2580 = vld [vmem:[%s7 + $0xbc] sm:$0xf]
          %v2581 = vld [vmem:[%s7 + $0xc0] sm:$0xf]
          %v2582 = vld [vmem:[%s7 + $0xc4] sm:$0xf]
          %v2583 = vld [vmem:[%s7 + $0xc8] sm:$0xf]
          %v2584 = vld [vmem:[%s7 + $0xcc] sm:$0xf]
          %v2585 = vld [vmem:[%s7 + $0xd0] sm:$0xf]
          %v2586 = vld [vmem:[%s7 + $0xd4] sm:$0xf]
          %v2587 = vld [vmem:[%s7 + $0xd8] sm:$0xf]
          %v2588 = vld [vmem:[%s7 + $0xdc] sm:$0xf]
          %v2589 = vld [vmem:[%s7 + $0xe0] sm:$0xf]
          %v2590 = vld [vmem:[%s7 + $0xe4] sm:$0xf]
          %v2591 = vld [vmem:[%s7 + $0xe8] sm:$0xf]
          %v2592 = vld [vmem:[%s7 + $0xec] sm:$0xf]
          %v2593 = vld [vmem:[%s7 + $0xf0] sm:$0xf]
          %v2594 = vld [vmem:[%s7 + $0xf4] sm:$0xf]
          %v2595 = vld [vmem:[%s7 + $0xf8] sm:$0xf]
          %v2596 = vld [vmem:[%s7 + $0xfc] sm:$0xf]
          %v2597 = vld [vmem:[%s7 + $0x100] sm:$0xf]
          %v2598 = vld [vmem:[%s7 + $0x104] sm:$0xf]
          %v2599 = vld [vmem:[%s7 + $0x108] sm:$0xf]
          %v2600 = vld [vmem:[%s7 + $0x10c] sm:$0xf]
          %v2601 = vld [vmem:[%s7 + $0x110] sm:$0xf]
          %v2602 = vld [vmem:[%s7 + $0x114] sm:$0xf]
          %v2603 = vld [vmem:[%s7 + $0x118] sm:$0xf]
          %v2604 = vld [vmem:[%s7 + $0x11c] sm:$0xf]
          %s2605 = sadd.s32 %s2444, 1
          %s2606 = smul.u32 %s2605, 80
          %s2607 = smul.addr %s2606, 8
          %s2608 = scalar_lea.vmem [#allocation3], %s2607
          %v2609 = vld [vmem:[%s2608] sm:$0xff]
          %v2610 = vld [vmem:[%s2608 + $0x8] sm:$0xff]
          %v2611 = vld [vmem:[%s2608 + $0x10] sm:$0xff]
          %v2612 = vld [vmem:[%s2608 + $0x18] sm:$0xff]
          %v2613 = vld [vmem:[%s2608 + $0x20] sm:$0xff]
          %v2614 = vld [vmem:[%s2608 + $0x28] sm:$0xff]
          %v2615 = vld [vmem:[%s2608 + $0x30] sm:$0xff]
          %v2616 = vld [vmem:[%s2608 + $0x38] sm:$0xff]
          %v2617 = vld [vmem:[%s2608 + $0x40] sm:$0xff]
          %v2618 = vld [vmem:[%s2608 + $0x48] sm:$0xff]
          %v2619 = vld [vmem:[%s2608 + $0x50] sm:$0xff]
          %v2620 = vld [vmem:[%s2608 + $0x58] sm:$0xff]
          %v2621 = vld [vmem:[%s2608 + $0x60] sm:$0xff]
          %v2622 = vld [vmem:[%s2608 + $0x68] sm:$0xff]
          %v2623 = vld [vmem:[%s2608 + $0x70] sm:$0xff]
          %v2624 = vld [vmem:[%s2608 + $0x78] sm:$0xff]
          %v2625 = vld [vmem:[%s2608 + $0x80] sm:$0xff]
          %v2626 = vld [vmem:[%s2608 + $0x88] sm:$0xff]
          %v2627 = vld [vmem:[%s2608 + $0x90] sm:$0xff]
          %v2628 = vld [vmem:[%s2608 + $0x98] sm:$0xff]
          %v2629 = vld [vmem:[%s2608 + $0xa0] sm:$0xff]
          %v2630 = vld [vmem:[%s2608 + $0xa8] sm:$0xff]
          %v2631 = vld [vmem:[%s2608 + $0xb0] sm:$0xff]
          %v2632 = vld [vmem:[%s2608 + $0xb8] sm:$0xff]
          %v2633 = vld [vmem:[%s2608 + $0xc0] sm:$0xff]
          %v2634 = vld [vmem:[%s2608 + $0xc8] sm:$0xff]
          %v2635 = vld [vmem:[%s2608 + $0xd0] sm:$0xff]
          %v2636 = vld [vmem:[%s2608 + $0xd8] sm:$0xff]
          %v2637 = vld [vmem:[%s2608 + $0xe0] sm:$0xff]
          %v2638 = vld [vmem:[%s2608 + $0xe8] sm:$0xff]
          %v2639 = vld [vmem:[%s2608 + $0xf0] sm:$0xff]
          %v2640 = vld [vmem:[%s2608 + $0xf8] sm:$0xff]
          %v2641 = vld [vmem:[%s2608 + $0x100] sm:$0xff]
          %v2642 = vld [vmem:[%s2608 + $0x108] sm:$0xff]
          %v2643 = vld [vmem:[%s2608 + $0x110] sm:$0xff]
          %v2644 = vld [vmem:[%s2608 + $0x118] sm:$0xff]
          %v2645 = vld [vmem:[%s2608 + $0x120] sm:$0xff]
          %v2646 = vld [vmem:[%s2608 + $0x128] sm:$0xff]
          %v2647 = vld [vmem:[%s2608 + $0x130] sm:$0xff]
          %v2648 = vld [vmem:[%s2608 + $0x138] sm:$0xff]
          %v2649 = vld [vmem:[%s2608 + $0x140] sm:$0xff]
          %v2650 = vld [vmem:[%s2608 + $0x148] sm:$0xff]
          %v2651 = vld [vmem:[%s2608 + $0x150] sm:$0xff]
          %v2652 = vld [vmem:[%s2608 + $0x158] sm:$0xff]
          %v2653 = vld [vmem:[%s2608 + $0x160] sm:$0xff]
          %v2654 = vld [vmem:[%s2608 + $0x168] sm:$0xff]
          %v2655 = vld [vmem:[%s2608 + $0x170] sm:$0xff]
          %v2656 = vld [vmem:[%s2608 + $0x178] sm:$0xff]
          %v2657 = vld [vmem:[%s2608 + $0x180] sm:$0xff]
          %v2658 = vld [vmem:[%s2608 + $0x188] sm:$0xff]
          %v2659 = vld [vmem:[%s2608 + $0x190] sm:$0xff]
          %v2660 = vld [vmem:[%s2608 + $0x198] sm:$0xff]
          %v2661 = vld [vmem:[%s2608 + $0x1a0] sm:$0xff]
          %v2662 = vld [vmem:[%s2608 + $0x1a8] sm:$0xff]
          %v2663 = vld [vmem:[%s2608 + $0x1b0] sm:$0xff]
          %v2664 = vld [vmem:[%s2608 + $0x1b8] sm:$0xff]
          %v2665 = vld [vmem:[%s2608 + $0x1c0] sm:$0xff]
          %v2666 = vld [vmem:[%s2608 + $0x1c8] sm:$0xff]
          %v2667 = vld [vmem:[%s2608 + $0x1d0] sm:$0xff]
          %v2668 = vld [vmem:[%s2608 + $0x1d8] sm:$0xff]
          %v2669 = vld [vmem:[%s2608 + $0x1e0] sm:$0xff]
          %v2670 = vld [vmem:[%s2608 + $0x1e8] sm:$0xff]
          %v2671 = vld [vmem:[%s2608 + $0x1f0] sm:$0xff]
          %v2672 = vld [vmem:[%s2608 + $0x1f8] sm:$0xff]
          %v2673 = vld [vmem:[%s2608 + $0x200] sm:$0xff]
          %v2674 = vld [vmem:[%s2608 + $0x208] sm:$0xff]
          %v2675 = vld [vmem:[%s2608 + $0x210] sm:$0xff]
          %v2676 = vld [vmem:[%s2608 + $0x218] sm:$0xff]
          %v2677 = vld [vmem:[%s2608 + $0x220] sm:$0xff]
          %v2678 = vld [vmem:[%s2608 + $0x228] sm:$0xff]
          %v2679 = vld [vmem:[%s2608 + $0x230] sm:$0xff]
          %v2680 = vld [vmem:[%s2608 + $0x238] sm:$0xff]
          %v2681 = vld [vmem:[%s2608 + $0x240] sm:$0xff]
          %v2682 = vld [vmem:[%s2608 + $0x248] sm:$0xff]
          %v2683 = vld [vmem:[%s2608 + $0x250] sm:$0xff]
          %v2684 = vld [vmem:[%s2608 + $0x258] sm:$0xff]
          %v2685 = vld [vmem:[%s2608 + $0x260] sm:$0xff]
          %v2686 = vld [vmem:[%s2608 + $0x268] sm:$0xff]
          %v2687 = vld [vmem:[%s2608 + $0x270] sm:$0xff]
          %v2688 = vld [vmem:[%s2608 + $0x278] sm:$0xff]
          %s2689 = scalar_lea.vmem %s7, 288
          %v2690 = vld [vmem:[%s2689] sm:$0xf]
          %v2691 = vld [vmem:[%s2689 + $0x4] sm:$0xf]
          %v2692 = vld [vmem:[%s2689 + $0x8] sm:$0xf]
          %v2693 = vld [vmem:[%s2689 + $0xc] sm:$0xf]
          %v2694 = vld [vmem:[%s2689 + $0x10] sm:$0xf]
          %v2695 = vld [vmem:[%s2689 + $0x14] sm:$0xf]
          %v2696 = vld [vmem:[%s2689 + $0x18] sm:$0xf]
          %v2697 = vld [vmem:[%s2689 + $0x1c] sm:$0xf]
          %v2698 = vld [vmem:[%s2689 + $0x20] sm:$0xf]
          %v2699 = vld [vmem:[%s2689 + $0x24] sm:$0xf]
          %v2700 = vld [vmem:[%s2689 + $0x28] sm:$0xf]
          %v2701 = vld [vmem:[%s2689 + $0x2c] sm:$0xf]
          %v2702 = vld [vmem:[%s2689 + $0x30] sm:$0xf]
          %v2703 = vld [vmem:[%s2689 + $0x34] sm:$0xf]
          %v2704 = vld [vmem:[%s2689 + $0x38] sm:$0xf]
          %v2705 = vld [vmem:[%s2689 + $0x3c] sm:$0xf]
          %v2706 = vld [vmem:[%s2689 + $0x40] sm:$0xf]
          %v2707 = vld [vmem:[%s2689 + $0x44] sm:$0xf]
          %v2708 = vld [vmem:[%s2689 + $0x48] sm:$0xf]
          %v2709 = vld [vmem:[%s2689 + $0x4c] sm:$0xf]
          %v2710 = vld [vmem:[%s2689 + $0x50] sm:$0xf]
          %v2711 = vld [vmem:[%s2689 + $0x54] sm:$0xf]
          %v2712 = vld [vmem:[%s2689 + $0x58] sm:$0xf]
          %v2713 = vld [vmem:[%s2689 + $0x5c] sm:$0xf]
          %v2714 = vld [vmem:[%s2689 + $0x60] sm:$0xf]
          %v2715 = vld [vmem:[%s2689 + $0x64] sm:$0xf]
          %v2716 = vld [vmem:[%s2689 + $0x68] sm:$0xf]
          %v2717 = vld [vmem:[%s2689 + $0x6c] sm:$0xf]
          %v2718 = vld [vmem:[%s2689 + $0x70] sm:$0xf]
          %v2719 = vld [vmem:[%s2689 + $0x74] sm:$0xf]
          %v2720 = vld [vmem:[%s2689 + $0x78] sm:$0xf]
          %v2721 = vld [vmem:[%s2689 + $0x7c] sm:$0xf]
          %v2722 = vld [vmem:[%s2689 + $0x80] sm:$0xf]
          %v2723 = vld [vmem:[%s2689 + $0x84] sm:$0xf]
          %v2724 = vld [vmem:[%s2689 + $0x88] sm:$0xf]
          %v2725 = vld [vmem:[%s2689 + $0x8c] sm:$0xf]
          %v2726 = vld [vmem:[%s2689 + $0x90] sm:$0xf]
          %v2727 = vld [vmem:[%s2689 + $0x94] sm:$0xf]
          %v2728 = vld [vmem:[%s2689 + $0x98] sm:$0xf]
          %v2729 = vld [vmem:[%s2689 + $0x9c] sm:$0xf]
          %v2730 = vld [vmem:[%s2689 + $0xa0] sm:$0xf]
          %v2731 = vld [vmem:[%s2689 + $0xa4] sm:$0xf]
          %v2732 = vld [vmem:[%s2689 + $0xa8] sm:$0xf]
          %v2733 = vld [vmem:[%s2689 + $0xac] sm:$0xf]
          %v2734 = vld [vmem:[%s2689 + $0xb0] sm:$0xf]
          %v2735 = vld [vmem:[%s2689 + $0xb4] sm:$0xf]
          %v2736 = vld [vmem:[%s2689 + $0xb8] sm:$0xf]
          %v2737 = vld [vmem:[%s2689 + $0xbc] sm:$0xf]
          %v2738 = vld [vmem:[%s2689 + $0xc0] sm:$0xf]
          %v2739 = vld [vmem:[%s2689 + $0xc4] sm:$0xf]
          %v2740 = vld [vmem:[%s2689 + $0xc8] sm:$0xf]
          %v2741 = vld [vmem:[%s2689 + $0xcc] sm:$0xf]
          %v2742 = vld [vmem:[%s2689 + $0xd0] sm:$0xf]
          %v2743 = vld [vmem:[%s2689 + $0xd4] sm:$0xf]
          %v2744 = vld [vmem:[%s2689 + $0xd8] sm:$0xf]
          %v2745 = vld [vmem:[%s2689 + $0xdc] sm:$0xf]
          %v2746 = vld [vmem:[%s2689 + $0xe0] sm:$0xf]
          %v2747 = vld [vmem:[%s2689 + $0xe4] sm:$0xf]
          %v2748 = vld [vmem:[%s2689 + $0xe8] sm:$0xf]
          %v2749 = vld [vmem:[%s2689 + $0xec] sm:$0xf]
          %v2750 = vld [vmem:[%s2689 + $0xf0] sm:$0xf]
          %v2751 = vld [vmem:[%s2689 + $0xf4] sm:$0xf]
          %v2752 = vld [vmem:[%s2689 + $0xf8] sm:$0xf]
          %v2753 = vld [vmem:[%s2689 + $0xfc] sm:$0xf]
          %v2754 = vld [vmem:[%s2689 + $0x100] sm:$0xf]
          %v2755 = vld [vmem:[%s2689 + $0x104] sm:$0xf]
          %v2756 = vld [vmem:[%s2689 + $0x108] sm:$0xf]
          %v2757 = vld [vmem:[%s2689 + $0x10c] sm:$0xf]
          %v2758 = vld [vmem:[%s2689 + $0x110] sm:$0xf]
          %v2759 = vld [vmem:[%s2689 + $0x114] sm:$0xf]
          %v2760 = vld [vmem:[%s2689 + $0x118] sm:$0xf]
          %v2761 = vld [vmem:[%s2689 + $0x11c] sm:$0xf]
          %v2834 = vunpack.c.l.b16 %v2690
          %v2835 = vunpack.c.l.b16 %v2691
          %v2836 = vunpack.c.l.b16 %v2692
          %v2837 = vunpack.c.l.b16 %v2693
          %v2838 = vunpack.c.l.b16 %v2694
          %v2839 = vunpack.c.l.b16 %v2695
          %v2840 = vunpack.c.l.b16 %v2696
          %v2841 = vunpack.c.l.b16 %v2697
          %v2842 = vunpack.c.l.b16 %v2698
          %v2843 = vunpack.c.l.b16 %v2699
          %v2844 = vunpack.c.l.b16 %v2700
          %v2845 = vunpack.c.l.b16 %v2701
          %v2846 = vunpack.c.l.b16 %v2702
          %v2847 = vunpack.c.l.b16 %v2703
          %v2848 = vunpack.c.l.b16 %v2704
          %v2849 = vunpack.c.l.b16 %v2705
          %v2850 = vunpack.c.l.b16 %v2706
          %v2851 = vunpack.c.l.b16 %v2707
          %v2852 = vunpack.c.l.b16 %v2708
          %v2853 = vunpack.c.l.b16 %v2709
          %v2854 = vunpack.c.l.b16 %v2710
          %v2855 = vunpack.c.l.b16 %v2711
          %v2856 = vunpack.c.l.b16 %v2712
          %v2857 = vunpack.c.l.b16 %v2713
          %v2858 = vunpack.c.l.b16 %v2714
          %v2859 = vunpack.c.l.b16 %v2715
          %v2860 = vunpack.c.l.b16 %v2716
          %v2861 = vunpack.c.l.b16 %v2717
          %v2862 = vunpack.c.l.b16 %v2718
          %v2863 = vunpack.c.l.b16 %v2719
          %v2864 = vunpack.c.l.b16 %v2720
          %v2865 = vunpack.c.l.b16 %v2721
          %v2866 = vunpack.c.l.b16 %v2722
          %v2867 = vunpack.c.l.b16 %v2723
          %v2868 = vunpack.c.l.b16 %v2724
          %v2869 = vunpack.c.l.b16 %v2725
          %v2870 = vunpack.c.l.b16 %v2726
          %v2871 = vunpack.c.l.b16 %v2727
          %v2872 = vunpack.c.l.b16 %v2728
          %v2873 = vunpack.c.l.b16 %v2729
          %v2874 = vunpack.c.l.b16 %v2730
          %v2875 = vunpack.c.l.b16 %v2731
          %v2876 = vunpack.c.l.b16 %v2732
          %v2877 = vunpack.c.l.b16 %v2733
          %v2878 = vunpack.c.l.b16 %v2734
          %v2879 = vunpack.c.l.b16 %v2735
          %v2880 = vunpack.c.l.b16 %v2736
          %v2881 = vunpack.c.l.b16 %v2737
          %v2882 = vunpack.c.l.b16 %v2738
          %v2883 = vunpack.c.l.b16 %v2739
          %v2884 = vunpack.c.l.b16 %v2740
          %v2885 = vunpack.c.l.b16 %v2741
          %v2886 = vunpack.c.l.b16 %v2742
          %v2887 = vunpack.c.l.b16 %v2743
          %v2888 = vunpack.c.l.b16 %v2744
          %v2889 = vunpack.c.l.b16 %v2745
          %v2890 = vunpack.c.l.b16 %v2746
          %v2891 = vunpack.c.l.b16 %v2747
          %v2892 = vunpack.c.l.b16 %v2748
          %v2893 = vunpack.c.l.b16 %v2749
          %v2894 = vunpack.c.l.b16 %v2750
          %v2895 = vunpack.c.l.b16 %v2751
          %v2896 = vunpack.c.l.b16 %v2752
          %v2897 = vunpack.c.l.b16 %v2753
          %v2898 = vunpack.c.l.b16 %v2754
          %v2899 = vunpack.c.l.b16 %v2755
          %v2900 = vunpack.c.l.b16 %v2756
          %v2901 = vunpack.c.l.b16 %v2757
          %v2902 = vunpack.c.l.b16 %v2758
          %v2903 = vunpack.c.l.b16 %v2759
          %v2904 = vunpack.c.l.b16 %v2760
          %v2905 = vunpack.c.l.b16 %v2761
          %v2906 = vpack.c.b16 %v2835, %v2834
          %v2907 = vpack.c.b16 %v2837, %v2836
          %v2908 = vpack.c.b16 %v2839, %v2838
          %v2909 = vpack.c.b16 %v2841, %v2840
          %v2910 = vpack.c.b16 %v2843, %v2842
          %v2911 = vpack.c.b16 %v2845, %v2844
          %v2912 = vpack.c.b16 %v2847, %v2846
          %v2913 = vpack.c.b16 %v2849, %v2848
          %v2914 = vpack.c.b16 %v2851, %v2850
          %v2915 = vpack.c.b16 %v2853, %v2852
          %v2916 = vpack.c.b16 %v2855, %v2854
          %v2917 = vpack.c.b16 %v2857, %v2856
          %v2918 = vpack.c.b16 %v2859, %v2858
          %v2919 = vpack.c.b16 %v2861, %v2860
          %v2920 = vpack.c.b16 %v2863, %v2862
          %v2921 = vpack.c.b16 %v2865, %v2864
          %v2922 = vpack.c.b16 %v2867, %v2866
          %v2923 = vpack.c.b16 %v2869, %v2868
          %v2924 = vpack.c.b16 %v2871, %v2870
          %v2925 = vpack.c.b16 %v2873, %v2872
          %v2926 = vpack.c.b16 %v2875, %v2874
          %v2927 = vpack.c.b16 %v2877, %v2876
          %v2928 = vpack.c.b16 %v2879, %v2878
          %v2929 = vpack.c.b16 %v2881, %v2880
          %v2930 = vpack.c.b16 %v2883, %v2882
          %v2931 = vpack.c.b16 %v2885, %v2884
          %v2932 = vpack.c.b16 %v2887, %v2886
          %v2933 = vpack.c.b16 %v2889, %v2888
          %v2934 = vpack.c.b16 %v2891, %v2890
          %v2935 = vpack.c.b16 %v2893, %v2892
          %v2936 = vpack.c.b16 %v2895, %v2894
          %v2937 = vpack.c.b16 %v2897, %v2896
          %v2938 = vpack.c.b16 %v2899, %v2898
          %v2939 = vpack.c.b16 %v2901, %v2900
          %v2940 = vpack.c.b16 %v2903, %v2902
          %v2941 = vpack.c.b16 %v2905, %v2904
          %v2979 = vsel %vm346, %v2613, 0
          %v2982 = vsel %vm346, %v2618, 0
          %v2985 = vsel %vm346, %v2623, 0
          %v2988 = vsel %vm346, %v2628, 0
          %v2991 = vsel %vm346, %v2633, 0
          %v2994 = vsel %vm346, %v2638, 0
          %v2997 = vsel %vm346, %v2643, 0
          %v3000 = vsel %vm346, %v2648, 0
          %v3003 = vsel %vm346, %v2653, 0
          %v3006 = vsel %vm346, %v2658, 0
          %v3009 = vsel %vm346, %v2663, 0
          %v3012 = vsel %vm346, %v2668, 0
          %v3015 = vsel %vm346, %v2673, 0
          %v3018 = vsel %vm346, %v2678, 0
          %v3021 = vsel %vm346, %v2683, 0
          %v3024 = vsel %vm346, %v2688, 0
          %3026 = vmatprep.subr.bf16.mxu0 0
          %3027 = vmatpush1.bf16.msra.mxu0 %v2906
          %3028 = vmatprep.subr.bf16.mxu0 0
          %3029 = vmatpush1.bf16.msra.mxu0 %v2907
          %3030 = vmatprep.subr.bf16.mxu0 0
          %3031 = vmatpush1.bf16.msra.mxu0 %v2908
          %3032 = vmatprep.subr.bf16.mxu0 0
          %3033 = vmatpush1.bf16.msra.mxu0 %v2909
          %3034 = vmatprep.subr.bf16.mxu0 0
          %3035 = vmatpush1.bf16.msra.mxu0 %v2910
          %3036 = vmatprep.subr.bf16.mxu0 0
          %3037 = vmatpush1.bf16.msra.mxu0 %v2911
          %3038 = vmatprep.subr.bf16.mxu0 0
          %3039 = vmatpush1.bf16.msra.mxu0 %v2912
          %3040 = vmatprep.subr.bf16.mxu0 0
          %3041 = vmatpush1.bf16.msra.mxu0 %v2913
          %3042 = vmatprep.subr.bf16.mxu0 0
          %3043 = vmatpush1.bf16.msra.mxu0 %v2914
          %3044 = vmatprep.subr.bf16.mxu0 0
          %3045 = vmatpush1.bf16.msra.mxu0 %v2915
          %3046 = vmatprep.subr.bf16.mxu0 0
          %3047 = vmatpush1.bf16.msra.mxu0 %v2916
          %3048 = vmatprep.subr.bf16.mxu0 0
          %3049 = vmatpush1.bf16.msra.mxu0 %v2917
          %3050 = vmatprep.subr.bf16.mxu0 0
          %3051 = vmatpush1.bf16.msra.mxu0 %v2918
          %3052 = vmatprep.subr.bf16.mxu0 0
          %3053 = vmatpush1.bf16.msra.mxu0 %v2919
          %3054 = vmatprep.subr.bf16.mxu0 0
          %3055 = vmatpush1.bf16.msra.mxu0 %v2920
          %3056 = vmatprep.subr.bf16.mxu0 0
          %3057 = vmatpush1.bf16.msra.mxu0 %v2921
          %3058 = vmatprep.mubr.bf16.mxu0 %v2610
          %3059 = vmatmul.mubr.bf16.gmra.mrb[0].mxu0 %v2609
          %v3060 = vpop.f32.mrb[0].mxu0
          %v3061 = vadd.f32 0.0, %v3060
          %v3062 = vpop.f32.mrb[0].mxu0
          %v3063 = vpop.f32.mrb[0].mxu0
          %v3064 = vadd.f32 0.0, %v3063
          %v3065 = vpop.f32.mrb[0].mxu0
          %3066 = vmatprep.mubr.bf16.mxu0 %v2615
          %3067 = vmatmul.mubr.bf16.gmra.mrb[0].mxu0 %v2614
          %v3068 = vpop.f32.mrb[0].mxu0
          %v3069 = vadd.f32 0.0, %v3068
          %v3070 = vpop.f32.mrb[0].mxu0
          %v3071 = vpop.f32.mrb[0].mxu0
          %v3072 = vadd.f32 0.0, %v3071
          %v3073 = vpop.f32.mrb[0].mxu0
          %3074 = vmatprep.mubr.bf16.mxu0 %v2620
          %3075 = vmatmul.mubr.bf16.gmra.mrb[0].mxu0 %v2619
          %v3076 = vpop.f32.mrb[0].mxu0
          %v3077 = vadd.f32 0.0, %v3076
          %v3078 = vpop.f32.mrb[0].mxu0
          %v3079 = vpop.f32.mrb[0].mxu0
          %v3080 = vadd.f32 0.0, %v3079
          %v3081 = vpop.f32.mrb[0].mxu0
          %3082 = vmatprep.mubr.bf16.mxu0 %v2625
          %3083 = vmatmul.mubr.bf16.gmra.mrb[0].mxu0 %v2624
          %v3084 = vpop.f32.mrb[0].mxu0
          %v3085 = vadd.f32 0.0, %v3084
          %v3086 = vpop.f32.mrb[0].mxu0
          %v3087 = vpop.f32.mrb[0].mxu0
          %v3088 = vadd.f32 0.0, %v3087
          %v3089 = vpop.f32.mrb[0].mxu0
          %3090 = vmatprep.mubr.bf16.mxu0 %v2630
          %3091 = vmatmul.mubr.bf16.gmra.mrb[0].mxu0 %v2629
          %v3092 = vpop.f32.mrb[0].mxu0
          %v3093 = vadd.f32 0.0, %v3092
          %v3094 = vpop.f32.mrb[0].mxu0
          %v3095 = vpop.f32.mrb[0].mxu0
          %v3096 = vadd.f32 0.0, %v3095
          %v3097 = vpop.f32.mrb[0].mxu0
          %3098 = vmatprep.mubr.bf16.mxu0 %v2635
          %3099 = vmatmul.mubr.bf16.gmra.mrb[0].mxu0 %v2634
          %v3100 = vpop.f32.mrb[0].mxu0
          %v3101 = vadd.f32 0.0, %v3100
          %v3102 = vpop.f32.mrb[0].mxu0
          %v3103 = vpop.f32.mrb[0].mxu0
          %v3104 = vadd.f32 0.0, %v3103
          %v3105 = vpop.f32.mrb[0].mxu0
          %3106 = vmatprep.mubr.bf16.mxu0 %v2640
          %3107 = vmatmul.mubr.bf16.gmra.mrb[0].mxu0 %v2639
          %v3108 = vpop.f32.mrb[0].mxu0
          %v3109 = vadd.f32 0.0, %v3108
          %v3110 = vpop.f32.mrb[0].mxu0
          %v3111 = vpop.f32.mrb[0].mxu0
          %v3112 = vadd.f32 0.0, %v3111
          %v3113 = vpop.f32.mrb[0].mxu0
          %3114 = vmatprep.mubr.bf16.mxu0 %v2645
          %3115 = vmatmul.mubr.bf16.gmra.mrb[0].mxu0 %v2644
          %v3116 = vpop.f32.mrb[0].mxu0
          %v3117 = vadd.f32 0.0, %v3116
          %v3118 = vpop.f32.mrb[0].mxu0
          %v3119 = vpop.f32.mrb[0].mxu0
          %v3120 = vadd.f32 0.0, %v3119
          %v3121 = vpop.f32.mrb[0].mxu0
          %3122 = vmatprep.mubr.bf16.mxu0 %v2650
          %3123 = vmatmul.mubr.bf16.gmra.mrb[0].mxu0 %v2649
          %v3124 = vpop.f32.mrb[0].mxu0
          %v3125 = vadd.f32 0.0, %v3124
          %v3126 = vpop.f32.mrb[0].mxu0
          %v3127 = vpop.f32.mrb[0].mxu0
          %v3128 = vadd.f32 0.0, %v3127
          %v3129 = vpop.f32.mrb[0].mxu0
          %3130 = vmatprep.mubr.bf16.mxu0 %v2655
          %3131 = vmatmul.mubr.bf16.gmra.mrb[0].mxu0 %v2654
          %v3132 = vpop.f32.mrb[0].mxu0
          %v3133 = vadd.f32 0.0, %v3132
          %v3134 = vpop.f32.mrb[0].mxu0
          %v3135 = vpop.f32.mrb[0].mxu0
          %v3136 = vadd.f32 0.0, %v3135
          %v3137 = vpop.f32.mrb[0].mxu0
          %3138 = vmatprep.mubr.bf16.mxu0 %v2660
          %3139 = vmatmul.mubr.bf16.gmra.mrb[0].mxu0 %v2659
          %v3140 = vpop.f32.mrb[0].mxu0
          %v3141 = vadd.f32 0.0, %v3140
          %v3142 = vpop.f32.mrb[0].mxu0
          %v3143 = vpop.f32.mrb[0].mxu0
          %v3144 = vadd.f32 0.0, %v3143
          %v3145 = vpop.f32.mrb[0].mxu0
          %3146 = vmatprep.mubr.bf16.mxu0 %v2665
          %3147 = vmatmul.mubr.bf16.gmra.mrb[0].mxu0 %v2664
          %v3148 = vpop.f32.mrb[0].mxu0
          %v3149 = vadd.f32 0.0, %v3148
          %v3150 = vpop.f32.mrb[0].mxu0
          %v3151 = vpop.f32.mrb[0].mxu0
          %v3152 = vadd.f32 0.0, %v3151
          %v3153 = vpop.f32.mrb[0].mxu0
          %3154 = vmatprep.mubr.bf16.mxu0 %v2670
          %3155 = vmatmul.mubr.bf16.gmra.mrb[0].mxu0 %v2669
          %v3156 = vpop.f32.mrb[0].mxu0
          %v3157 = vadd.f32 0.0, %v3156
          %v3158 = vpop.f32.mrb[0].mxu0
          %v3159 = vpop.f32.mrb[0].mxu0
          %v3160 = vadd.f32 0.0, %v3159
          %v3161 = vpop.f32.mrb[0].mxu0
          %3162 = vmatprep.mubr.bf16.mxu0 %v2675
          %3163 = vmatmul.mubr.bf16.gmra.mrb[0].mxu0 %v2674
          %v3164 = vpop.f32.mrb[0].mxu0
          %v3165 = vadd.f32 0.0, %v3164
          %v3166 = vpop.f32.mrb[0].mxu0
          %v3167 = vpop.f32.mrb[0].mxu0
          %v3168 = vadd.f32 0.0, %v3167
          %v3169 = vpop.f32.mrb[0].mxu0
          %3170 = vmatprep.mubr.bf16.mxu0 %v2680
          %3171 = vmatmul.mubr.bf16.gmra.mrb[0].mxu0 %v2679
          %v3172 = vpop.f32.mrb[0].mxu0
          %v3173 = vadd.f32 0.0, %v3172
          %v3174 = vpop.f32.mrb[0].mxu0
          %v3175 = vpop.f32.mrb[0].mxu0
          %v3176 = vadd.f32 0.0, %v3175
          %v3177 = vpop.f32.mrb[0].mxu0
          %3178 = vmatprep.mubr.bf16.mxu0 %v2685
          %3179 = vmatmul.mubr.bf16.gmra.mrb[0].mxu0 %v2684
          %v3180 = vpop.f32.mrb[0].mxu0
          %v3181 = vadd.f32 0.0, %v3180
          %v3182 = vpop.f32.mrb[0].mxu0
          %v3183 = vpop.f32.mrb[0].mxu0
          %v3184 = vadd.f32 0.0, %v3183
          %v3185 = vpop.f32.mrb[0].mxu0
          %3186 = vdwg.mxu0
          %3187 = vmatprep.subr.bf16.mxu0 0
          %3188 = vmatpush1.bf16.msra.mxu0 %v2922
          %3189 = vmatprep.subr.bf16.mxu0 0
          %3190 = vmatpush1.bf16.msra.mxu0 %v2923
          %3191 = vmatprep.subr.bf16.mxu0 0
          %3192 = vmatpush1.bf16.msra.mxu0 %v2924
          %3193 = vmatprep.subr.bf16.mxu0 0
          %3194 = vmatpush1.bf16.msra.mxu0 %v2925
          %3195 = vmatprep.subr.bf16.mxu0 0
          %3196 = vmatpush1.bf16.msra.mxu0 %v2926
          %3197 = vmatprep.subr.bf16.mxu0 0
          %3198 = vmatpush1.bf16.msra.mxu0 %v2927
          %3199 = vmatprep.subr.bf16.mxu0 0
          %3200 = vmatpush1.bf16.msra.mxu0 %v2928
          %3201 = vmatprep.subr.bf16.mxu0 0
          %3202 = vmatpush1.bf16.msra.mxu0 %v2929
          %3203 = vmatprep.subr.bf16.mxu0 0
          %3204 = vmatpush1.bf16.msra.mxu0 %v2930
          %3205 = vmatprep.subr.bf16.mxu0 0
          %3206 = vmatpush1.bf16.msra.mxu0 %v2931
          %3207 = vmatprep.subr.bf16.mxu0 0
          %3208 = vmatpush1.bf16.msra.mxu0 %v2932
          %3209 = vmatprep.subr.bf16.mxu0 0
          %3210 = vmatpush1.bf16.msra.mxu0 %v2933
          %3211 = vmatprep.subr.bf16.mxu0 0
          %3212 = vmatpush1.bf16.msra.mxu0 %v2934
          %3213 = vmatprep.subr.bf16.mxu0 0
          %3214 = vmatpush1.bf16.msra.mxu0 %v2935
          %3215 = vmatprep.subr.bf16.mxu0 0
          %3216 = vmatpush1.bf16.msra.mxu0 %v2936
          %3217 = vmatprep.subr.bf16.mxu0 0
          %3218 = vmatpush1.bf16.msra.mxu0 %v2937
          %3219 = vmatprep.mubr.bf16.mxu0 %v2612
          %3220 = vmatmul.mubr.bf16.gmra.mrb[0].mxu0 %v2611
          %v3221 = vpop.f32.mrb[0].mxu0
          %v3222 = vadd.f32 %v3061, %v3221
          %v3223 = vpop.f32.mrb[0].mxu0
          %v3224 = vpop.f32.mrb[0].mxu0
          %v3225 = vadd.f32 %v3064, %v3224
          %v3226 = vpop.f32.mrb[0].mxu0
          %3227 = vmatprep.mubr.bf16.mxu0 %v2617
          %3228 = vmatmul.mubr.bf16.gmra.mrb[0].mxu0 %v2616
          %v3229 = vpop.f32.mrb[0].mxu0
          %v3230 = vadd.f32 %v3069, %v3229
          %v3231 = vpop.f32.mrb[0].mxu0
          %v3232 = vpop.f32.mrb[0].mxu0
          %v3233 = vadd.f32 %v3072, %v3232
          %v3234 = vpop.f32.mrb[0].mxu0
          %3235 = vmatprep.mubr.bf16.mxu0 %v2622
          %3236 = vmatmul.mubr.bf16.gmra.mrb[0].mxu0 %v2621
          %v3237 = vpop.f32.mrb[0].mxu0
          %v3238 = vadd.f32 %v3077, %v3237
          %v3239 = vpop.f32.mrb[0].mxu0
          %v3240 = vpop.f32.mrb[0].mxu0
          %v3241 = vadd.f32 %v3080, %v3240
          %v3242 = vpop.f32.mrb[0].mxu0
          %3243 = vmatprep.mubr.bf16.mxu0 %v2627
          %3244 = vmatmul.mubr.bf16.gmra.mrb[0].mxu0 %v2626
          %v3245 = vpop.f32.mrb[0].mxu0
          %v3246 = vadd.f32 %v3085, %v3245
          %v3247 = vpop.f32.mrb[0].mxu0
          %v3248 = vpop.f32.mrb[0].mxu0
          %v3249 = vadd.f32 %v3088, %v3248
          %v3250 = vpop.f32.mrb[0].mxu0
          %3251 = vmatprep.mubr.bf16.mxu0 %v2632
          %3252 = vmatmul.mubr.bf16.gmra.mrb[0].mxu0 %v2631
          %v3253 = vpop.f32.mrb[0].mxu0
          %v3254 = vadd.f32 %v3093, %v3253
          %v3255 = vpop.f32.mrb[0].mxu0
          %v3256 = vpop.f32.mrb[0].mxu0
          %v3257 = vadd.f32 %v3096, %v3256
          %v3258 = vpop.f32.mrb[0].mxu0
          %3259 = vmatprep.mubr.bf16.mxu0 %v2637
          %3260 = vmatmul.mubr.bf16.gmra.mrb[0].mxu0 %v2636
          %v3261 = vpop.f32.mrb[0].mxu0
          %v3262 = vadd.f32 %v3101, %v3261
          %v3263 = vpop.f32.mrb[0].mxu0
          %v3264 = vpop.f32.mrb[0].mxu0
          %v3265 = vadd.f32 %v3104, %v3264
          %v3266 = vpop.f32.mrb[0].mxu0
          %3267 = vmatprep.mubr.bf16.mxu0 %v2642
          %3268 = vmatmul.mubr.bf16.gmra.mrb[0].mxu0 %v2641
          %v3269 = vpop.f32.mrb[0].mxu0
          %v3270 = vadd.f32 %v3109, %v3269
          %v3271 = vpop.f32.mrb[0].mxu0
          %v3272 = vpop.f32.mrb[0].mxu0
          %v3273 = vadd.f32 %v3112, %v3272
          %v3274 = vpop.f32.mrb[0].mxu0
          %3275 = vmatprep.mubr.bf16.mxu0 %v2647
          %3276 = vmatmul.mubr.bf16.gmra.mrb[0].mxu0 %v2646
          %v3277 = vpop.f32.mrb[0].mxu0
          %v3278 = vadd.f32 %v3117, %v3277
          %v3279 = vpop.f32.mrb[0].mxu0
          %v3280 = vpop.f32.mrb[0].mxu0
          %v3281 = vadd.f32 %v3120, %v3280
          %v3282 = vpop.f32.mrb[0].mxu0
          %3283 = vmatprep.mubr.bf16.mxu0 %v2652
          %3284 = vmatmul.mubr.bf16.gmra.mrb[0].mxu0 %v2651
          %v3285 = vpop.f32.mrb[0].mxu0
          %v3286 = vadd.f32 %v3125, %v3285
          %v3287 = vpop.f32.mrb[0].mxu0
          %v3288 = vpop.f32.mrb[0].mxu0
          %v3289 = vadd.f32 %v3128, %v3288
          %v3290 = vpop.f32.mrb[0].mxu0
          %3291 = vmatprep.mubr.bf16.mxu0 %v2657
          %3292 = vmatmul.mubr.bf16.gmra.mrb[0].mxu0 %v2656
          %v3293 = vpop.f32.mrb[0].mxu0
          %v3294 = vadd.f32 %v3133, %v3293
          %v3295 = vpop.f32.mrb[0].mxu0
          %v3296 = vpop.f32.mrb[0].mxu0
          %v3297 = vadd.f32 %v3136, %v3296
          %v3298 = vpop.f32.mrb[0].mxu0
          %3299 = vmatprep.mubr.bf16.mxu0 %v2662
          %3300 = vmatmul.mubr.bf16.gmra.mrb[0].mxu0 %v2661
          %v3301 = vpop.f32.mrb[0].mxu0
          %v3302 = vadd.f32 %v3141, %v3301
          %v3303 = vpop.f32.mrb[0].mxu0
          %v3304 = vpop.f32.mrb[0].mxu0
          %v3305 = vadd.f32 %v3144, %v3304
          %v3306 = vpop.f32.mrb[0].mxu0
          %3307 = vmatprep.mubr.bf16.mxu0 %v2667
          %3308 = vmatmul.mubr.bf16.gmra.mrb[0].mxu0 %v2666
          %v3309 = vpop.f32.mrb[0].mxu0
          %v3310 = vadd.f32 %v3149, %v3309
          %v3311 = vpop.f32.mrb[0].mxu0
          %v3312 = vpop.f32.mrb[0].mxu0
          %v3313 = vadd.f32 %v3152, %v3312
          %v3314 = vpop.f32.mrb[0].mxu0
          %3315 = vmatprep.mubr.bf16.mxu0 %v2672
          %3316 = vmatmul.mubr.bf16.gmra.mrb[0].mxu0 %v2671
          %v3317 = vpop.f32.mrb[0].mxu0
          %v3318 = vadd.f32 %v3157, %v3317
          %v3319 = vpop.f32.mrb[0].mxu0
          %v3320 = vpop.f32.mrb[0].mxu0
          %v3321 = vadd.f32 %v3160, %v3320
          %v3322 = vpop.f32.mrb[0].mxu0
          %3323 = vmatprep.mubr.bf16.mxu0 %v2677
          %3324 = vmatmul.mubr.bf16.gmra.mrb[0].mxu0 %v2676
          %v3325 = vpop.f32.mrb[0].mxu0
          %v3326 = vadd.f32 %v3165, %v3325
          %v3327 = vpop.f32.mrb[0].mxu0
          %v3328 = vpop.f32.mrb[0].mxu0
          %v3329 = vadd.f32 %v3168, %v3328
          %v3330 = vpop.f32.mrb[0].mxu0
          %3331 = vmatprep.mubr.bf16.mxu0 %v2682
          %3332 = vmatmul.mubr.bf16.gmra.mrb[0].mxu0 %v2681
          %v3333 = vpop.f32.mrb[0].mxu0
          %v3334 = vadd.f32 %v3173, %v3333
          %v3335 = vpop.f32.mrb[0].mxu0
          %v3336 = vpop.f32.mrb[0].mxu0
          %v3337 = vadd.f32 %v3176, %v3336
          %v3338 = vpop.f32.mrb[0].mxu0
          %3339 = vmatprep.mubr.bf16.mxu0 %v2687
          %3340 = vmatmul.mubr.bf16.gmra.mrb[0].mxu0 %v2686
          %v3341 = vpop.f32.mrb[0].mxu0
          %v3342 = vadd.f32 %v3181, %v3341
          %v3343 = vpop.f32.mrb[0].mxu0
          %v3344 = vpop.f32.mrb[0].mxu0
          %v3345 = vadd.f32 %v3184, %v3344
          %v3346 = vpop.f32.mrb[0].mxu0
          %3347 = vdwg.mxu0
          %3348 = vmatprep.subr.bf16.mxu0 0
          %3349 = vmatpush1.bf16.msra.mxu0 %v2938
          %3350 = vmatprep.subr.bf16.mxu0 0
          %3351 = vmatpush1.bf16.msra.mxu0 %v2939
          %3352 = vmatprep.subr.bf16.mxu0 0
          %3353 = vmatpush1.bf16.msra.mxu0 %v2940
          %3354 = vmatprep.subr.bf16.mxu0 0
          %3355 = vmatpush1.bf16.msra.mxu0 %v2941
          %3356 = vmatprep.subr.bf16.mxu0 0
          %3357 = vmatpush1.bf16.msra.mxu0 0
          %3358 = vmatprep.subr.bf16.mxu0 0
          %3359 = vmatpush1.bf16.msra.mxu0 0
          %3360 = vmatprep.subr.bf16.mxu0 0
          %3361 = vmatpush1.bf16.msra.mxu0 0
          %3362 = vmatprep.subr.bf16.mxu0 0
          %3363 = vmatpush1.bf16.msra.mxu0 0
          %3364 = vmatprep.subr.bf16.mxu0 0
          %3365 = vmatpush1.bf16.msra.mxu0 0
          %3366 = vmatprep.subr.bf16.mxu0 0
          %3367 = vmatpush1.bf16.msra.mxu0 0
          %3368 = vmatprep.subr.bf16.mxu0 0
          %3369 = vmatpush1.bf16.msra.mxu0 0
          %3370 = vmatprep.subr.bf16.mxu0 0
          %3371 = vmatpush1.bf16.msra.mxu0 0
          %3372 = vmatprep.subr.bf16.mxu0 0
          %3373 = vmatpush1.bf16.msra.mxu0 0
          %3374 = vmatprep.subr.bf16.mxu0 0
          %3375 = vmatpush1.bf16.msra.mxu0 0
          %3376 = vmatprep.subr.bf16.mxu0 0
          %3377 = vmatpush1.bf16.msra.mxu0 0
          %3378 = vmatprep.subr.bf16.mxu0 0
          %3379 = vmatpush1.bf16.msra.mxu0 0
          %3380 = vmatprep.mubr.bf16.mxu0 0
          %3381 = vmatmul.mubr.bf16.gmra.mrb[0].mxu0 %v2979
          %v3382 = vpop.f32.mrb[0].mxu0
          %v3383 = vadd.f32 %v3222, %v3382
          %v3384 = vpop.f32.mrb[0].mxu0
          %v3385 = vpop.f32.mrb[0].mxu0
          %v3386 = vadd.f32 %v3225, %v3385
          %v3387 = vpop.f32.mrb[0].mxu0
          %3388 = vmatprep.mubr.bf16.mxu0 0
          %3389 = vmatmul.mubr.bf16.gmra.mrb[0].mxu0 %v2982
          %v3390 = vpop.f32.mrb[0].mxu0
          %v3391 = vadd.f32 %v3230, %v3390
          %v3392 = vpop.f32.mrb[0].mxu0
          %v3393 = vpop.f32.mrb[0].mxu0
          %v3394 = vadd.f32 %v3233, %v3393
          %v3395 = vpop.f32.mrb[0].mxu0
          %3396 = vmatprep.mubr.bf16.mxu0 0
          %3397 = vmatmul.mubr.bf16.gmra.mrb[0].mxu0 %v2985
          %v3398 = vpop.f32.mrb[0].mxu0
          %v3399 = vadd.f32 %v3238, %v3398
          %v3400 = vpop.f32.mrb[0].mxu0
          %v3401 = vpop.f32.mrb[0].mxu0
          %v3402 = vadd.f32 %v3241, %v3401
          %v3403 = vpop.f32.mrb[0].mxu0
          %3404 = vmatprep.mubr.bf16.mxu0 0
          %3405 = vmatmul.mubr.bf16.gmra.mrb[0].mxu0 %v2988
          %v3406 = vpop.f32.mrb[0].mxu0
          %v3407 = vadd.f32 %v3246, %v3406
          %v3408 = vpop.f32.mrb[0].mxu0
          %v3409 = vpop.f32.mrb[0].mxu0
          %v3410 = vadd.f32 %v3249, %v3409
          %v3411 = vpop.f32.mrb[0].mxu0
          %3412 = vmatprep.mubr.bf16.mxu0 0
          %3413 = vmatmul.mubr.bf16.gmra.mrb[0].mxu0 %v2991
          %v3414 = vpop.f32.mrb[0].mxu0
          %v3415 = vadd.f32 %v3254, %v3414
          %v3416 = vpop.f32.mrb[0].mxu0
          %v3417 = vpop.f32.mrb[0].mxu0
          %v3418 = vadd.f32 %v3257, %v3417
          %v3419 = vpop.f32.mrb[0].mxu0
          %3420 = vmatprep.mubr.bf16.mxu0 0
          %3421 = vmatmul.mubr.bf16.gmra.mrb[0].mxu0 %v2994
          %v3422 = vpop.f32.mrb[0].mxu0
          %v3423 = vadd.f32 %v3262, %v3422
          %v3424 = vpop.f32.mrb[0].mxu0
          %v3425 = vpop.f32.mrb[0].mxu0
          %v3426 = vadd.f32 %v3265, %v3425
          %v3427 = vpop.f32.mrb[0].mxu0
          %3428 = vmatprep.mubr.bf16.mxu0 0
          %3429 = vmatmul.mubr.bf16.gmra.mrb[0].mxu0 %v2997
          %v3430 = vpop.f32.mrb[0].mxu0
          %v3431 = vadd.f32 %v3270, %v3430
          %v3432 = vpop.f32.mrb[0].mxu0
          %v3433 = vpop.f32.mrb[0].mxu0
          %v3434 = vadd.f32 %v3273, %v3433
          %v3435 = vpop.f32.mrb[0].mxu0
          %3436 = vmatprep.mubr.bf16.mxu0 0
          %3437 = vmatmul.mubr.bf16.gmra.mrb[0].mxu0 %v3000
          %v3438 = vpop.f32.mrb[0].mxu0
          %v3439 = vadd.f32 %v3278, %v3438
          %v3440 = vpop.f32.mrb[0].mxu0
          %v3441 = vpop.f32.mrb[0].mxu0
          %v3442 = vadd.f32 %v3281, %v3441
          %v3443 = vpop.f32.mrb[0].mxu0
          %3444 = vmatprep.mubr.bf16.mxu0 0
          %3445 = vmatmul.mubr.bf16.gmra.mrb[0].mxu0 %v3003
          %v3446 = vpop.f32.mrb[0].mxu0
          %v3447 = vadd.f32 %v3286, %v3446
          %v3448 = vpop.f32.mrb[0].mxu0
          %v3449 = vpop.f32.mrb[0].mxu0
          %v3450 = vadd.f32 %v3289, %v3449
          %v3451 = vpop.f32.mrb[0].mxu0
          %3452 = vmatprep.mubr.bf16.mxu0 0
          %3453 = vmatmul.mubr.bf16.gmra.mrb[0].mxu0 %v3006
          %v3454 = vpop.f32.mrb[0].mxu0
          %v3455 = vadd.f32 %v3294, %v3454
          %v3456 = vpop.f32.mrb[0].mxu0
          %v3457 = vpop.f32.mrb[0].mxu0
          %v3458 = vadd.f32 %v3297, %v3457
          %v3459 = vpop.f32.mrb[0].mxu0
          %3460 = vmatprep.mubr.bf16.mxu0 0
          %3461 = vmatmul.mubr.bf16.gmra.mrb[0].mxu0 %v3009
          %v3462 = vpop.f32.mrb[0].mxu0
          %v3463 = vadd.f32 %v3302, %v3462
          %v3464 = vpop.f32.mrb[0].mxu0
          %v3465 = vpop.f32.mrb[0].mxu0
          %v3466 = vadd.f32 %v3305, %v3465
          %v3467 = vpop.f32.mrb[0].mxu0
          %3468 = vmatprep.mubr.bf16.mxu0 0
          %3469 = vmatmul.mubr.bf16.gmra.mrb[0].mxu0 %v3012
          %v3470 = vpop.f32.mrb[0].mxu0
          %v3471 = vadd.f32 %v3310, %v3470
          %v3472 = vpop.f32.mrb[0].mxu0
          %v3473 = vpop.f32.mrb[0].mxu0
          %v3474 = vadd.f32 %v3313, %v3473
          %v3475 = vpop.f32.mrb[0].mxu0
          %3476 = vmatprep.mubr.bf16.mxu0 0
          %3477 = vmatmul.mubr.bf16.gmra.mrb[0].mxu0 %v3015
          %v3478 = vpop.f32.mrb[0].mxu0
          %v3479 = vadd.f32 %v3318, %v3478
          %v3480 = vpop.f32.mrb[0].mxu0
          %v3481 = vpop.f32.mrb[0].mxu0
          %v3482 = vadd.f32 %v3321, %v3481
          %v3483 = vpop.f32.mrb[0].mxu0
          %3484 = vmatprep.mubr.bf16.mxu0 0
          %3485 = vmatmul.mubr.bf16.gmra.mrb[0].mxu0 %v3018
          %v3486 = vpop.f32.mrb[0].mxu0
          %v3487 = vadd.f32 %v3326, %v3486
          %v3488 = vpop.f32.mrb[0].mxu0
          %v3489 = vpop.f32.mrb[0].mxu0
          %v3490 = vadd.f32 %v3329, %v3489
          %v3491 = vpop.f32.mrb[0].mxu0
          %3492 = vmatprep.mubr.bf16.mxu0 0
          %3493 = vmatmul.mubr.bf16.gmra.mrb[0].mxu0 %v3021
          %v3494 = vpop.f32.mrb[0].mxu0
          %v3495 = vadd.f32 %v3334, %v3494
          %v3496 = vpop.f32.mrb[0].mxu0
          %v3497 = vpop.f32.mrb[0].mxu0
          %v3498 = vadd.f32 %v3337, %v3497
          %v3499 = vpop.f32.mrb[0].mxu0
          %3500 = vmatprep.mubr.bf16.mxu0 0
          %3501 = vmatmul.mubr.bf16.gmra.mrb[0].mxu0 %v3024
          %v3502 = vpop.f32.mrb[0].mxu0
          %v3503 = vadd.f32 %v3342, %v3502
          %v3504 = vpop.f32.mrb[0].mxu0
          %v3505 = vpop.f32.mrb[0].mxu0
          %v3506 = vadd.f32 %v3345, %v3505
          %v3507 = vpop.f32.mrb[0].mxu0
          %3508 = vdwg.mxu0
          %v3581 = vunpack.c.l.b16 %v2533
          %v3582 = vunpack.c.l.b16 %v2534
          %v3583 = vunpack.c.l.b16 %v2535
          %v3584 = vunpack.c.l.b16 %v2536
          %v3585 = vunpack.c.l.b16 %v2537
          %v3586 = vunpack.c.l.b16 %v2538
          %v3587 = vunpack.c.l.b16 %v2539
          %v3588 = vunpack.c.l.b16 %v2540
          %v3589 = vunpack.c.l.b16 %v2541
          %v3590 = vunpack.c.l.b16 %v2542
          %v3591 = vunpack.c.l.b16 %v2543
          %v3592 = vunpack.c.l.b16 %v2544
          %v3593 = vunpack.c.l.b16 %v2545
          %v3594 = vunpack.c.l.b16 %v2546
          %v3595 = vunpack.c.l.b16 %v2547
          %v3596 = vunpack.c.l.b16 %v2548
          %v3597 = vunpack.c.l.b16 %v2549
          %v3598 = vunpack.c.l.b16 %v2550
          %v3599 = vunpack.c.l.b16 %v2551
          %v3600 = vunpack.c.l.b16 %v2552
          %v3601 = vunpack.c.l.b16 %v2553
          %v3602 = vunpack.c.l.b16 %v2554
          %v3603 = vunpack.c.l.b16 %v2555
          %v3604 = vunpack.c.l.b16 %v2556
          %v3605 = vunpack.c.l.b16 %v2557
          %v3606 = vunpack.c.l.b16 %v2558
          %v3607 = vunpack.c.l.b16 %v2559
          %v3608 = vunpack.c.l.b16 %v2560
          %v3609 = vunpack.c.l.b16 %v2561
          %v3610 = vunpack.c.l.b16 %v2562
          %v3611 = vunpack.c.l.b16 %v2563
          %v3612 = vunpack.c.l.b16 %v2564
          %v3613 = vunpack.c.l.b16 %v2565
          %v3614 = vunpack.c.l.b16 %v2566
          %v3615 = vunpack.c.l.b16 %v2567
          %v3616 = vunpack.c.l.b16 %v2568
          %v3617 = vunpack.c.l.b16 %v2569
          %v3618 = vunpack.c.l.b16 %v2570
          %v3619 = vunpack.c.l.b16 %v2571
          %v3620 = vunpack.c.l.b16 %v2572
          %v3621 = vunpack.c.l.b16 %v2573
          %v3622 = vunpack.c.l.b16 %v2574
          %v3623 = vunpack.c.l.b16 %v2575
          %v3624 = vunpack.c.l.b16 %v2576
          %v3625 = vunpack.c.l.b16 %v2577
          %v3626 = vunpack.c.l.b16 %v2578
          %v3627 = vunpack.c.l.b16 %v2579
          %v3628 = vunpack.c.l.b16 %v2580
          %v3629 = vunpack.c.l.b16 %v2581
          %v3630 = vunpack.c.l.b16 %v2582
          %v3631 = vunpack.c.l.b16 %v2583
          %v3632 = vunpack.c.l.b16 %v2584
          %v3633 = vunpack.c.l.b16 %v2585
          %v3634 = vunpack.c.l.b16 %v2586
          %v3635 = vunpack.c.l.b16 %v2587
          %v3636 = vunpack.c.l.b16 %v2588
          %v3637 = vunpack.c.l.b16 %v2589
          %v3638 = vunpack.c.l.b16 %v2590
          %v3639 = vunpack.c.l.b16 %v2591
          %v3640 = vunpack.c.l.b16 %v2592
          %v3641 = vunpack.c.l.b16 %v2593
          %v3642 = vunpack.c.l.b16 %v2594
          %v3643 = vunpack.c.l.b16 %v2595
          %v3644 = vunpack.c.l.b16 %v2596
          %v3645 = vunpack.c.l.b16 %v2597
          %v3646 = vunpack.c.l.b16 %v2598
          %v3647 = vunpack.c.l.b16 %v2599
          %v3648 = vunpack.c.l.b16 %v2600
          %v3649 = vunpack.c.l.b16 %v2601
          %v3650 = vunpack.c.l.b16 %v2602
          %v3651 = vunpack.c.l.b16 %v2603
          %v3652 = vunpack.c.l.b16 %v2604
          %v3653 = vpack.c.b16 %v3582, %v3581
          %v3654 = vpack.c.b16 %v3584, %v3583
          %v3655 = vpack.c.b16 %v3586, %v3585
          %v3656 = vpack.c.b16 %v3588, %v3587
          %v3657 = vpack.c.b16 %v3590, %v3589
          %v3658 = vpack.c.b16 %v3592, %v3591
          %v3659 = vpack.c.b16 %v3594, %v3593
          %v3660 = vpack.c.b16 %v3596, %v3595
          %v3661 = vpack.c.b16 %v3598, %v3597
          %v3662 = vpack.c.b16 %v3600, %v3599
          %v3663 = vpack.c.b16 %v3602, %v3601
          %v3664 = vpack.c.b16 %v3604, %v3603
          %v3665 = vpack.c.b16 %v3606, %v3605
          %v3666 = vpack.c.b16 %v3608, %v3607
          %v3667 = vpack.c.b16 %v3610, %v3609
          %v3668 = vpack.c.b16 %v3612, %v3611
          %v3669 = vpack.c.b16 %v3614, %v3613
          %v3670 = vpack.c.b16 %v3616, %v3615
          %v3671 = vpack.c.b16 %v3618, %v3617
          %v3672 = vpack.c.b16 %v3620, %v3619
          %v3673 = vpack.c.b16 %v3622, %v3621
          %v3674 = vpack.c.b16 %v3624, %v3623
          %v3675 = vpack.c.b16 %v3626, %v3625
          %v3676 = vpack.c.b16 %v3628, %v3627
          %v3677 = vpack.c.b16 %v3630, %v3629
          %v3678 = vpack.c.b16 %v3632, %v3631
          %v3679 = vpack.c.b16 %v3634, %v3633
          %v3680 = vpack.c.b16 %v3636, %v3635
          %v3681 = vpack.c.b16 %v3638, %v3637
          %v3682 = vpack.c.b16 %v3640, %v3639
          %v3683 = vpack.c.b16 %v3642, %v3641
          %v3684 = vpack.c.b16 %v3644, %v3643
          %v3685 = vpack.c.b16 %v3646, %v3645
          %v3686 = vpack.c.b16 %v3648, %v3647
          %v3687 = vpack.c.b16 %v3650, %v3649
          %v3688 = vpack.c.b16 %v3652, %v3651
          %v3726 = vsel %vm346, %v2457, 0
          %v3729 = vsel %vm346, %v2462, 0
          %v3732 = vsel %vm346, %v2467, 0
          %v3735 = vsel %vm346, %v2472, 0
          %v3738 = vsel %vm346, %v2477, 0
          %v3741 = vsel %vm346, %v2482, 0
          %v3744 = vsel %vm346, %v2487, 0
          %v3747 = vsel %vm346, %v2492, 0
          %v3750 = vsel %vm346, %v2497, 0
          %v3753 = vsel %vm346, %v2502, 0
          %v3756 = vsel %vm346, %v2507, 0
          %v3759 = vsel %vm346, %v2512, 0
          %v3762 = vsel %vm346, %v2517, 0
          %v3765 = vsel %vm346, %v2522, 0
          %v3768 = vsel %vm346, %v2527, 0
          %v3771 = vsel %vm346, %v2532, 0
          %3773 = vmatprep.subr.bf16.mxu0 0
          %3774 = vmatpush1.bf16.msra.mxu0 %v3653
          %3775 = vmatprep.subr.bf16.mxu0 0
          %3776 = vmatpush1.bf16.msra.mxu0 %v3654
          %3777 = vmatprep.subr.bf16.mxu0 0
          %3778 = vmatpush1.bf16.msra.mxu0 %v3655
          %3779 = vmatprep.subr.bf16.mxu0 0
          %3780 = vmatpush1.bf16.msra.mxu0 %v3656
          %3781 = vmatprep.subr.bf16.mxu0 0
          %3782 = vmatpush1.bf16.msra.mxu0 %v3657
          %3783 = vmatprep.subr.bf16.mxu0 0
          %3784 = vmatpush1.bf16.msra.mxu0 %v3658
          %3785 = vmatprep.subr.bf16.mxu0 0
          %3786 = vmatpush1.bf16.msra.mxu0 %v3659
          %3787 = vmatprep.subr.bf16.mxu0 0
          %3788 = vmatpush1.bf16.msra.mxu0 %v3660
          %3789 = vmatprep.subr.bf16.mxu0 0
          %3790 = vmatpush1.bf16.msra.mxu0 %v3661
          %3791 = vmatprep.subr.bf16.mxu0 0
          %3792 = vmatpush1.bf16.msra.mxu0 %v3662
          %3793 = vmatprep.subr.bf16.mxu0 0
          %3794 = vmatpush1.bf16.msra.mxu0 %v3663
          %3795 = vmatprep.subr.bf16.mxu0 0
          %3796 = vmatpush1.bf16.msra.mxu0 %v3664
          %3797 = vmatprep.subr.bf16.mxu0 0
          %3798 = vmatpush1.bf16.msra.mxu0 %v3665
          %3799 = vmatprep.subr.bf16.mxu0 0
          %3800 = vmatpush1.bf16.msra.mxu0 %v3666
          %3801 = vmatprep.subr.bf16.mxu0 0
          %3802 = vmatpush1.bf16.msra.mxu0 %v3667
          %3803 = vmatprep.subr.bf16.mxu0 0
          %3804 = vmatpush1.bf16.msra.mxu0 %v3668
          %3805 = vmatprep.mubr.bf16.mxu0 %v2454
          %3806 = vmatmul.mubr.bf16.gmra.mrb[0].mxu0 %v2453
          %v3807 = vpop.f32.mrb[0].mxu0
          %v3808 = vadd.f32 %v3383, %v3807
          %v3809 = vpop.f32.mrb[0].mxu0
          %v3810 = vpop.f32.mrb[0].mxu0
          %v3811 = vadd.f32 %v3386, %v3810
          %v3812 = vpop.f32.mrb[0].mxu0
          %3813 = vmatprep.mubr.bf16.mxu0 %v2459
          %3814 = vmatmul.mubr.bf16.gmra.mrb[0].mxu0 %v2458
          %v3815 = vpop.f32.mrb[0].mxu0
          %v3816 = vadd.f32 %v3391, %v3815
          %v3817 = vpop.f32.mrb[0].mxu0
          %v3818 = vpop.f32.mrb[0].mxu0
          %v3819 = vadd.f32 %v3394, %v3818
          %v3820 = vpop.f32.mrb[0].mxu0
          %3821 = vmatprep.mubr.bf16.mxu0 %v2464
          %3822 = vmatmul.mubr.bf16.gmra.mrb[0].mxu0 %v2463
          %v3823 = vpop.f32.mrb[0].mxu0
          %v3824 = vadd.f32 %v3399, %v3823
          %v3825 = vpop.f32.mrb[0].mxu0
          %v3826 = vpop.f32.mrb[0].mxu0
          %v3827 = vadd.f32 %v3402, %v3826
          %v3828 = vpop.f32.mrb[0].mxu0
          %3829 = vmatprep.mubr.bf16.mxu0 %v2469
          %3830 = vmatmul.mubr.bf16.gmra.mrb[0].mxu0 %v2468
          %v3831 = vpop.f32.mrb[0].mxu0
          %v3832 = vadd.f32 %v3407, %v3831
          %v3833 = vpop.f32.mrb[0].mxu0
          %v3834 = vpop.f32.mrb[0].mxu0
          %v3835 = vadd.f32 %v3410, %v3834
          %v3836 = vpop.f32.mrb[0].mxu0
          %3837 = vmatprep.mubr.bf16.mxu0 %v2474
          %3838 = vmatmul.mubr.bf16.gmra.mrb[0].mxu0 %v2473
          %v3839 = vpop.f32.mrb[0].mxu0
          %v3840 = vadd.f32 %v3415, %v3839
          %v3841 = vpop.f32.mrb[0].mxu0
          %v3842 = vpop.f32.mrb[0].mxu0
          %v3843 = vadd.f32 %v3418, %v3842
          %v3844 = vpop.f32.mrb[0].mxu0
          %3845 = vmatprep.mubr.bf16.mxu0 %v2479
          %3846 = vmatmul.mubr.bf16.gmra.mrb[0].mxu0 %v2478
          %v3847 = vpop.f32.mrb[0].mxu0
          %v3848 = vadd.f32 %v3423, %v3847
          %v3849 = vpop.f32.mrb[0].mxu0
          %v3850 = vpop.f32.mrb[0].mxu0
          %v3851 = vadd.f32 %v3426, %v3850
          %v3852 = vpop.f32.mrb[0].mxu0
          %3853 = vmatprep.mubr.bf16.mxu0 %v2484
          %3854 = vmatmul.mubr.bf16.gmra.mrb[0].mxu0 %v2483
          %v3855 = vpop.f32.mrb[0].mxu0
          %v3856 = vadd.f32 %v3431, %v3855
          %v3857 = vpop.f32.mrb[0].mxu0
          %v3858 = vpop.f32.mrb[0].mxu0
          %v3859 = vadd.f32 %v3434, %v3858
          %v3860 = vpop.f32.mrb[0].mxu0
          %3861 = vmatprep.mubr.bf16.mxu0 %v2489
          %3862 = vmatmul.mubr.bf16.gmra.mrb[0].mxu0 %v2488
          %v3863 = vpop.f32.mrb[0].mxu0
          %v3864 = vadd.f32 %v3439, %v3863
          %v3865 = vpop.f32.mrb[0].mxu0
          %v3866 = vpop.f32.mrb[0].mxu0
          %v3867 = vadd.f32 %v3442, %v3866
          %v3868 = vpop.f32.mrb[0].mxu0
          %3869 = vmatprep.mubr.bf16.mxu0 %v2494
          %3870 = vmatmul.mubr.bf16.gmra.mrb[0].mxu0 %v2493
          %v3871 = vpop.f32.mrb[0].mxu0
          %v3872 = vadd.f32 %v3447, %v3871
          %v3873 = vpop.f32.mrb[0].mxu0
          %v3874 = vpop.f32.mrb[0].mxu0
          %v3875 = vadd.f32 %v3450, %v3874
          %v3876 = vpop.f32.mrb[0].mxu0
          %3877 = vmatprep.mubr.bf16.mxu0 %v2499
          %3878 = vmatmul.mubr.bf16.gmra.mrb[0].mxu0 %v2498
          %v3879 = vpop.f32.mrb[0].mxu0
          %v3880 = vadd.f32 %v3455, %v3879
          %v3881 = vpop.f32.mrb[0].mxu0
          %v3882 = vpop.f32.mrb[0].mxu0
          %v3883 = vadd.f32 %v3458, %v3882
          %v3884 = vpop.f32.mrb[0].mxu0
          %3885 = vmatprep.mubr.bf16.mxu0 %v2504
          %3886 = vmatmul.mubr.bf16.gmra.mrb[0].mxu0 %v2503
          %v3887 = vpop.f32.mrb[0].mxu0
          %v3888 = vadd.f32 %v3463, %v3887
          %v3889 = vpop.f32.mrb[0].mxu0
          %v3890 = vpop.f32.mrb[0].mxu0
          %v3891 = vadd.f32 %v3466, %v3890
          %v3892 = vpop.f32.mrb[0].mxu0
          %3893 = vmatprep.mubr.bf16.mxu0 %v2509
          %3894 = vmatmul.mubr.bf16.gmra.mrb[0].mxu0 %v2508
          %v3895 = vpop.f32.mrb[0].mxu0
          %v3896 = vadd.f32 %v3471, %v3895
          %v3897 = vpop.f32.mrb[0].mxu0
          %v3898 = vpop.f32.mrb[0].mxu0
          %v3899 = vadd.f32 %v3474, %v3898
          %v3900 = vpop.f32.mrb[0].mxu0
          %3901 = vmatprep.mubr.bf16.mxu0 %v2514
          %3902 = vmatmul.mubr.bf16.gmra.mrb[0].mxu0 %v2513
          %v3903 = vpop.f32.mrb[0].mxu0
          %v3904 = vadd.f32 %v3479, %v3903
          %v3905 = vpop.f32.mrb[0].mxu0
          %v3906 = vpop.f32.mrb[0].mxu0
          %v3907 = vadd.f32 %v3482, %v3906
          %v3908 = vpop.f32.mrb[0].mxu0
          %3909 = vmatprep.mubr.bf16.mxu0 %v2519
          %3910 = vmatmul.mubr.bf16.gmra.mrb[0].mxu0 %v2518
          %v3911 = vpop.f32.mrb[0].mxu0
          %v3912 = vadd.f32 %v3487, %v3911
          %v3913 = vpop.f32.mrb[0].mxu0
          %v3914 = vpop.f32.mrb[0].mxu0
          %v3915 = vadd.f32 %v3490, %v3914
          %v3916 = vpop.f32.mrb[0].mxu0
          %3917 = vmatprep.mubr.bf16.mxu0 %v2524
          %3918 = vmatmul.mubr.bf16.gmra.mrb[0].mxu0 %v2523
          %v3919 = vpop.f32.mrb[0].mxu0
          %v3920 = vadd.f32 %v3495, %v3919
          %v3921 = vpop.f32.mrb[0].mxu0
          %v3922 = vpop.f32.mrb[0].mxu0
          %v3923 = vadd.f32 %v3498, %v3922
          %v3924 = vpop.f32.mrb[0].mxu0
          %3925 = vmatprep.mubr.bf16.mxu0 %v2529
          %3926 = vmatmul.mubr.bf16.gmra.mrb[0].mxu0 %v2528
          %v3927 = vpop.f32.mrb[0].mxu0
          %v3928 = vadd.f32 %v3503, %v3927
          %v3929 = vpop.f32.mrb[0].mxu0
          %v3930 = vpop.f32.mrb[0].mxu0
          %v3931 = vadd.f32 %v3506, %v3930
          %v3932 = vpop.f32.mrb[0].mxu0
          %3933 = vdwg.mxu0
          %3934 = vmatprep.subr.bf16.mxu0 0
          %3935 = vmatpush1.bf16.msra.mxu0 %v3669
          %3936 = vmatprep.subr.bf16.mxu0 0
          %3937 = vmatpush1.bf16.msra.mxu0 %v3670
          %3938 = vmatprep.subr.bf16.mxu0 0
          %3939 = vmatpush1.bf16.msra.mxu0 %v3671
          %3940 = vmatprep.subr.bf16.mxu0 0
          %3941 = vmatpush1.bf16.msra.mxu0 %v3672
          %3942 = vmatprep.subr.bf16.mxu0 0
          %3943 = vmatpush1.bf16.msra.mxu0 %v3673
          %3944 = vmatprep.subr.bf16.mxu0 0
          %3945 = vmatpush1.bf16.msra.mxu0 %v3674
          %3946 = vmatprep.subr.bf16.mxu0 0
          %3947 = vmatpush1.bf16.msra.mxu0 %v3675
          %3948 = vmatprep.subr.bf16.mxu0 0
          %3949 = vmatpush1.bf16.msra.mxu0 %v3676
          %3950 = vmatprep.subr.bf16.mxu0 0
          %3951 = vmatpush1.bf16.msra.mxu0 %v3677
          %3952 = vmatprep.subr.bf16.mxu0 0
          %3953 = vmatpush1.bf16.msra.mxu0 %v3678
          %3954 = vmatprep.subr.bf16.mxu0 0
          %3955 = vmatpush1.bf16.msra.mxu0 %v3679
          %3956 = vmatprep.subr.bf16.mxu0 0
          %3957 = vmatpush1.bf16.msra.mxu0 %v3680
          %3958 = vmatprep.subr.bf16.mxu0 0
          %3959 = vmatpush1.bf16.msra.mxu0 %v3681
          %3960 = vmatprep.subr.bf16.mxu0 0
          %3961 = vmatpush1.bf16.msra.mxu0 %v3682
          %3962 = vmatprep.subr.bf16.mxu0 0
          %3963 = vmatpush1.bf16.msra.mxu0 %v3683
          %3964 = vmatprep.subr.bf16.mxu0 0
          %3965 = vmatpush1.bf16.msra.mxu0 %v3684
          %3966 = vmatprep.mubr.bf16.mxu0 %v2456
          %3967 = vmatmul.mubr.bf16.gmra.mrb[0].mxu0 %v2455
          %v3968 = vpop.f32.mrb[0].mxu0
          %v3969 = vadd.f32 %v3808, %v3968
          %v3970 = vpop.f32.mrb[0].mxu0
          %v3971 = vpop.f32.mrb[0].mxu0
          %v3972 = vadd.f32 %v3811, %v3971
          %v3973 = vpop.f32.mrb[0].mxu0
          %3974 = vmatprep.mubr.bf16.mxu0 %v2461
          %3975 = vmatmul.mubr.bf16.gmra.mrb[0].mxu0 %v2460
          %v3976 = vpop.f32.mrb[0].mxu0
          %v3977 = vadd.f32 %v3816, %v3976
          %v3978 = vpop.f32.mrb[0].mxu0
          %v3979 = vpop.f32.mrb[0].mxu0
          %v3980 = vadd.f32 %v3819, %v3979
          %v3981 = vpop.f32.mrb[0].mxu0
          %3982 = vmatprep.mubr.bf16.mxu0 %v2466
          %3983 = vmatmul.mubr.bf16.gmra.mrb[0].mxu0 %v2465
          %v3984 = vpop.f32.mrb[0].mxu0
          %v3985 = vadd.f32 %v3824, %v3984
          %v3986 = vpop.f32.mrb[0].mxu0
          %v3987 = vpop.f32.mrb[0].mxu0
          %v3988 = vadd.f32 %v3827, %v3987
          %v3989 = vpop.f32.mrb[0].mxu0
          %3990 = vmatprep.mubr.bf16.mxu0 %v2471
          %3991 = vmatmul.mubr.bf16.gmra.mrb[0].mxu0 %v2470
          %v3992 = vpop.f32.mrb[0].mxu0
          %v3993 = vadd.f32 %v3832, %v3992
          %v3994 = vpop.f32.mrb[0].mxu0
          %v3995 = vpop.f32.mrb[0].mxu0
          %v3996 = vadd.f32 %v3835, %v3995
          %v3997 = vpop.f32.mrb[0].mxu0
          %3998 = vmatprep.mubr.bf16.mxu0 %v2476
          %3999 = vmatmul.mubr.bf16.gmra.mrb[0].mxu0 %v2475
          %v4000 = vpop.f32.mrb[0].mxu0
          %v4001 = vadd.f32 %v3840, %v4000
          %v4002 = vpop.f32.mrb[0].mxu0
          %v4003 = vpop.f32.mrb[0].mxu0
          %v4004 = vadd.f32 %v3843, %v4003
          %v4005 = vpop.f32.mrb[0].mxu0
          %4006 = vmatprep.mubr.bf16.mxu0 %v2481
          %4007 = vmatmul.mubr.bf16.gmra.mrb[0].mxu0 %v2480
          %v4008 = vpop.f32.mrb[0].mxu0
          %v4009 = vadd.f32 %v3848, %v4008
          %v4010 = vpop.f32.mrb[0].mxu0
          %v4011 = vpop.f32.mrb[0].mxu0
          %v4012 = vadd.f32 %v3851, %v4011
          %v4013 = vpop.f32.mrb[0].mxu0
          %4014 = vmatprep.mubr.bf16.mxu0 %v2486
          %4015 = vmatmul.mubr.bf16.gmra.mrb[0].mxu0 %v2485
          %v4016 = vpop.f32.mrb[0].mxu0
          %v4017 = vadd.f32 %v3856, %v4016
          %v4018 = vpop.f32.mrb[0].mxu0
          %v4019 = vpop.f32.mrb[0].mxu0
          %v4020 = vadd.f32 %v3859, %v4019
          %v4021 = vpop.f32.mrb[0].mxu0
          %4022 = vmatprep.mubr.bf16.mxu0 %v2491
          %4023 = vmatmul.mubr.bf16.gmra.mrb[0].mxu0 %v2490
          %v4024 = vpop.f32.mrb[0].mxu0
          %v4025 = vadd.f32 %v3864, %v4024
          %v4026 = vpop.f32.mrb[0].mxu0
          %v4027 = vpop.f32.mrb[0].mxu0
          %v4028 = vadd.f32 %v3867, %v4027
          %v4029 = vpop.f32.mrb[0].mxu0
          %4030 = vmatprep.mubr.bf16.mxu0 %v2496
          %4031 = vmatmul.mubr.bf16.gmra.mrb[0].mxu0 %v2495
          %v4032 = vpop.f32.mrb[0].mxu0
          %v4033 = vadd.f32 %v3872, %v4032
          %v4034 = vpop.f32.mrb[0].mxu0
          %v4035 = vpop.f32.mrb[0].mxu0
          %v4036 = vadd.f32 %v3875, %v4035
          %v4037 = vpop.f32.mrb[0].mxu0
          %4038 = vmatprep.mubr.bf16.mxu0 %v2501
          %4039 = vmatmul.mubr.bf16.gmra.mrb[0].mxu0 %v2500
          %v4040 = vpop.f32.mrb[0].mxu0
          %v4041 = vadd.f32 %v3880, %v4040
          %v4042 = vpop.f32.mrb[0].mxu0
          %v4043 = vpop.f32.mrb[0].mxu0
          %v4044 = vadd.f32 %v3883, %v4043
          %v4045 = vpop.f32.mrb[0].mxu0
          %4046 = vmatprep.mubr.bf16.mxu0 %v2506
          %4047 = vmatmul.mubr.bf16.gmra.mrb[0].mxu0 %v2505
          %v4048 = vpop.f32.mrb[0].mxu0
          %v4049 = vadd.f32 %v3888, %v4048
          %v4050 = vpop.f32.mrb[0].mxu0
          %v4051 = vpop.f32.mrb[0].mxu0
          %v4052 = vadd.f32 %v3891, %v4051
          %v4053 = vpop.f32.mrb[0].mxu0
          %4054 = vmatprep.mubr.bf16.mxu0 %v2511
          %4055 = vmatmul.mubr.bf16.gmra.mrb[0].mxu0 %v2510
          %v4056 = vpop.f32.mrb[0].mxu0
          %v4057 = vadd.f32 %v3896, %v4056
          %v4058 = vpop.f32.mrb[0].mxu0
          %v4059 = vpop.f32.mrb[0].mxu0
          %v4060 = vadd.f32 %v3899, %v4059
          %v4061 = vpop.f32.mrb[0].mxu0
          %4062 = vmatprep.mubr.bf16.mxu0 %v2516
          %4063 = vmatmul.mubr.bf16.gmra.mrb[0].mxu0 %v2515
          %v4064 = vpop.f32.mrb[0].mxu0
          %v4065 = vadd.f32 %v3904, %v4064
          %v4066 = vpop.f32.mrb[0].mxu0
          %v4067 = vpop.f32.mrb[0].mxu0
          %v4068 = vadd.f32 %v3907, %v4067
          %v4069 = vpop.f32.mrb[0].mxu0
          %4070 = vmatprep.mubr.bf16.mxu0 %v2521
          %4071 = vmatmul.mubr.bf16.gmra.mrb[0].mxu0 %v2520
          %v4072 = vpop.f32.mrb[0].mxu0
          %v4073 = vadd.f32 %v3912, %v4072
          %v4074 = vpop.f32.mrb[0].mxu0
          %v4075 = vpop.f32.mrb[0].mxu0
          %v4076 = vadd.f32 %v3915, %v4075
          %v4077 = vpop.f32.mrb[0].mxu0
          %4078 = vmatprep.mubr.bf16.mxu0 %v2526
          %4079 = vmatmul.mubr.bf16.gmra.mrb[0].mxu0 %v2525
          %v4080 = vpop.f32.mrb[0].mxu0
          %v4081 = vadd.f32 %v3920, %v4080
          %v4082 = vpop.f32.mrb[0].mxu0
          %v4083 = vpop.f32.mrb[0].mxu0
          %v4084 = vadd.f32 %v3923, %v4083
          %v4085 = vpop.f32.mrb[0].mxu0
          %4086 = vmatprep.mubr.bf16.mxu0 %v2531
          %4087 = vmatmul.mubr.bf16.gmra.mrb[0].mxu0 %v2530
          %v4088 = vpop.f32.mrb[0].mxu0
          %v4089 = vadd.f32 %v3928, %v4088
          %v4090 = vpop.f32.mrb[0].mxu0
          %v4091 = vpop.f32.mrb[0].mxu0
          %v4092 = vadd.f32 %v3931, %v4091
          %v4093 = vpop.f32.mrb[0].mxu0
          %4094 = vdwg.mxu0
          %4095 = vmatprep.subr.bf16.mxu0 0
          %4096 = vmatpush1.bf16.msra.mxu0 %v3685
          %4097 = vmatprep.subr.bf16.mxu0 0
          %4098 = vmatpush1.bf16.msra.mxu0 %v3686
          %4099 = vmatprep.subr.bf16.mxu0 0
          %4100 = vmatpush1.bf16.msra.mxu0 %v3687
          %4101 = vmatprep.subr.bf16.mxu0 0
          %4102 = vmatpush1.bf16.msra.mxu0 %v3688
          %4103 = vmatprep.subr.bf16.mxu0 0
          %4104 = vmatpush1.bf16.msra.mxu0 0
          %4105 = vmatprep.subr.bf16.mxu0 0
          %4106 = vmatpush1.bf16.msra.mxu0 0
          %4107 = vmatprep.subr.bf16.mxu0 0
          %4108 = vmatpush1.bf16.msra.mxu0 0
          %4109 = vmatprep.subr.bf16.mxu0 0
          %4110 = vmatpush1.bf16.msra.mxu0 0
          %4111 = vmatprep.subr.bf16.mxu0 0
          %4112 = vmatpush1.bf16.msra.mxu0 0
          %4113 = vmatprep.subr.bf16.mxu0 0
          %4114 = vmatpush1.bf16.msra.mxu0 0
          %4115 = vmatprep.subr.bf16.mxu0 0
          %4116 = vmatpush1.bf16.msra.mxu0 0
          %4117 = vmatprep.subr.bf16.mxu0 0
          %4118 = vmatpush1.bf16.msra.mxu0 0
          %4119 = vmatprep.subr.bf16.mxu0 0
          %4120 = vmatpush1.bf16.msra.mxu0 0
          %4121 = vmatprep.subr.bf16.mxu0 0
          %4122 = vmatpush1.bf16.msra.mxu0 0
          %4123 = vmatprep.subr.bf16.mxu0 0
          %4124 = vmatpush1.bf16.msra.mxu0 0
          %4125 = vmatprep.subr.bf16.mxu0 0
          %4126 = vmatpush1.bf16.msra.mxu0 0
          %4127 = vmatprep.mubr.bf16.mxu0 0
          %4128 = vmatmul.mubr.bf16.gmra.mrb[0].mxu0 %v3726
          %v4129 = vpop.f32.mrb[0].mxu0
          %v4130 = vadd.f32 %v3969, %v4129
          %v4131 = vpop.f32.mrb[0].mxu0
          %v4132 = vpop.f32.mrb[0].mxu0
          %v4133 = vadd.f32 %v3972, %v4132
          %v4134 = vpop.f32.mrb[0].mxu0
          %4135 = vmatprep.mubr.bf16.mxu0 0
          %4136 = vmatmul.mubr.bf16.gmra.mrb[0].mxu0 %v3729
          %v4137 = vpop.f32.mrb[0].mxu0
          %v4138 = vadd.f32 %v3977, %v4137
          %v4139 = vpop.f32.mrb[0].mxu0
          %v4140 = vpop.f32.mrb[0].mxu0
          %v4141 = vadd.f32 %v3980, %v4140
          %v4142 = vpop.f32.mrb[0].mxu0
          %4143 = vmatprep.mubr.bf16.mxu0 0
          %4144 = vmatmul.mubr.bf16.gmra.mrb[0].mxu0 %v3732
          %v4145 = vpop.f32.mrb[0].mxu0
          %v4146 = vadd.f32 %v3985, %v4145
          %v4147 = vpop.f32.mrb[0].mxu0
          %v4148 = vpop.f32.mrb[0].mxu0
          %v4149 = vadd.f32 %v3988, %v4148
          %v4150 = vpop.f32.mrb[0].mxu0
          %4151 = vmatprep.mubr.bf16.mxu0 0
          %4152 = vmatmul.mubr.bf16.gmra.mrb[0].mxu0 %v3735
          %v4153 = vpop.f32.mrb[0].mxu0
          %v4154 = vadd.f32 %v3993, %v4153
          %v4155 = vpop.f32.mrb[0].mxu0
          %v4156 = vpop.f32.mrb[0].mxu0
          %v4157 = vadd.f32 %v3996, %v4156
          %v4158 = vpop.f32.mrb[0].mxu0
          %4159 = vmatprep.mubr.bf16.mxu0 0
          %4160 = vmatmul.mubr.bf16.gmra.mrb[0].mxu0 %v3738
          %v4161 = vpop.f32.mrb[0].mxu0
          %v4162 = vadd.f32 %v4001, %v4161
          %v4163 = vpop.f32.mrb[0].mxu0
          %v4164 = vpop.f32.mrb[0].mxu0
          %v4165 = vadd.f32 %v4004, %v4164
          %v4166 = vpop.f32.mrb[0].mxu0
          %4167 = vmatprep.mubr.bf16.mxu0 0
          %4168 = vmatmul.mubr.bf16.gmra.mrb[0].mxu0 %v3741
          %v4169 = vpop.f32.mrb[0].mxu0
          %v4170 = vadd.f32 %v4009, %v4169
          %v4171 = vpop.f32.mrb[0].mxu0
          %v4172 = vpop.f32.mrb[0].mxu0
          %v4173 = vadd.f32 %v4012, %v4172
          %v4174 = vpop.f32.mrb[0].mxu0
          %4175 = vmatprep.mubr.bf16.mxu0 0
          %4176 = vmatmul.mubr.bf16.gmra.mrb[0].mxu0 %v3744
          %v4177 = vpop.f32.mrb[0].mxu0
          %v4178 = vadd.f32 %v4017, %v4177
          %v4179 = vpop.f32.mrb[0].mxu0
          %v4180 = vpop.f32.mrb[0].mxu0
          %v4181 = vadd.f32 %v4020, %v4180
          %v4182 = vpop.f32.mrb[0].mxu0
          %4183 = vmatprep.mubr.bf16.mxu0 0
          %4184 = vmatmul.mubr.bf16.gmra.mrb[0].mxu0 %v3747
          %v4185 = vpop.f32.mrb[0].mxu0
          %v4186 = vadd.f32 %v4025, %v4185
          %v4187 = vpop.f32.mrb[0].mxu0
          %v4188 = vpop.f32.mrb[0].mxu0
          %v4189 = vadd.f32 %v4028, %v4188
          %v4190 = vpop.f32.mrb[0].mxu0
          %4191 = vmatprep.mubr.bf16.mxu0 0
          %4192 = vmatmul.mubr.bf16.gmra.mrb[0].mxu0 %v3750
          %v4193 = vpop.f32.mrb[0].mxu0
          %v4194 = vadd.f32 %v4033, %v4193
          %v4195 = vpop.f32.mrb[0].mxu0
          %v4196 = vpop.f32.mrb[0].mxu0
          %v4197 = vadd.f32 %v4036, %v4196
          %v4198 = vpop.f32.mrb[0].mxu0
          %4199 = vmatprep.mubr.bf16.mxu0 0
          %4200 = vmatmul.mubr.bf16.gmra.mrb[0].mxu0 %v3753
          %v4201 = vpop.f32.mrb[0].mxu0
          %v4202 = vadd.f32 %v4041, %v4201
          %v4203 = vpop.f32.mrb[0].mxu0
          %v4204 = vpop.f32.mrb[0].mxu0
          %v4205 = vadd.f32 %v4044, %v4204
          %v4206 = vpop.f32.mrb[0].mxu0
          %4207 = vmatprep.mubr.bf16.mxu0 0
          %4208 = vmatmul.mubr.bf16.gmra.mrb[0].mxu0 %v3756
          %v4209 = vpop.f32.mrb[0].mxu0
          %v4210 = vadd.f32 %v4049, %v4209
          %v4211 = vpop.f32.mrb[0].mxu0
          %v4212 = vpop.f32.mrb[0].mxu0
          %v4213 = vadd.f32 %v4052, %v4212
          %v4214 = vpop.f32.mrb[0].mxu0
          %4215 = vmatprep.mubr.bf16.mxu0 0
          %4216 = vmatmul.mubr.bf16.gmra.mrb[0].mxu0 %v3759
          %v4217 = vpop.f32.mrb[0].mxu0
          %v4218 = vadd.f32 %v4057, %v4217
          %v4219 = vpop.f32.mrb[0].mxu0
          %v4220 = vpop.f32.mrb[0].mxu0
          %v4221 = vadd.f32 %v4060, %v4220
          %v4222 = vpop.f32.mrb[0].mxu0
          %4223 = vmatprep.mubr.bf16.mxu0 0
          %4224 = vmatmul.mubr.bf16.gmra.mrb[0].mxu0 %v3762
          %v4225 = vpop.f32.mrb[0].mxu0
          %v4226 = vadd.f32 %v4065, %v4225
          %v4227 = vpop.f32.mrb[0].mxu0
          %v4228 = vpop.f32.mrb[0].mxu0
          %v4229 = vadd.f32 %v4068, %v4228
          %v4230 = vpop.f32.mrb[0].mxu0
          %4231 = vmatprep.mubr.bf16.mxu0 0
          %4232 = vmatmul.mubr.bf16.gmra.mrb[0].mxu0 %v3765
          %v4233 = vpop.f32.mrb[0].mxu0
          %v4234 = vadd.f32 %v4073, %v4233
          %v4235 = vpop.f32.mrb[0].mxu0
          %v4236 = vpop.f32.mrb[0].mxu0
          %v4237 = vadd.f32 %v4076, %v4236
          %v4238 = vpop.f32.mrb[0].mxu0
          %4239 = vmatprep.mubr.bf16.mxu0 0
          %4240 = vmatmul.mubr.bf16.gmra.mrb[0].mxu0 %v3768
          %v4241 = vpop.f32.mrb[0].mxu0
          %v4242 = vadd.f32 %v4081, %v4241
          %v4243 = vpop.f32.mrb[0].mxu0
          %v4244 = vpop.f32.mrb[0].mxu0
          %v4245 = vadd.f32 %v4084, %v4244
          %v4246 = vpop.f32.mrb[0].mxu0
          %4247 = vmatprep.mubr.bf16.mxu0 0
          %4248 = vmatmul.mubr.bf16.gmra.mrb[0].mxu0 %v3771
          %v4249 = vpop.f32.mrb[0].mxu0
          %v4250 = vadd.f32 %v4089, %v4249
          %v4251 = vpop.f32.mrb[0].mxu0
          %v4252 = vpop.f32.mrb[0].mxu0
          %v4253 = vadd.f32 %v4092, %v4252
          %v4254 = vpop.f32.mrb[0].mxu0
          %4255 = vdwg.mxu0
          %s4256 = sadd.s32 %s2444, 2
          %s4257 = smul.u32 %s4256, 80
          %s4258 = smul.addr %s4257, 8
          %s4259 = scalar_lea.vmem [#allocation3], %s4258
          %v4260 = vld [vmem:[%s4259] sm:$0xff]
          %v4261 = vld [vmem:[%s4259 + $0x8] sm:$0xff]
          %v4262 = vld [vmem:[%s4259 + $0x10] sm:$0xff]
          %v4263 = vld [vmem:[%s4259 + $0x18] sm:$0xff]
          %v4264 = vld [vmem:[%s4259 + $0x20] sm:$0xff]
          %v4265 = vld [vmem:[%s4259 + $0x28] sm:$0xff]
          %v4266 = vld [vmem:[%s4259 + $0x30] sm:$0xff]
          %v4267 = vld [vmem:[%s4259 + $0x38] sm:$0xff]
          %v4268 = vld [vmem:[%s4259 + $0x40] sm:$0xff]
          %v4269 = vld [vmem:[%s4259 + $0x48] sm:$0xff]
          %v4270 = vld [vmem:[%s4259 + $0x50] sm:$0xff]
          %v4271 = vld [vmem:[%s4259 + $0x58] sm:$0xff]
          %v4272 = vld [vmem:[%s4259 + $0x60] sm:$0xff]
          %v4273 = vld [vmem:[%s4259 + $0x68] sm:$0xff]
          %v4274 = vld [vmem:[%s4259 + $0x70] sm:$0xff]
          %v4275 = vld [vmem:[%s4259 + $0x78] sm:$0xff]
          %v4276 = vld [vmem:[%s4259 + $0x80] sm:$0xff]
          %v4277 = vld [vmem:[%s4259 + $0x88] sm:$0xff]
          %v4278 = vld [vmem:[%s4259 + $0x90] sm:$0xff]
          %v4279 = vld [vmem:[%s4259 + $0x98] sm:$0xff]
          %v4280 = vld [vmem:[%s4259 + $0xa0] sm:$0xff]
          %v4281 = vld [vmem:[%s4259 + $0xa8] sm:$0xff]
          %v4282 = vld [vmem:[%s4259 + $0xb0] sm:$0xff]
          %v4283 = vld [vmem:[%s4259 + $0xb8] sm:$0xff]
          %v4284 = vld [vmem:[%s4259 + $0xc0] sm:$0xff]
          %v4285 = vld [vmem:[%s4259 + $0xc8] sm:$0xff]
          %v4286 = vld [vmem:[%s4259 + $0xd0] sm:$0xff]
          %v4287 = vld [vmem:[%s4259 + $0xd8] sm:$0xff]
          %v4288 = vld [vmem:[%s4259 + $0xe0] sm:$0xff]
          %v4289 = vld [vmem:[%s4259 + $0xe8] sm:$0xff]
          %v4290 = vld [vmem:[%s4259 + $0xf0] sm:$0xff]
          %v4291 = vld [vmem:[%s4259 + $0xf8] sm:$0xff]
          %v4292 = vld [vmem:[%s4259 + $0x100] sm:$0xff]
          %v4293 = vld [vmem:[%s4259 + $0x108] sm:$0xff]
          %v4294 = vld [vmem:[%s4259 + $0x110] sm:$0xff]
          %v4295 = vld [vmem:[%s4259 + $0x118] sm:$0xff]
          %v4296 = vld [vmem:[%s4259 + $0x120] sm:$0xff]
          %v4297 = vld [vmem:[%s4259 + $0x128] sm:$0xff]
          %v4298 = vld [vmem:[%s4259 + $0x130] sm:$0xff]
          %v4299 = vld [vmem:[%s4259 + $0x138] sm:$0xff]
          %v4300 = vld [vmem:[%s4259 + $0x140] sm:$0xff]
          %v4301 = vld [vmem:[%s4259 + $0x148] sm:$0xff]
          %v4302 = vld [vmem:[%s4259 + $0x150] sm:$0xff]
          %v4303 = vld [vmem:[%s4259 + $0x158] sm:$0xff]
          %v4304 = vld [vmem:[%s4259 + $0x160] sm:$0xff]
          %v4305 = vld [vmem:[%s4259 + $0x168] sm:$0xff]
          %v4306 = vld [vmem:[%s4259 + $0x170] sm:$0xff]
          %v4307 = vld [vmem:[%s4259 + $0x178] sm:$0xff]
          %v4308 = vld [vmem:[%s4259 + $0x180] sm:$0xff]
          %v4309 = vld [vmem:[%s4259 + $0x188] sm:$0xff]
          %v4310 = vld [vmem:[%s4259 + $0x190] sm:$0xff]
          %v4311 = vld [vmem:[%s4259 + $0x198] sm:$0xff]
          %v4312 = vld [vmem:[%s4259 + $0x1a0] sm:$0xff]
          %v4313 = vld [vmem:[%s4259 + $0x1a8] sm:$0xff]
          %v4314 = vld [vmem:[%s4259 + $0x1b0] sm:$0xff]
          %v4315 = vld [vmem:[%s4259 + $0x1b8] sm:$0xff]
          %v4316 = vld [vmem:[%s4259 + $0x1c0] sm:$0xff]
          %v4317 = vld [vmem:[%s4259 + $0x1c8] sm:$0xff]
          %v4318 = vld [vmem:[%s4259 + $0x1d0] sm:$0xff]
          %v4319 = vld [vmem:[%s4259 + $0x1d8] sm:$0xff]
          %v4320 = vld [vmem:[%s4259 + $0x1e0] sm:$0xff]
          %v4321 = vld [vmem:[%s4259 + $0x1e8] sm:$0xff]
          %v4322 = vld [vmem:[%s4259 + $0x1f0] sm:$0xff]
          %v4323 = vld [vmem:[%s4259 + $0x1f8] sm:$0xff]
          %v4324 = vld [vmem:[%s4259 + $0x200] sm:$0xff]
          %v4325 = vld [vmem:[%s4259 + $0x208] sm:$0xff]
          %v4326 = vld [vmem:[%s4259 + $0x210] sm:$0xff]
          %v4327 = vld [vmem:[%s4259 + $0x218] sm:$0xff]
          %v4328 = vld [vmem:[%s4259 + $0x220] sm:$0xff]
          %v4329 = vld [vmem:[%s4259 + $0x228] sm:$0xff]
          %v4330 = vld [vmem:[%s4259 + $0x230] sm:$0xff]
          %v4331 = vld [vmem:[%s4259 + $0x238] sm:$0xff]
          %v4332 = vld [vmem:[%s4259 + $0x240] sm:$0xff]
          %v4333 = vld [vmem:[%s4259 + $0x248] sm:$0xff]
          %v4334 = vld [vmem:[%s4259 + $0x250] sm:$0xff]
          %v4335 = vld [vmem:[%s4259 + $0x258] sm:$0xff]
          %v4336 = vld [vmem:[%s4259 + $0x260] sm:$0xff]
          %v4337 = vld [vmem:[%s4259 + $0x268] sm:$0xff]
          %v4338 = vld [vmem:[%s4259 + $0x270] sm:$0xff]
          %v4339 = vld [vmem:[%s4259 + $0x278] sm:$0xff]
          %s4340 = scalar_lea.vmem %s7, 576
          %v4341 = vld [vmem:[%s4340] sm:$0xf]
          %v4342 = vld [vmem:[%s4340 + $0x4] sm:$0xf]
          %v4343 = vld [vmem:[%s4340 + $0x8] sm:$0xf]
          %v4344 = vld [vmem:[%s4340 + $0xc] sm:$0xf]
          %v4345 = vld [vmem:[%s4340 + $0x10] sm:$0xf]
          %v4346 = vld [vmem:[%s4340 + $0x14] sm:$0xf]
          %v4347 = vld [vmem:[%s4340 + $0x18] sm:$0xf]
          %v4348 = vld [vmem:[%s4340 + $0x1c] sm:$0xf]
          %v4349 = vld [vmem:[%s4340 + $0x20] sm:$0xf]
          %v4350 = vld [vmem:[%s4340 + $0x24] sm:$0xf]
          %v4351 = vld [vmem:[%s4340 + $0x28] sm:$0xf]
          %v4352 = vld [vmem:[%s4340 + $0x2c] sm:$0xf]
          %v4353 = vld [vmem:[%s4340 + $0x30] sm:$0xf]
          %v4354 = vld [vmem:[%s4340 + $0x34] sm:$0xf]
          %v4355 = vld [vmem:[%s4340 + $0x38] sm:$0xf]
          %v4356 = vld [vmem:[%s4340 + $0x3c] sm:$0xf]
          %v4357 = vld [vmem:[%s4340 + $0x40] sm:$0xf]
          %v4358 = vld [vmem:[%s4340 + $0x44] sm:$0xf]
          %v4359 = vld [vmem:[%s4340 + $0x48] sm:$0xf]
          %v4360 = vld [vmem:[%s4340 + $0x4c] sm:$0xf]
          %v4361 = vld [vmem:[%s4340 + $0x50] sm:$0xf]
          %v4362 = vld [vmem:[%s4340 + $0x54] sm:$0xf]
          %v4363 = vld [vmem:[%s4340 + $0x58] sm:$0xf]
          %v4364 = vld [vmem:[%s4340 + $0x5c] sm:$0xf]
          %v4365 = vld [vmem:[%s4340 + $0x60] sm:$0xf]
          %v4366 = vld [vmem:[%s4340 + $0x64] sm:$0xf]
          %v4367 = vld [vmem:[%s4340 + $0x68] sm:$0xf]
          %v4368 = vld [vmem:[%s4340 + $0x6c] sm:$0xf]
          %v4369 = vld [vmem:[%s4340 + $0x70] sm:$0xf]
          %v4370 = vld [vmem:[%s4340 + $0x74] sm:$0xf]
          %v4371 = vld [vmem:[%s4340 + $0x78] sm:$0xf]
          %v4372 = vld [vmem:[%s4340 + $0x7c] sm:$0xf]
          %v4373 = vld [vmem:[%s4340 + $0x80] sm:$0xf]
          %v4374 = vld [vmem:[%s4340 + $0x84] sm:$0xf]
          %v4375 = vld [vmem:[%s4340 + $0x88] sm:$0xf]
          %v4376 = vld [vmem:[%s4340 + $0x8c] sm:$0xf]
          %v4377 = vld [vmem:[%s4340 + $0x90] sm:$0xf]
          %v4378 = vld [vmem:[%s4340 + $0x94] sm:$0xf]
          %v4379 = vld [vmem:[%s4340 + $0x98] sm:$0xf]
          %v4380 = vld [vmem:[%s4340 + $0x9c] sm:$0xf]
          %v4381 = vld [vmem:[%s4340 + $0xa0] sm:$0xf]
          %v4382 = vld [vmem:[%s4340 + $0xa4] sm:$0xf]
          %v4383 = vld [vmem:[%s4340 + $0xa8] sm:$0xf]
          %v4384 = vld [vmem:[%s4340 + $0xac] sm:$0xf]
          %v4385 = vld [vmem:[%s4340 + $0xb0] sm:$0xf]
          %v4386 = vld [vmem:[%s4340 + $0xb4] sm:$0xf]
          %v4387 = vld [vmem:[%s4340 + $0xb8] sm:$0xf]
          %v4388 = vld [vmem:[%s4340 + $0xbc] sm:$0xf]
          %v4389 = vld [vmem:[%s4340 + $0xc0] sm:$0xf]
          %v4390 = vld [vmem:[%s4340 + $0xc4] sm:$0xf]
          %v4391 = vld [vmem:[%s4340 + $0xc8] sm:$0xf]
          %v4392 = vld [vmem:[%s4340 + $0xcc] sm:$0xf]
          %v4393 = vld [vmem:[%s4340 + $0xd0] sm:$0xf]
          %v4394 = vld [vmem:[%s4340 + $0xd4] sm:$0xf]
          %v4395 = vld [vmem:[%s4340 + $0xd8] sm:$0xf]
          %v4396 = vld [vmem:[%s4340 + $0xdc] sm:$0xf]
          %v4397 = vld [vmem:[%s4340 + $0xe0] sm:$0xf]
          %v4398 = vld [vmem:[%s4340 + $0xe4] sm:$0xf]
          %v4399 = vld [vmem:[%s4340 + $0xe8] sm:$0xf]
          %v4400 = vld [vmem:[%s4340 + $0xec] sm:$0xf]
          %v4401 = vld [vmem:[%s4340 + $0xf0] sm:$0xf]
          %v4402 = vld [vmem:[%s4340 + $0xf4] sm:$0xf]
          %v4403 = vld [vmem:[%s4340 + $0xf8] sm:$0xf]
          %v4404 = vld [vmem:[%s4340 + $0xfc] sm:$0xf]
          %v4405 = vld [vmem:[%s4340 + $0x100] sm:$0xf]
          %v4406 = vld [vmem:[%s4340 + $0x104] sm:$0xf]
          %v4407 = vld [vmem:[%s4340 + $0x108] sm:$0xf]
          %v4408 = vld [vmem:[%s4340 + $0x10c] sm:$0xf]
          %v4409 = vld [vmem:[%s4340 + $0x110] sm:$0xf]
          %v4410 = vld [vmem:[%s4340 + $0x114] sm:$0xf]
          %v4411 = vld [vmem:[%s4340 + $0x118] sm:$0xf]
          %v4412 = vld [vmem:[%s4340 + $0x11c] sm:$0xf]
          %v4485 = vunpack.c.l.b16 %v4341
          %v4486 = vunpack.c.l.b16 %v4342
          %v4487 = vunpack.c.l.b16 %v4343
          %v4488 = vunpack.c.l.b16 %v4344
          %v4489 = vunpack.c.l.b16 %v4345
          %v4490 = vunpack.c.l.b16 %v4346
          %v4491 = vunpack.c.l.b16 %v4347
          %v4492 = vunpack.c.l.b16 %v4348
          %v4493 = vunpack.c.l.b16 %v4349
          %v4494 = vunpack.c.l.b16 %v4350
          %v4495 = vunpack.c.l.b16 %v4351
          %v4496 = vunpack.c.l.b16 %v4352
          %v4497 = vunpack.c.l.b16 %v4353
          %v4498 = vunpack.c.l.b16 %v4354
          %v4499 = vunpack.c.l.b16 %v4355
          %v4500 = vunpack.c.l.b16 %v4356
          %v4501 = vunpack.c.l.b16 %v4357
          %v4502 = vunpack.c.l.b16 %v4358
          %v4503 = vunpack.c.l.b16 %v4359
          %v4504 = vunpack.c.l.b16 %v4360
          %v4505 = vunpack.c.l.b16 %v4361
          %v4506 = vunpack.c.l.b16 %v4362
          %v4507 = vunpack.c.l.b16 %v4363
          %v4508 = vunpack.c.l.b16 %v4364
          %v4509 = vunpack.c.l.b16 %v4365
          %v4510 = vunpack.c.l.b16 %v4366
          %v4511 = vunpack.c.l.b16 %v4367
          %v4512 = vunpack.c.l.b16 %v4368
          %v4513 = vunpack.c.l.b16 %v4369
          %v4514 = vunpack.c.l.b16 %v4370
          %v4515 = vunpack.c.l.b16 %v4371
          %v4516 = vunpack.c.l.b16 %v4372
          %v4517 = vunpack.c.l.b16 %v4373
          %v4518 = vunpack.c.l.b16 %v4374
          %v4519 = vunpack.c.l.b16 %v4375
          %v4520 = vunpack.c.l.b16 %v4376
          %v4521 = vunpack.c.l.b16 %v4377
          %v4522 = vunpack.c.l.b16 %v4378
          %v4523 = vunpack.c.l.b16 %v4379
          %v4524 = vunpack.c.l.b16 %v4380
          %v4525 = vunpack.c.l.b16 %v4381
          %v4526 = vunpack.c.l.b16 %v4382
          %v4527 = vunpack.c.l.b16 %v4383
          %v4528 = vunpack.c.l.b16 %v4384
          %v4529 = vunpack.c.l.b16 %v4385
          %v4530 = vunpack.c.l.b16 %v4386
          %v4531 = vunpack.c.l.b16 %v4387
          %v4532 = vunpack.c.l.b16 %v4388
          %v4533 = vunpack.c.l.b16 %v4389
          %v4534 = vunpack.c.l.b16 %v4390
          %v4535 = vunpack.c.l.b16 %v4391
          %v4536 = vunpack.c.l.b16 %v4392
          %v4537 = vunpack.c.l.b16 %v4393
          %v4538 = vunpack.c.l.b16 %v4394
          %v4539 = vunpack.c.l.b16 %v4395
          %v4540 = vunpack.c.l.b16 %v4396
          %v4541 = vunpack.c.l.b16 %v4397
          %v4542 = vunpack.c.l.b16 %v4398
          %v4543 = vunpack.c.l.b16 %v4399
          %v4544 = vunpack.c.l.b16 %v4400
          %v4545 = vunpack.c.l.b16 %v4401
          %v4546 = vunpack.c.l.b16 %v4402
          %v4547 = vunpack.c.l.b16 %v4403
          %v4548 = vunpack.c.l.b16 %v4404
          %v4549 = vunpack.c.l.b16 %v4405
          %v4550 = vunpack.c.l.b16 %v4406
          %v4551 = vunpack.c.l.b16 %v4407
          %v4552 = vunpack.c.l.b16 %v4408
          %v4553 = vunpack.c.l.b16 %v4409
          %v4554 = vunpack.c.l.b16 %v4410
          %v4555 = vunpack.c.l.b16 %v4411
          %v4556 = vunpack.c.l.b16 %v4412
          %v4557 = vpack.c.b16 %v4486, %v4485
          %v4558 = vpack.c.b16 %v4488, %v4487
          %v4559 = vpack.c.b16 %v4490, %v4489
          %v4560 = vpack.c.b16 %v4492, %v4491
          %v4561 = vpack.c.b16 %v4494, %v4493
          %v4562 = vpack.c.b16 %v4496, %v4495
          %v4563 = vpack.c.b16 %v4498, %v4497
          %v4564 = vpack.c.b16 %v4500, %v4499
          %v4565 = vpack.c.b16 %v4502, %v4501
          %v4566 = vpack.c.b16 %v4504, %v4503
          %v4567 = vpack.c.b16 %v4506, %v4505
          %v4568 = vpack.c.b16 %v4508, %v4507
          %v4569 = vpack.c.b16 %v4510, %v4509
          %v4570 = vpack.c.b16 %v4512, %v4511
          %v4571 = vpack.c.b16 %v4514, %v4513
          %v4572 = vpack.c.b16 %v4516, %v4515
          %v4573 = vpack.c.b16 %v4518, %v4517
          %v4574 = vpack.c.b16 %v4520, %v4519
          %v4575 = vpack.c.b16 %v4522, %v4521
          %v4576 = vpack.c.b16 %v4524, %v4523
          %v4577 = vpack.c.b16 %v4526, %v4525
          %v4578 = vpack.c.b16 %v4528, %v4527
          %v4579 = vpack.c.b16 %v4530, %v4529
          %v4580 = vpack.c.b16 %v4532, %v4531
          %v4581 = vpack.c.b16 %v4534, %v4533
          %v4582 = vpack.c.b16 %v4536, %v4535
          %v4583 = vpack.c.b16 %v4538, %v4537
          %v4584 = vpack.c.b16 %v4540, %v4539
          %v4585 = vpack.c.b16 %v4542, %v4541
          %v4586 = vpack.c.b16 %v4544, %v4543
          %v4587 = vpack.c.b16 %v4546, %v4545
          %v4588 = vpack.c.b16 %v4548, %v4547
          %v4589 = vpack.c.b16 %v4550, %v4549
          %v4590 = vpack.c.b16 %v4552, %v4551
          %v4591 = vpack.c.b16 %v4554, %v4553
          %v4592 = vpack.c.b16 %v4556, %v4555
          %v4630 = vsel %vm346, %v4264, 0
          %v4633 = vsel %vm346, %v4269, 0
          %v4636 = vsel %vm346, %v4274, 0
          %v4639 = vsel %vm346, %v4279, 0
          %v4642 = vsel %vm346, %v4284, 0
          %v4645 = vsel %vm346, %v4289, 0
          %v4648 = vsel %vm346, %v4294, 0
          %v4651 = vsel %vm346, %v4299, 0
          %v4654 = vsel %vm346, %v4304, 0
          %v4657 = vsel %vm346, %v4309, 0
          %v4660 = vsel %vm346, %v4314, 0
          %v4663 = vsel %vm346, %v4319, 0
          %v4666 = vsel %vm346, %v4324, 0
          %v4669 = vsel %vm346, %v4329, 0
          %v4672 = vsel %vm346, %v4334, 0
          %v4675 = vsel %vm346, %v4339, 0
          %4677 = vmatprep.subr.bf16.mxu0 0
          %4678 = vmatpush1.bf16.msra.mxu0 %v4557
          %4679 = vmatprep.subr.bf16.mxu0 0
          %4680 = vmatpush1.bf16.msra.mxu0 %v4558
          %4681 = vmatprep.subr.bf16.mxu0 0
          %4682 = vmatpush1.bf16.msra.mxu0 %v4559
          %4683 = vmatprep.subr.bf16.mxu0 0
          %4684 = vmatpush1.bf16.msra.mxu0 %v4560
          %4685 = vmatprep.subr.bf16.mxu0 0
          %4686 = vmatpush1.bf16.msra.mxu0 %v4561
          %4687 = vmatprep.subr.bf16.mxu0 0
          %4688 = vmatpush1.bf16.msra.mxu0 %v4562
          %4689 = vmatprep.subr.bf16.mxu0 0
          %4690 = vmatpush1.bf16.msra.mxu0 %v4563
          %4691 = vmatprep.subr.bf16.mxu0 0
          %4692 = vmatpush1.bf16.msra.mxu0 %v4564
          %4693 = vmatprep.subr.bf16.mxu0 0
          %4694 = vmatpush1.bf16.msra.mxu0 %v4565
          %4695 = vmatprep.subr.bf16.mxu0 0
          %4696 = vmatpush1.bf16.msra.mxu0 %v4566
          %4697 = vmatprep.subr.bf16.mxu0 0
          %4698 = vmatpush1.bf16.msra.mxu0 %v4567
          %4699 = vmatprep.subr.bf16.mxu0 0
          %4700 = vmatpush1.bf16.msra.mxu0 %v4568
          %4701 = vmatprep.subr.bf16.mxu0 0
          %4702 = vmatpush1.bf16.msra.mxu0 %v4569
          %4703 = vmatprep.subr.bf16.mxu0 0
          %4704 = vmatpush1.bf16.msra.mxu0 %v4570
          %4705 = vmatprep.subr.bf16.mxu0 0
          %4706 = vmatpush1.bf16.msra.mxu0 %v4571
          %4707 = vmatprep.subr.bf16.mxu0 0
          %4708 = vmatpush1.bf16.msra.mxu0 %v4572
          %4709 = vmatprep.mubr.bf16.mxu0 %v4261
          %4710 = vmatmul.mubr.bf16.gmra.mrb[0].mxu0 %v4260
          %v4711 = vpop.f32.mrb[0].mxu0
          %v4712 = vadd.f32 0.0, %v4711
          %v4713 = vpop.f32.mrb[0].mxu0
          %v4714 = vpop.f32.mrb[0].mxu0
          %v4715 = vadd.f32 0.0, %v4714
          %v4716 = vpop.f32.mrb[0].mxu0
          %4717 = vmatprep.mubr.bf16.mxu0 %v4266
          %4718 = vmatmul.mubr.bf16.gmra.mrb[0].mxu0 %v4265
          %v4719 = vpop.f32.mrb[0].mxu0
          %v4720 = vadd.f32 0.0, %v4719
          %v4721 = vpop.f32.mrb[0].mxu0
          %v4722 = vpop.f32.mrb[0].mxu0
          %v4723 = vadd.f32 0.0, %v4722
          %v4724 = vpop.f32.mrb[0].mxu0
          %4725 = vmatprep.mubr.bf16.mxu0 %v4271
          %4726 = vmatmul.mubr.bf16.gmra.mrb[0].mxu0 %v4270
          %v4727 = vpop.f32.mrb[0].mxu0
          %v4728 = vadd.f32 0.0, %v4727
          %v4729 = vpop.f32.mrb[0].mxu0
          %v4730 = vpop.f32.mrb[0].mxu0
          %v4731 = vadd.f32 0.0, %v4730
          %v4732 = vpop.f32.mrb[0].mxu0
          %4733 = vmatprep.mubr.bf16.mxu0 %v4276
          %4734 = vmatmul.mubr.bf16.gmra.mrb[0].mxu0 %v4275
          %v4735 = vpop.f32.mrb[0].mxu0
          %v4736 = vadd.f32 0.0, %v4735
          %v4737 = vpop.f32.mrb[0].mxu0
          %v4738 = vpop.f32.mrb[0].mxu0
          %v4739 = vadd.f32 0.0, %v4738
          %v4740 = vpop.f32.mrb[0].mxu0
          %4741 = vmatprep.mubr.bf16.mxu0 %v4281
          %4742 = vmatmul.mubr.bf16.gmra.mrb[0].mxu0 %v4280
          %v4743 = vpop.f32.mrb[0].mxu0
          %v4744 = vadd.f32 0.0, %v4743
          %v4745 = vpop.f32.mrb[0].mxu0
          %v4746 = vpop.f32.mrb[0].mxu0
          %v4747 = vadd.f32 0.0, %v4746
          %v4748 = vpop.f32.mrb[0].mxu0
          %4749 = vmatprep.mubr.bf16.mxu0 %v4286
          %4750 = vmatmul.mubr.bf16.gmra.mrb[0].mxu0 %v4285
          %v4751 = vpop.f32.mrb[0].mxu0
          %v4752 = vadd.f32 0.0, %v4751
          %v4753 = vpop.f32.mrb[0].mxu0
          %v4754 = vpop.f32.mrb[0].mxu0
          %v4755 = vadd.f32 0.0, %v4754
          %v4756 = vpop.f32.mrb[0].mxu0
          %4757 = vmatprep.mubr.bf16.mxu0 %v4291
          %4758 = vmatmul.mubr.bf16.gmra.mrb[0].mxu0 %v4290
          %v4759 = vpop.f32.mrb[0].mxu0
          %v4760 = vadd.f32 0.0, %v4759
          %v4761 = vpop.f32.mrb[0].mxu0
          %v4762 = vpop.f32.mrb[0].mxu0
          %v4763 = vadd.f32 0.0, %v4762
          %v4764 = vpop.f32.mrb[0].mxu0
          %4765 = vmatprep.mubr.bf16.mxu0 %v4296
          %4766 = vmatmul.mubr.bf16.gmra.mrb[0].mxu0 %v4295
          %v4767 = vpop.f32.mrb[0].mxu0
          %v4768 = vadd.f32 0.0, %v4767
          %v4769 = vpop.f32.mrb[0].mxu0
          %v4770 = vpop.f32.mrb[0].mxu0
          %v4771 = vadd.f32 0.0, %v4770
          %v4772 = vpop.f32.mrb[0].mxu0
          %4773 = vmatprep.mubr.bf16.mxu0 %v4301
          %4774 = vmatmul.mubr.bf16.gmra.mrb[0].mxu0 %v4300
          %v4775 = vpop.f32.mrb[0].mxu0
          %v4776 = vadd.f32 0.0, %v4775
          %v4777 = vpop.f32.mrb[0].mxu0
          %v4778 = vpop.f32.mrb[0].mxu0
          %v4779 = vadd.f32 0.0, %v4778
          %v4780 = vpop.f32.mrb[0].mxu0
          %4781 = vmatprep.mubr.bf16.mxu0 %v4306
          %4782 = vmatmul.mubr.bf16.gmra.mrb[0].mxu0 %v4305
          %v4783 = vpop.f32.mrb[0].mxu0
          %v4784 = vadd.f32 0.0, %v4783
          %v4785 = vpop.f32.mrb[0].mxu0
          %v4786 = vpop.f32.mrb[0].mxu0
          %v4787 = vadd.f32 0.0, %v4786
          %v4788 = vpop.f32.mrb[0].mxu0
          %4789 = vmatprep.mubr.bf16.mxu0 %v4311
          %4790 = vmatmul.mubr.bf16.gmra.mrb[0].mxu0 %v4310
          %v4791 = vpop.f32.mrb[0].mxu0
          %v4792 = vadd.f32 0.0, %v4791
          %v4793 = vpop.f32.mrb[0].mxu0
          %v4794 = vpop.f32.mrb[0].mxu0
          %v4795 = vadd.f32 0.0, %v4794
          %v4796 = vpop.f32.mrb[0].mxu0
          %4797 = vmatprep.mubr.bf16.mxu0 %v4316
          %4798 = vmatmul.mubr.bf16.gmra.mrb[0].mxu0 %v4315
          %v4799 = vpop.f32.mrb[0].mxu0
          %v4800 = vadd.f32 0.0, %v4799
          %v4801 = vpop.f32.mrb[0].mxu0
          %v4802 = vpop.f32.mrb[0].mxu0
          %v4803 = vadd.f32 0.0, %v4802
          %v4804 = vpop.f32.mrb[0].mxu0
          %4805 = vmatprep.mubr.bf16.mxu0 %v4321
          %4806 = vmatmul.mubr.bf16.gmra.mrb[0].mxu0 %v4320
          %v4807 = vpop.f32.mrb[0].mxu0
          %v4808 = vadd.f32 0.0, %v4807
          %v4809 = vpop.f32.mrb[0].mxu0
          %v4810 = vpop.f32.mrb[0].mxu0
          %v4811 = vadd.f32 0.0, %v4810
          %v4812 = vpop.f32.mrb[0].mxu0
          %4813 = vmatprep.mubr.bf16.mxu0 %v4326
          %4814 = vmatmul.mubr.bf16.gmra.mrb[0].mxu0 %v4325
          %v4815 = vpop.f32.mrb[0].mxu0
          %v4816 = vadd.f32 0.0, %v4815
          %v4817 = vpop.f32.mrb[0].mxu0
          %v4818 = vpop.f32.mrb[0].mxu0
          %v4819 = vadd.f32 0.0, %v4818
          %v4820 = vpop.f32.mrb[0].mxu0
          %4821 = vmatprep.mubr.bf16.mxu0 %v4331
          %4822 = vmatmul.mubr.bf16.gmra.mrb[0].mxu0 %v4330
          %v4823 = vpop.f32.mrb[0].mxu0
          %v4824 = vadd.f32 0.0, %v4823
          %v4825 = vpop.f32.mrb[0].mxu0
          %v4826 = vpop.f32.mrb[0].mxu0
          %v4827 = vadd.f32 0.0, %v4826
          %v4828 = vpop.f32.mrb[0].mxu0
          %4829 = vmatprep.mubr.bf16.mxu0 %v4336
          %4830 = vmatmul.mubr.bf16.gmra.mrb[0].mxu0 %v4335
          %v4831 = vpop.f32.mrb[0].mxu0
          %v4832 = vadd.f32 0.0, %v4831
          %v4833 = vpop.f32.mrb[0].mxu0
          %v4834 = vpop.f32.mrb[0].mxu0
          %v4835 = vadd.f32 0.0, %v4834
          %v4836 = vpop.f32.mrb[0].mxu0
          %4837 = vdwg.mxu0
          %4838 = vmatprep.subr.bf16.mxu0 0
          %4839 = vmatpush1.bf16.msra.mxu0 %v4573
          %4840 = vmatprep.subr.bf16.mxu0 0
          %4841 = vmatpush1.bf16.msra.mxu0 %v4574
          %4842 = vmatprep.subr.bf16.mxu0 0
          %4843 = vmatpush1.bf16.msra.mxu0 %v4575
          %4844 = vmatprep.subr.bf16.mxu0 0
          %4845 = vmatpush1.bf16.msra.mxu0 %v4576
          %4846 = vmatprep.subr.bf16.mxu0 0
          %4847 = vmatpush1.bf16.msra.mxu0 %v4577
          %4848 = vmatprep.subr.bf16.mxu0 0
          %4849 = vmatpush1.bf16.msra.mxu0 %v4578
          %4850 = vmatprep.subr.bf16.mxu0 0
          %4851 = vmatpush1.bf16.msra.mxu0 %v4579
          %4852 = vmatprep.subr.bf16.mxu0 0
          %4853 = vmatpush1.bf16.msra.mxu0 %v4580
          %4854 = vmatprep.subr.bf16.mxu0 0
          %4855 = vmatpush1.bf16.msra.mxu0 %v4581
          %4856 = vmatprep.subr.bf16.mxu0 0
          %4857 = vmatpush1.bf16.msra.mxu0 %v4582
          %4858 = vmatprep.subr.bf16.mxu0 0
          %4859 = vmatpush1.bf16.msra.mxu0 %v4583
          %4860 = vmatprep.subr.bf16.mxu0 0
          %4861 = vmatpush1.bf16.msra.mxu0 %v4584
          %4862 = vmatprep.subr.bf16.mxu0 0
          %4863 = vmatpush1.bf16.msra.mxu0 %v4585
          %4864 = vmatprep.subr.bf16.mxu0 0
          %4865 = vmatpush1.bf16.msra.mxu0 %v4586
          %4866 = vmatprep.subr.bf16.mxu0 0
          %4867 = vmatpush1.bf16.msra.mxu0 %v4587
          %4868 = vmatprep.subr.bf16.mxu0 0
          %4869 = vmatpush1.bf16.msra.mxu0 %v4588
          %4870 = vmatprep.mubr.bf16.mxu0 %v4263
          %4871 = vmatmul.mubr.bf16.gmra.mrb[0].mxu0 %v4262
          %v4872 = vpop.f32.mrb[0].mxu0
          %v4873 = vadd.f32 %v4712, %v4872
          %v4874 = vpop.f32.mrb[0].mxu0
          %v4875 = vpop.f32.mrb[0].mxu0
          %v4876 = vadd.f32 %v4715, %v4875
          %v4877 = vpop.f32.mrb[0].mxu0
          %4878 = vmatprep.mubr.bf16.mxu0 %v4268
          %4879 = vmatmul.mubr.bf16.gmra.mrb[0].mxu0 %v4267
          %v4880 = vpop.f32.mrb[0].mxu0
          %v4881 = vadd.f32 %v4720, %v4880
          %v4882 = vpop.f32.mrb[0].mxu0
          %v4883 = vpop.f32.mrb[0].mxu0
          %v4884 = vadd.f32 %v4723, %v4883
          %v4885 = vpop.f32.mrb[0].mxu0
          %4886 = vmatprep.mubr.bf16.mxu0 %v4273
          %4887 = vmatmul.mubr.bf16.gmra.mrb[0].mxu0 %v4272
          %v4888 = vpop.f32.mrb[0].mxu0
          %v4889 = vadd.f32 %v4728, %v4888
          %v4890 = vpop.f32.mrb[0].mxu0
          %v4891 = vpop.f32.mrb[0].mxu0
          %v4892 = vadd.f32 %v4731, %v4891
          %v4893 = vpop.f32.mrb[0].mxu0
          %4894 = vmatprep.mubr.bf16.mxu0 %v4278
          %4895 = vmatmul.mubr.bf16.gmra.mrb[0].mxu0 %v4277
          %v4896 = vpop.f32.mrb[0].mxu0
          %v4897 = vadd.f32 %v4736, %v4896
          %v4898 = vpop.f32.mrb[0].mxu0
          %v4899 = vpop.f32.mrb[0].mxu0
          %v4900 = vadd.f32 %v4739, %v4899
          %v4901 = vpop.f32.mrb[0].mxu0
          %4902 = vmatprep.mubr.bf16.mxu0 %v4283
          %4903 = vmatmul.mubr.bf16.gmra.mrb[0].mxu0 %v4282
          %v4904 = vpop.f32.mrb[0].mxu0
          %v4905 = vadd.f32 %v4744, %v4904
          %v4906 = vpop.f32.mrb[0].mxu0
          %v4907 = vpop.f32.mrb[0].mxu0
          %v4908 = vadd.f32 %v4747, %v4907
          %v4909 = vpop.f32.mrb[0].mxu0
          %4910 = vmatprep.mubr.bf16.mxu0 %v4288
          %4911 = vmatmul.mubr.bf16.gmra.mrb[0].mxu0 %v4287
          %v4912 = vpop.f32.mrb[0].mxu0
          %v4913 = vadd.f32 %v4752, %v4912
          %v4914 = vpop.f32.mrb[0].mxu0
          %v4915 = vpop.f32.mrb[0].mxu0
          %v4916 = vadd.f32 %v4755, %v4915
          %v4917 = vpop.f32.mrb[0].mxu0
          %4918 = vmatprep.mubr.bf16.mxu0 %v4293
          %4919 = vmatmul.mubr.bf16.gmra.mrb[0].mxu0 %v4292
          %v4920 = vpop.f32.mrb[0].mxu0
          %v4921 = vadd.f32 %v4760, %v4920
          %v4922 = vpop.f32.mrb[0].mxu0
          %v4923 = vpop.f32.mrb[0].mxu0
          %v4924 = vadd.f32 %v4763, %v4923
          %v4925 = vpop.f32.mrb[0].mxu0
          %4926 = vmatprep.mubr.bf16.mxu0 %v4298
          %4927 = vmatmul.mubr.bf16.gmra.mrb[0].mxu0 %v4297
          %v4928 = vpop.f32.mrb[0].mxu0
          %v4929 = vadd.f32 %v4768, %v4928
          %v4930 = vpop.f32.mrb[0].mxu0
          %v4931 = vpop.f32.mrb[0].mxu0
          %v4932 = vadd.f32 %v4771, %v4931
          %v4933 = vpop.f32.mrb[0].mxu0
          %4934 = vmatprep.mubr.bf16.mxu0 %v4303
          %4935 = vmatmul.mubr.bf16.gmra.mrb[0].mxu0 %v4302
          %v4936 = vpop.f32.mrb[0].mxu0
          %v4937 = vadd.f32 %v4776, %v4936
          %v4938 = vpop.f32.mrb[0].mxu0
          %v4939 = vpop.f32.mrb[0].mxu0
          %v4940 = vadd.f32 %v4779, %v4939
          %v4941 = vpop.f32.mrb[0].mxu0
          %4942 = vmatprep.mubr.bf16.mxu0 %v4308
          %4943 = vmatmul.mubr.bf16.gmra.mrb[0].mxu0 %v4307
          %v4944 = vpop.f32.mrb[0].mxu0
          %v4945 = vadd.f32 %v4784, %v4944
          %v4946 = vpop.f32.mrb[0].mxu0
          %v4947 = vpop.f32.mrb[0].mxu0
          %v4948 = vadd.f32 %v4787, %v4947
          %v4949 = vpop.f32.mrb[0].mxu0
          %4950 = vmatprep.mubr.bf16.mxu0 %v4313
          %4951 = vmatmul.mubr.bf16.gmra.mrb[0].mxu0 %v4312
          %v4952 = vpop.f32.mrb[0].mxu0
          %v4953 = vadd.f32 %v4792, %v4952
          %v4954 = vpop.f32.mrb[0].mxu0
          %v4955 = vpop.f32.mrb[0].mxu0
          %v4956 = vadd.f32 %v4795, %v4955
          %v4957 = vpop.f32.mrb[0].mxu0
          %4958 = vmatprep.mubr.bf16.mxu0 %v4318
          %4959 = vmatmul.mubr.bf16.gmra.mrb[0].mxu0 %v4317
          %v4960 = vpop.f32.mrb[0].mxu0
          %v4961 = vadd.f32 %v4800, %v4960
          %v4962 = vpop.f32.mrb[0].mxu0
          %v4963 = vpop.f32.mrb[0].mxu0
          %v4964 = vadd.f32 %v4803, %v4963
          %v4965 = vpop.f32.mrb[0].mxu0
          %4966 = vmatprep.mubr.bf16.mxu0 %v4323
          %4967 = vmatmul.mubr.bf16.gmra.mrb[0].mxu0 %v4322
          %v4968 = vpop.f32.mrb[0].mxu0
          %v4969 = vadd.f32 %v4808, %v4968
          %v4970 = vpop.f32.mrb[0].mxu0
          %v4971 = vpop.f32.mrb[0].mxu0
          %v4972 = vadd.f32 %v4811, %v4971
          %v4973 = vpop.f32.mrb[0].mxu0
          %4974 = vmatprep.mubr.bf16.mxu0 %v4328
          %4975 = vmatmul.mubr.bf16.gmra.mrb[0].mxu0 %v4327
          %v4976 = vpop.f32.mrb[0].mxu0
          %v4977 = vadd.f32 %v4816, %v4976
          %v4978 = vpop.f32.mrb[0].mxu0
          %v4979 = vpop.f32.mrb[0].mxu0
          %v4980 = vadd.f32 %v4819, %v4979
          %v4981 = vpop.f32.mrb[0].mxu0
          %4982 = vmatprep.mubr.bf16.mxu0 %v4333
          %4983 = vmatmul.mubr.bf16.gmra.mrb[0].mxu0 %v4332
          %v4984 = vpop.f32.mrb[0].mxu0
          %v4985 = vadd.f32 %v4824, %v4984
          %v4986 = vpop.f32.mrb[0].mxu0
          %v4987 = vpop.f32.mrb[0].mxu0
          %v4988 = vadd.f32 %v4827, %v4987
          %v4989 = vpop.f32.mrb[0].mxu0
          %4990 = vmatprep.mubr.bf16.mxu0 %v4338
          %4991 = vmatmul.mubr.bf16.gmra.mrb[0].mxu0 %v4337
          %v4992 = vpop.f32.mrb[0].mxu0
          %v4993 = vadd.f32 %v4832, %v4992
          %v4994 = vpop.f32.mrb[0].mxu0
          %v4995 = vpop.f32.mrb[0].mxu0
          %v4996 = vadd.f32 %v4835, %v4995
          %v4997 = vpop.f32.mrb[0].mxu0
          %4998 = vdwg.mxu0
          %4999 = vmatprep.subr.bf16.mxu0 0
          %5000 = vmatpush1.bf16.msra.mxu0 %v4589
          %5001 = vmatprep.subr.bf16.mxu0 0
          %5002 = vmatpush1.bf16.msra.mxu0 %v4590
          %5003 = vmatprep.subr.bf16.mxu0 0
          %5004 = vmatpush1.bf16.msra.mxu0 %v4591
          %5005 = vmatprep.subr.bf16.mxu0 0
          %5006 = vmatpush1.bf16.msra.mxu0 %v4592
          %5007 = vmatprep.subr.bf16.mxu0 0
          %5008 = vmatpush1.bf16.msra.mxu0 0
          %5009 = vmatprep.subr.bf16.mxu0 0
          %5010 = vmatpush1.bf16.msra.mxu0 0
          %5011 = vmatprep.subr.bf16.mxu0 0
          %5012 = vmatpush1.bf16.msra.mxu0 0
          %5013 = vmatprep.subr.bf16.mxu0 0
          %5014 = vmatpush1.bf16.msra.mxu0 0
          %5015 = vmatprep.subr.bf16.mxu0 0
          %5016 = vmatpush1.bf16.msra.mxu0 0
          %5017 = vmatprep.subr.bf16.mxu0 0
          %5018 = vmatpush1.bf16.msra.mxu0 0
          %5019 = vmatprep.subr.bf16.mxu0 0
          %5020 = vmatpush1.bf16.msra.mxu0 0
          %5021 = vmatprep.subr.bf16.mxu0 0
          %5022 = vmatpush1.bf16.msra.mxu0 0
          %5023 = vmatprep.subr.bf16.mxu0 0
          %5024 = vmatpush1.bf16.msra.mxu0 0
          %5025 = vmatprep.subr.bf16.mxu0 0
          %5026 = vmatpush1.bf16.msra.mxu0 0
          %5027 = vmatprep.subr.bf16.mxu0 0
          %5028 = vmatpush1.bf16.msra.mxu0 0
          %5029 = vmatprep.subr.bf16.mxu0 0
          %5030 = vmatpush1.bf16.msra.mxu0 0
          %5031 = vmatprep.mubr.bf16.mxu0 0
          %5032 = vmatmul.mubr.bf16.gmra.mrb[0].mxu0 %v4630
          %v5033 = vpop.f32.mrb[0].mxu0
          %v5034 = vadd.f32 %v4873, %v5033
          %v5035 = vpop.f32.mrb[0].mxu0
          %v5036 = vpop.f32.mrb[0].mxu0
          %v5037 = vadd.f32 %v4876, %v5036
          %v5038 = vpop.f32.mrb[0].mxu0
          %5039 = vmatprep.mubr.bf16.mxu0 0
          %5040 = vmatmul.mubr.bf16.gmra.mrb[0].mxu0 %v4633
          %v5041 = vpop.f32.mrb[0].mxu0
          %v5042 = vadd.f32 %v4881, %v5041
          %v5043 = vpop.f32.mrb[0].mxu0
          %v5044 = vpop.f32.mrb[0].mxu0
          %v5045 = vadd.f32 %v4884, %v5044
          %v5046 = vpop.f32.mrb[0].mxu0
          %5047 = vmatprep.mubr.bf16.mxu0 0
          %5048 = vmatmul.mubr.bf16.gmra.mrb[0].mxu0 %v4636
          %v5049 = vpop.f32.mrb[0].mxu0
          %v5050 = vadd.f32 %v4889, %v5049
          %v5051 = vpop.f32.mrb[0].mxu0
          %v5052 = vpop.f32.mrb[0].mxu0
          %v5053 = vadd.f32 %v4892, %v5052
          %v5054 = vpop.f32.mrb[0].mxu0
          %5055 = vmatprep.mubr.bf16.mxu0 0
          %5056 = vmatmul.mubr.bf16.gmra.mrb[0].mxu0 %v4639
          %v5057 = vpop.f32.mrb[0].mxu0
          %v5058 = vadd.f32 %v4897, %v5057
          %v5059 = vpop.f32.mrb[0].mxu0
          %v5060 = vpop.f32.mrb[0].mxu0
          %v5061 = vadd.f32 %v4900, %v5060
          %v5062 = vpop.f32.mrb[0].mxu0
          %5063 = vmatprep.mubr.bf16.mxu0 0
          %5064 = vmatmul.mubr.bf16.gmra.mrb[0].mxu0 %v4642
          %v5065 = vpop.f32.mrb[0].mxu0
          %v5066 = vadd.f32 %v4905, %v5065
          %v5067 = vpop.f32.mrb[0].mxu0
          %v5068 = vpop.f32.mrb[0].mxu0
          %v5069 = vadd.f32 %v4908, %v5068
          %v5070 = vpop.f32.mrb[0].mxu0
          %5071 = vmatprep.mubr.bf16.mxu0 0
          %5072 = vmatmul.mubr.bf16.gmra.mrb[0].mxu0 %v4645
          %v5073 = vpop.f32.mrb[0].mxu0
          %v5074 = vadd.f32 %v4913, %v5073
          %v5075 = vpop.f32.mrb[0].mxu0
          %v5076 = vpop.f32.mrb[0].mxu0
          %v5077 = vadd.f32 %v4916, %v5076
          %v5078 = vpop.f32.mrb[0].mxu0
          %5079 = vmatprep.mubr.bf16.mxu0 0
          %5080 = vmatmul.mubr.bf16.gmra.mrb[0].mxu0 %v4648
          %v5081 = vpop.f32.mrb[0].mxu0
          %v5082 = vadd.f32 %v4921, %v5081
          %v5083 = vpop.f32.mrb[0].mxu0
          %v5084 = vpop.f32.mrb[0].mxu0
          %v5085 = vadd.f32 %v4924, %v5084
          %v5086 = vpop.f32.mrb[0].mxu0
          %5087 = vmatprep.mubr.bf16.mxu0 0
          %5088 = vmatmul.mubr.bf16.gmra.mrb[0].mxu0 %v4651
          %v5089 = vpop.f32.mrb[0].mxu0
          %v5090 = vadd.f32 %v4929, %v5089
          %v5091 = vpop.f32.mrb[0].mxu0
          %v5092 = vpop.f32.mrb[0].mxu0
          %v5093 = vadd.f32 %v4932, %v5092
          %v5094 = vpop.f32.mrb[0].mxu0
          %5095 = vmatprep.mubr.bf16.mxu0 0
          %5096 = vmatmul.mubr.bf16.gmra.mrb[0].mxu0 %v4654
          %v5097 = vpop.f32.mrb[0].mxu0
          %v5098 = vadd.f32 %v4937, %v5097
          %v5099 = vpop.f32.mrb[0].mxu0
          %v5100 = vpop.f32.mrb[0].mxu0
          %v5101 = vadd.f32 %v4940, %v5100
          %v5102 = vpop.f32.mrb[0].mxu0
          %5103 = vmatprep.mubr.bf16.mxu0 0
          %5104 = vmatmul.mubr.bf16.gmra.mrb[0].mxu0 %v4657
          %v5105 = vpop.f32.mrb[0].mxu0
          %v5106 = vadd.f32 %v4945, %v5105
          %v5107 = vpop.f32.mrb[0].mxu0
          %v5108 = vpop.f32.mrb[0].mxu0
          %v5109 = vadd.f32 %v4948, %v5108
          %v5110 = vpop.f32.mrb[0].mxu0
          %5111 = vmatprep.mubr.bf16.mxu0 0
          %5112 = vmatmul.mubr.bf16.gmra.mrb[0].mxu0 %v4660
          %v5113 = vpop.f32.mrb[0].mxu0
          %v5114 = vadd.f32 %v4953, %v5113
          %v5115 = vpop.f32.mrb[0].mxu0
          %v5116 = vpop.f32.mrb[0].mxu0
          %v5117 = vadd.f32 %v4956, %v5116
          %v5118 = vpop.f32.mrb[0].mxu0
          %5119 = vmatprep.mubr.bf16.mxu0 0
          %5120 = vmatmul.mubr.bf16.gmra.mrb[0].mxu0 %v4663
          %v5121 = vpop.f32.mrb[0].mxu0
          %v5122 = vadd.f32 %v4961, %v5121
          %v5123 = vpop.f32.mrb[0].mxu0
          %v5124 = vpop.f32.mrb[0].mxu0
          %v5125 = vadd.f32 %v4964, %v5124
          %v5126 = vpop.f32.mrb[0].mxu0
          %5127 = vmatprep.mubr.bf16.mxu0 0
          %5128 = vmatmul.mubr.bf16.gmra.mrb[0].mxu0 %v4666
          %v5129 = vpop.f32.mrb[0].mxu0
          %v5130 = vadd.f32 %v4969, %v5129
          %v5131 = vpop.f32.mrb[0].mxu0
          %v5132 = vpop.f32.mrb[0].mxu0
          %v5133 = vadd.f32 %v4972, %v5132
          %v5134 = vpop.f32.mrb[0].mxu0
          %5135 = vmatprep.mubr.bf16.mxu0 0
          %5136 = vmatmul.mubr.bf16.gmra.mrb[0].mxu0 %v4669
          %v5137 = vpop.f32.mrb[0].mxu0
          %v5138 = vadd.f32 %v4977, %v5137
          %v5139 = vpop.f32.mrb[0].mxu0
          %v5140 = vpop.f32.mrb[0].mxu0
          %v5141 = vadd.f32 %v4980, %v5140
          %v5142 = vpop.f32.mrb[0].mxu0
          %5143 = vmatprep.mubr.bf16.mxu0 0
          %5144 = vmatmul.mubr.bf16.gmra.mrb[0].mxu0 %v4672
          %v5145 = vpop.f32.mrb[0].mxu0
          %v5146 = vadd.f32 %v4985, %v5145
          %v5147 = vpop.f32.mrb[0].mxu0
          %v5148 = vpop.f32.mrb[0].mxu0
          %v5149 = vadd.f32 %v4988, %v5148
          %v5150 = vpop.f32.mrb[0].mxu0
          %5151 = vmatprep.mubr.bf16.mxu0 0
          %5152 = vmatmul.mubr.bf16.gmra.mrb[0].mxu0 %v4675
          %v5153 = vpop.f32.mrb[0].mxu0
          %v5154 = vadd.f32 %v4993, %v5153
          %v5155 = vpop.f32.mrb[0].mxu0
          %v5156 = vpop.f32.mrb[0].mxu0
          %v5157 = vadd.f32 %v4996, %v5156
          %v5158 = vpop.f32.mrb[0].mxu0
          %5159 = vdwg.mxu0
          %v5160 = vadd.f32 %v4130, %v5034
          %v5161 = vadd.f32 %v4133, %v5037
          %v5162 = vadd.f32 %v4138, %v5042
          %v5163 = vadd.f32 %v4141, %v5045
          %v5164 = vadd.f32 %v4146, %v5050
          %v5165 = vadd.f32 %v4149, %v5053
          %v5166 = vadd.f32 %v4154, %v5058
          %v5167 = vadd.f32 %v4157, %v5061
          %v5168 = vadd.f32 %v4162, %v5066
          %v5169 = vadd.f32 %v4165, %v5069
          %v5170 = vadd.f32 %v4170, %v5074
          %v5171 = vadd.f32 %v4173, %v5077
          %v5172 = vadd.f32 %v4178, %v5082
          %v5173 = vadd.f32 %v4181, %v5085
          %v5174 = vadd.f32 %v4186, %v5090
          %v5175 = vadd.f32 %v4189, %v5093
          %v5176 = vadd.f32 %v4194, %v5098
          %v5177 = vadd.f32 %v4197, %v5101
          %v5178 = vadd.f32 %v4202, %v5106
          %v5179 = vadd.f32 %v4205, %v5109
          %v5180 = vadd.f32 %v4210, %v5114
          %v5181 = vadd.f32 %v4213, %v5117
          %v5182 = vadd.f32 %v4218, %v5122
          %v5183 = vadd.f32 %v4221, %v5125
          %v5184 = vadd.f32 %v4226, %v5130
          %v5185 = vadd.f32 %v4229, %v5133
          %v5186 = vadd.f32 %v4234, %v5138
          %v5187 = vadd.f32 %v4237, %v5141
          %v5188 = vadd.f32 %v4242, %v5146
          %v5189 = vadd.f32 %v4245, %v5149
          %v5190 = vadd.f32 %v4250, %v5154
          %v5191 = vadd.f32 %v4253, %v5157
          %v5192 = vmax.f32 %v5160, 0.0
          %v5193 = vmax.f32 %v5161, 0.0
          %v5194 = vmax.f32 %v5162, 0.0
          %v5195 = vmax.f32 %v5163, 0.0
          %v5196 = vmax.f32 %v5164, 0.0
          %v5197 = vmax.f32 %v5165, 0.0
          %v5198 = vmax.f32 %v5166, 0.0
          %v5199 = vmax.f32 %v5167, 0.0
          %v5200 = vmax.f32 %v5168, 0.0
          %v5201 = vmax.f32 %v5169, 0.0
          %v5202 = vmax.f32 %v5170, 0.0
          %v5203 = vmax.f32 %v5171, 0.0
          %v5204 = vmax.f32 %v5172, 0.0
          %v5205 = vmax.f32 %v5173, 0.0
          %v5206 = vmax.f32 %v5174, 0.0
          %v5207 = vmax.f32 %v5175, 0.0
          %v5208 = vmax.f32 %v5176, 0.0
          %v5209 = vmax.f32 %v5177, 0.0
          %v5210 = vmax.f32 %v5178, 0.0
          %v5211 = vmax.f32 %v5179, 0.0
          %v5212 = vmax.f32 %v5180, 0.0
          %v5213 = vmax.f32 %v5181, 0.0
          %v5214 = vmax.f32 %v5182, 0.0
          %v5215 = vmax.f32 %v5183, 0.0
          %v5216 = vmax.f32 %v5184, 0.0
          %v5217 = vmax.f32 %v5185, 0.0
          %v5218 = vmax.f32 %v5186, 0.0
          %v5219 = vmax.f32 %v5187, 0.0
          %v5220 = vmax.f32 %v5188, 0.0
          %v5221 = vmax.f32 %v5189, 0.0
          %v5222 = vmax.f32 %v5190, 0.0
          %v5223 = vmax.f32 %v5191, 0.0
          %v5224 = vpack.c.bf16 %v5193, %v5192
          %v5225 = vpack.c.bf16 %v5195, %v5194
          %v5226 = vpack.c.bf16 %v5197, %v5196
          %v5227 = vpack.c.bf16 %v5199, %v5198
          %v5228 = vpack.c.bf16 %v5201, %v5200
          %v5229 = vpack.c.bf16 %v5203, %v5202
          %v5230 = vpack.c.bf16 %v5205, %v5204
          %v5231 = vpack.c.bf16 %v5207, %v5206
          %v5232 = vpack.c.bf16 %v5209, %v5208
          %v5233 = vpack.c.bf16 %v5211, %v5210
          %v5234 = vpack.c.bf16 %v5213, %v5212
          %v5235 = vpack.c.bf16 %v5215, %v5214
          %v5236 = vpack.c.bf16 %v5217, %v5216
          %v5237 = vpack.c.bf16 %v5219, %v5218
          %v5238 = vpack.c.bf16 %v5221, %v5220
          %v5239 = vpack.c.bf16 %v5223, %v5222
          %v5240 = vld [vmem:[%s8] sm:$0xf]
          %v5241 = vld [vmem:[%s8 + $0x4] sm:$0xf]
          %v5242 = vld [vmem:[%s8 + $0x8] sm:$0xf]
          %v5243 = vld [vmem:[%s8 + $0xc] sm:$0xf]
          %v5248 = vunpack.c.l.b16 %v5240
          %v5249 = vunpack.c.l.b16 %v5241
          %v5250 = vunpack.c.l.b16 %v5242
          %v5251 = vunpack.c.l.b16 %v5243
          %v5252 = vpack.c.b16 %v5249, %v5248
          %v5253 = vpack.c.b16 %v5251, %v5250
          %v5257 = vsel %vm522, %v5224, 0
          %v5260 = vsel %vm522, %v5225, 0
          %v5263 = vsel %vm522, %v5226, 0
          %v5266 = vsel %vm522, %v5227, 0
          %v5269 = vsel %vm522, %v5228, 0
          %v5272 = vsel %vm522, %v5229, 0
          %v5275 = vsel %vm522, %v5230, 0
          %v5278 = vsel %vm522, %v5231, 0
          %v5281 = vsel %vm522, %v5232, 0
          %v5284 = vsel %vm522, %v5233, 0
          %v5287 = vsel %vm522, %v5234, 0
          %v5290 = vsel %vm522, %v5235, 0
          %v5293 = vsel %vm522, %v5236, 0
          %v5296 = vsel %vm522, %v5237, 0
          %v5299 = vsel %vm522, %v5238, 0
          %v5302 = vsel %vm522, %v5239, 0
          %5304 = vmatprep.subr.bf16.mxu0 0
          %5305 = vmatpush1.bf16.msra.mxu0 %v5252
          %5306 = vmatprep.subr.bf16.mxu0 0
          %5307 = vmatpush1.bf16.msra.mxu0 %v5253
          %5308 = vmatprep.subr.bf16.mxu0 0
          %5309 = vmatpush1.bf16.msra.mxu0 0
          %5310 = vmatprep.subr.bf16.mxu0 0
          %5311 = vmatpush1.bf16.msra.mxu0 0
          %5312 = vmatprep.subr.bf16.mxu0 0
          %5313 = vmatpush1.bf16.msra.mxu0 0
          %5314 = vmatprep.subr.bf16.mxu0 0
          %5315 = vmatpush1.bf16.msra.mxu0 0
          %5316 = vmatprep.subr.bf16.mxu0 0
          %5317 = vmatpush1.bf16.msra.mxu0 0
          %5318 = vmatprep.subr.bf16.mxu0 0
          %5319 = vmatpush1.bf16.msra.mxu0 0
          %5320 = vmatprep.subr.bf16.mxu0 0
          %5321 = vmatpush1.bf16.msra.mxu0 0
          %5322 = vmatprep.subr.bf16.mxu0 0
          %5323 = vmatpush1.bf16.msra.mxu0 0
          %5324 = vmatprep.subr.bf16.mxu0 0
          %5325 = vmatpush1.bf16.msra.mxu0 0
          %5326 = vmatprep.subr.bf16.mxu0 0
          %5327 = vmatpush1.bf16.msra.mxu0 0
          %5328 = vmatprep.subr.bf16.mxu0 0
          %5329 = vmatpush1.bf16.msra.mxu0 0
          %5330 = vmatprep.subr.bf16.mxu0 0
          %5331 = vmatpush1.bf16.msra.mxu0 0
          %5332 = vmatprep.subr.bf16.mxu0 0
          %5333 = vmatpush1.bf16.msra.mxu0 0
          %5334 = vmatprep.subr.bf16.mxu0 0
          %5335 = vmatpush1.bf16.msra.mxu0 0
          %5336 = vmatprep.mubr.bf16.mxu0 0
          %5337 = vmatmul.mubr.bf16.gmra.mrb[0].mxu0 %v5257
          %v5338 = vpop.f32.mrb[0].mxu0
          %v5339 = vadd.f32 0.0, %v5338
          %v5340 = vpop.f32.mrb[0].mxu0
          %v5341 = vpop.f32.mrb[0].mxu0
          %v5342 = vadd.f32 0.0, %v5341
          %v5343 = vpop.f32.mrb[0].mxu0
          %5344 = vmatprep.mubr.bf16.mxu0 0
          %5345 = vmatmul.mubr.bf16.gmra.mrb[0].mxu0 %v5260
          %v5346 = vpop.f32.mrb[0].mxu0
          %v5347 = vadd.f32 0.0, %v5346
          %v5348 = vpop.f32.mrb[0].mxu0
          %v5349 = vpop.f32.mrb[0].mxu0
          %v5350 = vadd.f32 0.0, %v5349
          %v5351 = vpop.f32.mrb[0].mxu0
          %5352 = vmatprep.mubr.bf16.mxu0 0
          %5353 = vmatmul.mubr.bf16.gmra.mrb[0].mxu0 %v5263
          %v5354 = vpop.f32.mrb[0].mxu0
          %v5355 = vadd.f32 0.0, %v5354
          %v5356 = vpop.f32.mrb[0].mxu0
          %v5357 = vpop.f32.mrb[0].mxu0
          %v5358 = vadd.f32 0.0, %v5357
          %v5359 = vpop.f32.mrb[0].mxu0
          %5360 = vmatprep.mubr.bf16.mxu0 0
          %5361 = vmatmul.mubr.bf16.gmra.mrb[0].mxu0 %v5266
          %v5362 = vpop.f32.mrb[0].mxu0
          %v5363 = vadd.f32 0.0, %v5362
          %v5364 = vpop.f32.mrb[0].mxu0
          %v5365 = vpop.f32.mrb[0].mxu0
          %v5366 = vadd.f32 0.0, %v5365
          %v5367 = vpop.f32.mrb[0].mxu0
          %5368 = vmatprep.mubr.bf16.mxu0 0
          %5369 = vmatmul.mubr.bf16.gmra.mrb[0].mxu0 %v5269
          %v5370 = vpop.f32.mrb[0].mxu0
          %v5371 = vadd.f32 0.0, %v5370
          %v5372 = vpop.f32.mrb[0].mxu0
          %v5373 = vpop.f32.mrb[0].mxu0
          %v5374 = vadd.f32 0.0, %v5373
          %v5375 = vpop.f32.mrb[0].mxu0
          %5376 = vmatprep.mubr.bf16.mxu0 0
          %5377 = vmatmul.mubr.bf16.gmra.mrb[0].mxu0 %v5272
          %v5378 = vpop.f32.mrb[0].mxu0
          %v5379 = vadd.f32 0.0, %v5378
          %v5380 = vpop.f32.mrb[0].mxu0
          %v5381 = vpop.f32.mrb[0].mxu0
          %v5382 = vadd.f32 0.0, %v5381
          %v5383 = vpop.f32.mrb[0].mxu0
          %5384 = vmatprep.mubr.bf16.mxu0 0
          %5385 = vmatmul.mubr.bf16.gmra.mrb[0].mxu0 %v5275
          %v5386 = vpop.f32.mrb[0].mxu0
          %v5387 = vadd.f32 0.0, %v5386
          %v5388 = vpop.f32.mrb[0].mxu0
          %v5389 = vpop.f32.mrb[0].mxu0
          %v5390 = vadd.f32 0.0, %v5389
          %v5391 = vpop.f32.mrb[0].mxu0
          %5392 = vmatprep.mubr.bf16.mxu0 0
          %5393 = vmatmul.mubr.bf16.gmra.mrb[0].mxu0 %v5278
          %v5394 = vpop.f32.mrb[0].mxu0
          %v5395 = vadd.f32 0.0, %v5394
          %v5396 = vpop.f32.mrb[0].mxu0
          %v5397 = vpop.f32.mrb[0].mxu0
          %v5398 = vadd.f32 0.0, %v5397
          %v5399 = vpop.f32.mrb[0].mxu0
          %5400 = vmatprep.mubr.bf16.mxu0 0
          %5401 = vmatmul.mubr.bf16.gmra.mrb[0].mxu0 %v5281
          %v5402 = vpop.f32.mrb[0].mxu0
          %v5403 = vadd.f32 0.0, %v5402
          %v5404 = vpop.f32.mrb[0].mxu0
          %v5405 = vpop.f32.mrb[0].mxu0
          %v5406 = vadd.f32 0.0, %v5405
          %v5407 = vpop.f32.mrb[0].mxu0
          %5408 = vmatprep.mubr.bf16.mxu0 0
          %5409 = vmatmul.mubr.bf16.gmra.mrb[0].mxu0 %v5284
          %v5410 = vpop.f32.mrb[0].mxu0
          %v5411 = vadd.f32 0.0, %v5410
          %v5412 = vpop.f32.mrb[0].mxu0
          %v5413 = vpop.f32.mrb[0].mxu0
          %v5414 = vadd.f32 0.0, %v5413
          %v5415 = vpop.f32.mrb[0].mxu0
          %5416 = vmatprep.mubr.bf16.mxu0 0
          %5417 = vmatmul.mubr.bf16.gmra.mrb[0].mxu0 %v5287
          %v5418 = vpop.f32.mrb[0].mxu0
          %v5419 = vadd.f32 0.0, %v5418
          %v5420 = vpop.f32.mrb[0].mxu0
          %v5421 = vpop.f32.mrb[0].mxu0
          %v5422 = vadd.f32 0.0, %v5421
          %v5423 = vpop.f32.mrb[0].mxu0
          %5424 = vmatprep.mubr.bf16.mxu0 0
          %5425 = vmatmul.mubr.bf16.gmra.mrb[0].mxu0 %v5290
          %v5426 = vpop.f32.mrb[0].mxu0
          %v5427 = vadd.f32 0.0, %v5426
          %v5428 = vpop.f32.mrb[0].mxu0
          %v5429 = vpop.f32.mrb[0].mxu0
          %v5430 = vadd.f32 0.0, %v5429
          %v5431 = vpop.f32.mrb[0].mxu0
          %5432 = vmatprep.mubr.bf16.mxu0 0
          %5433 = vmatmul.mubr.bf16.gmra.mrb[0].mxu0 %v5293
          %v5434 = vpop.f32.mrb[0].mxu0
          %v5435 = vadd.f32 0.0, %v5434
          %v5436 = vpop.f32.mrb[0].mxu0
          %v5437 = vpop.f32.mrb[0].mxu0
          %v5438 = vadd.f32 0.0, %v5437
          %v5439 = vpop.f32.mrb[0].mxu0
          %5440 = vmatprep.mubr.bf16.mxu0 0
          %5441 = vmatmul.mubr.bf16.gmra.mrb[0].mxu0 %v5296
          %v5442 = vpop.f32.mrb[0].mxu0
          %v5443 = vadd.f32 0.0, %v5442
          %v5444 = vpop.f32.mrb[0].mxu0
          %v5445 = vpop.f32.mrb[0].mxu0
          %v5446 = vadd.f32 0.0, %v5445
          %v5447 = vpop.f32.mrb[0].mxu0
          %5448 = vmatprep.mubr.bf16.mxu0 0
          %5449 = vmatmul.mubr.bf16.gmra.mrb[0].mxu0 %v5299
          %v5450 = vpop.f32.mrb[0].mxu0
          %v5451 = vadd.f32 0.0, %v5450
          %v5452 = vpop.f32.mrb[0].mxu0
          %v5453 = vpop.f32.mrb[0].mxu0
          %v5454 = vadd.f32 0.0, %v5453
          %v5455 = vpop.f32.mrb[0].mxu0
          %5456 = vmatprep.mubr.bf16.mxu0 0
          %5457 = vmatmul.mubr.bf16.gmra.mrb[0].mxu0 %v5302
          %v5458 = vpop.f32.mrb[0].mxu0
          %v5459 = vadd.f32 0.0, %v5458
          %v5460 = vpop.f32.mrb[0].mxu0
          %v5461 = vpop.f32.mrb[0].mxu0
          %v5462 = vadd.f32 0.0, %v5461
          %v5463 = vpop.f32.mrb[0].mxu0
          %5464 = vdwg.mxu0
          %s5465 = scalar_lea.vmem %s336, %s2449 [#allocation4]
          %v5466 = vld [vmem:[%s5465] sm:$0xff]
          %v5467 = vld [vmem:[%s5465 + $0x8] sm:$0xff]
          %v5468 = vld [vmem:[%s5465 + $0x10] sm:$0xff]
          %v5469 = vld [vmem:[%s5465 + $0x18] sm:$0xff]
          %v5470 = vld [vmem:[%s5465 + $0x20] sm:$0xff]
          %v5471 = vld [vmem:[%s5465 + $0x28] sm:$0xff]
          %v5472 = vld [vmem:[%s5465 + $0x30] sm:$0xff]
          %v5473 = vld [vmem:[%s5465 + $0x38] sm:$0xff]
          %v5474 = vld [vmem:[%s5465 + $0x40] sm:$0xff]
          %v5475 = vld [vmem:[%s5465 + $0x48] sm:$0xff]
          %v5476 = vld [vmem:[%s5465 + $0x50] sm:$0xff]
          %v5477 = vld [vmem:[%s5465 + $0x58] sm:$0xff]
          %v5478 = vld [vmem:[%s5465 + $0x60] sm:$0xff]
          %v5479 = vld [vmem:[%s5465 + $0x68] sm:$0xff]
          %v5480 = vld [vmem:[%s5465 + $0x70] sm:$0xff]
          %v5481 = vld [vmem:[%s5465 + $0x78] sm:$0xff]
          %v5482 = vld [vmem:[%s5465 + $0x80] sm:$0xff]
          %v5483 = vld [vmem:[%s5465 + $0x88] sm:$0xff]
          %v5484 = vld [vmem:[%s5465 + $0x90] sm:$0xff]
          %v5485 = vld [vmem:[%s5465 + $0x98] sm:$0xff]
          %v5486 = vld [vmem:[%s5465 + $0xa0] sm:$0xff]
          %v5487 = vld [vmem:[%s5465 + $0xa8] sm:$0xff]
          %v5488 = vld [vmem:[%s5465 + $0xb0] sm:$0xff]
          %v5489 = vld [vmem:[%s5465 + $0xb8] sm:$0xff]
          %v5490 = vld [vmem:[%s5465 + $0xc0] sm:$0xff]
          %v5491 = vld [vmem:[%s5465 + $0xc8] sm:$0xff]
          %v5492 = vld [vmem:[%s5465 + $0xd0] sm:$0xff]
          %v5493 = vld [vmem:[%s5465 + $0xd8] sm:$0xff]
          %v5494 = vld [vmem:[%s5465 + $0xe0] sm:$0xff]
          %v5495 = vld [vmem:[%s5465 + $0xe8] sm:$0xff]
          %v5496 = vld [vmem:[%s5465 + $0xf0] sm:$0xff]
          %v5497 = vld [vmem:[%s5465 + $0xf8] sm:$0xff]
          %v5498 = vadd.f32 %v5466, %v5339
          %v5499 = vadd.f32 %v5467, %v5342
          %v5500 = vadd.f32 %v5468, %v5347
          %v5501 = vadd.f32 %v5469, %v5350
          %v5502 = vadd.f32 %v5470, %v5355
          %v5503 = vadd.f32 %v5471, %v5358
          %v5504 = vadd.f32 %v5472, %v5363
          %v5505 = vadd.f32 %v5473, %v5366
          %v5506 = vadd.f32 %v5474, %v5371
          %v5507 = vadd.f32 %v5475, %v5374
          %v5508 = vadd.f32 %v5476, %v5379
          %v5509 = vadd.f32 %v5477, %v5382
          %v5510 = vadd.f32 %v5478, %v5387
          %v5511 = vadd.f32 %v5479, %v5390
          %v5512 = vadd.f32 %v5480, %v5395
          %v5513 = vadd.f32 %v5481, %v5398
          %v5514 = vadd.f32 %v5482, %v5403
          %v5515 = vadd.f32 %v5483, %v5406
          %v5516 = vadd.f32 %v5484, %v5411
          %v5517 = vadd.f32 %v5485, %v5414
          %v5518 = vadd.f32 %v5486, %v5419
          %v5519 = vadd.f32 %v5487, %v5422
          %v5520 = vadd.f32 %v5488, %v5427
          %v5521 = vadd.f32 %v5489, %v5430
          %v5522 = vadd.f32 %v5490, %v5435
          %v5523 = vadd.f32 %v5491, %v5438
          %v5524 = vadd.f32 %v5492, %v5443
          %v5525 = vadd.f32 %v5493, %v5446
          %v5526 = vadd.f32 %v5494, %v5451
          %v5527 = vadd.f32 %v5495, %v5454
          %v5528 = vadd.f32 %v5496, %v5459
          %v5529 = vadd.f32 %v5497, %v5462
          %v5530 = vmax.f32 %v5498, 0.0
          %v5531 = vmax.f32 %v5499, 0.0
          %v5532 = vmax.f32 %v5500, 0.0
          %v5533 = vmax.f32 %v5501, 0.0
          %v5534 = vmax.f32 %v5502, 0.0
          %v5535 = vmax.f32 %v5503, 0.0
          %v5536 = vmax.f32 %v5504, 0.0
          %v5537 = vmax.f32 %v5505, 0.0
          %v5538 = vmax.f32 %v5506, 0.0
          %v5539 = vmax.f32 %v5507, 0.0
          %v5540 = vmax.f32 %v5508, 0.0
          %v5541 = vmax.f32 %v5509, 0.0
          %v5542 = vmax.f32 %v5510, 0.0
          %v5543 = vmax.f32 %v5511, 0.0
          %v5544 = vmax.f32 %v5512, 0.0
          %v5545 = vmax.f32 %v5513, 0.0
          %v5546 = vmax.f32 %v5514, 0.0
          %v5547 = vmax.f32 %v5515, 0.0
          %v5548 = vmax.f32 %v5516, 0.0
          %v5549 = vmax.f32 %v5517, 0.0
          %v5550 = vmax.f32 %v5518, 0.0
          %v5551 = vmax.f32 %v5519, 0.0
          %v5552 = vmax.f32 %v5520, 0.0
          %v5553 = vmax.f32 %v5521, 0.0
          %v5554 = vmax.f32 %v5522, 0.0
          %v5555 = vmax.f32 %v5523, 0.0
          %v5556 = vmax.f32 %v5524, 0.0
          %v5557 = vmax.f32 %v5525, 0.0
          %v5558 = vmax.f32 %v5526, 0.0
          %v5559 = vmax.f32 %v5527, 0.0
          %v5560 = vmax.f32 %v5528, 0.0
          %v5561 = vmax.f32 %v5529, 0.0
          %5562 = vst.msk [vmem:[%s5465] sm:$0xff] %vm346, %v5530
          %5563 = vst.msk [vmem:[%s5465 + $0x8] sm:$0xff] %vm346, %v5531
          %5564 = vst.msk [vmem:[%s5465 + $0x10] sm:$0xff] %vm346, %v5532
          %5565 = vst.msk [vmem:[%s5465 + $0x18] sm:$0xff] %vm346, %v5533
          %5566 = vst.msk [vmem:[%s5465 + $0x20] sm:$0xff] %vm346, %v5534
          %5567 = vst.msk [vmem:[%s5465 + $0x28] sm:$0xff] %vm346, %v5535
          %5568 = vst.msk [vmem:[%s5465 + $0x30] sm:$0xff] %vm346, %v5536
          %5569 = vst.msk [vmem:[%s5465 + $0x38] sm:$0xff] %vm346, %v5537
          %5570 = vst.msk [vmem:[%s5465 + $0x40] sm:$0xff] %vm346, %v5538
          %5571 = vst.msk [vmem:[%s5465 + $0x48] sm:$0xff] %vm346, %v5539
          %5572 = vst.msk [vmem:[%s5465 + $0x50] sm:$0xff] %vm346, %v5540
          %5573 = vst.msk [vmem:[%s5465 + $0x58] sm:$0xff] %vm346, %v5541
          %5574 = vst.msk [vmem:[%s5465 + $0x60] sm:$0xff] %vm346, %v5542
          %5575 = vst.msk [vmem:[%s5465 + $0x68] sm:$0xff] %vm346, %v5543
          %5576 = vst.msk [vmem:[%s5465 + $0x70] sm:$0xff] %vm346, %v5544
          %5577 = vst.msk [vmem:[%s5465 + $0x78] sm:$0xff] %vm346, %v5545
          %5578 = vst.msk [vmem:[%s5465 + $0x80] sm:$0xff] %vm346, %v5546
          %5579 = vst.msk [vmem:[%s5465 + $0x88] sm:$0xff] %vm346, %v5547
          %5580 = vst.msk [vmem:[%s5465 + $0x90] sm:$0xff] %vm346, %v5548
          %5581 = vst.msk [vmem:[%s5465 + $0x98] sm:$0xff] %vm346, %v5549
          %5582 = vst.msk [vmem:[%s5465 + $0xa0] sm:$0xff] %vm346, %v5550
          %5583 = vst.msk [vmem:[%s5465 + $0xa8] sm:$0xff] %vm346, %v5551
          %5584 = vst.msk [vmem:[%s5465 + $0xb0] sm:$0xff] %vm346, %v5552
          %5585 = vst.msk [vmem:[%s5465 + $0xb8] sm:$0xff] %vm346, %v5553
          %5586 = vst.msk [vmem:[%s5465 + $0xc0] sm:$0xff] %vm346, %v5554
          %5587 = vst.msk [vmem:[%s5465 + $0xc8] sm:$0xff] %vm346, %v5555
          %5588 = vst.msk [vmem:[%s5465 + $0xd0] sm:$0xff] %vm346, %v5556
          %5589 = vst.msk [vmem:[%s5465 + $0xd8] sm:$0xff] %vm346, %v5557
          %5590 = vst.msk [vmem:[%s5465 + $0xe0] sm:$0xff] %vm346, %v5558
          %5591 = vst.msk [vmem:[%s5465 + $0xe8] sm:$0xff] %vm346, %v5559
          %5592 = vst.msk [vmem:[%s5465 + $0xf0] sm:$0xff] %vm346, %v5560
          %5593 = vst.msk [vmem:[%s5465 + $0xf8] sm:$0xff] %vm346, %v5561
        $region68: #{_bottom_bridge_3d.1} parent=55 // loop_footer
          %s2448 = sadd.s32 1, %s2444
        $region69: #{_bottom_bridge_3d.1} parent=55 // loop_footer_branch
          %2443 = sbr.rel target = $region65
        $region70: #{_bottom_bridge_3d.1} parent=55 // loop_exit
          _
        %s5594 = sand.u32 %s230, 1
        %s5595 = scalar_lea.sflag [#allocation5], %s5594
        %s5596 = sand.u32 %s230, 1
        %s5597 = smul.addr %s5596, 2048
        %s5598 = scalar_lea.vmem [#allocation4], %s5597
        // Predicated region
        $region71: #{_bottom_bridge_3d.1} parent=55 // pred_check
          %p5599 = pneg %p240
        $region72: #{_bottom_bridge_3d.1} parent=55 // pred_check_branch
          %5601 = sbr.rel (%p5599) target = $region74
        $region73: #{_bottom_bridge_3d.1} parent=55 // pred_region
          %s5603 = ssub.s32 32768, 32768
          %5604 = vsyncadd %s5595, %s5603
          %s5605 = smul.addr %s23, 256
          %s5606 = smul.addr %s5605, 128
          %s5607 = scalar_lea.hbm %s9, %s5606
          %s5608 = sshll.u32 %s5598, 4
          %s5609 = int_to_ptr.vmem [resolvable:$true] %s5608
          %5614 = dma.vmem_to_hbm [thread:$0]  %s5609, 32768, %s5607, %s5595, 128, 128, 8
        $region74: #{_bottom_bridge_3d.1} parent=55 // pred_fallthru
          _
      $region56: #{_bottom_bridge_3d.1} parent=5 // pred_fallthru
        _
      %p5615 = scmp.le.s32.totalorder 2, %s18
      // Predicated region
      $region75: #{_bottom_bridge_3d.1} parent=5 // pred_check
        %p5616 = pneg %p5615
      $region76: #{_bottom_bridge_3d.1} parent=5 // pred_check_branch
        %5618 = sbr.rel (%p5616) target = $region78
      $region77: #{_bottom_bridge_3d.1} parent=5 // pred_region
        %s5619 = ssub.s32 %s18, 2
        // Predicated region
        $region79: #{_bottom_bridge_3d.1} parent=77 // pred_check
          %p5620 = pneg %p246
        $region80: #{_bottom_bridge_3d.1} parent=77 // pred_check_branch
          %5622 = sbr.rel (%p5620) target = $region82
        $region81: #{_bottom_bridge_3d.1} parent=77 // pred_region
          %s5623 = sand.u32 %s231, 1
          %s5624 = scalar_lea.sflag [#allocation5], %s5623
          %s5625 = sand.u32 %s231, 1
          %s5626 = smul.addr %s5625, 2048
          %s5627 = scalar_lea.vmem [#allocation4], %s5626
          %5628 = dma.done %s5624, 32768
        $region82: #{_bottom_bridge_3d.1} parent=77 // pred_fallthru
          _
      $region78: #{_bottom_bridge_3d.1} parent=5 // pred_fallthru
        _
    $region6: #{_bottom_bridge_3d.1} parent=1 // loop_footer
      %s22 = sadd.s32 1, %s18
    $region7: #{_bottom_bridge_3d.1} parent=1 // loop_footer_branch
      %17 = sbr.rel target = $region3
    $region8: #{_bottom_bridge_3d.1} parent=1 // loop_exit
      _
    %5629 = vsyncpa [#allocation5], 1
    %s5630 = scalar_lea.sflag [#allocation5], 1
    %5631 = vsyncpa %s5630, 1

</llo_original>
